<compile_context>
chip_gen: v7x
topology: tpu7x:2x2x1
jax: 0.10.0
libtpu: 0.0.40
codegen_flags: <defaults>
</compile_context>

<pallas_src>
import functools

import jax
import jax.numpy as jnp
import numpy as np
from jax import lax
from jax.experimental import pallas as pl
from jax.experimental.pallas import tpu as pltpu

_BN_EPS = 1e-5
_LANE = 128


def _round_up(x, m):
    return ((x + m - 1) // m) * m


def _vmem_limit_bytes():
    # Generation-aware VMEM budget: ~80% of physical (v5e/v6e: 128 MiB -> ~102 MiB,
    # v7x: 64 MiB -> ~51 MiB), never above 112 MiB.
    try:
        cap = int(pltpu.get_tpu_info().vmem_capacity_bytes)
    except Exception:
        cap = 64 * 1024 * 1024
    return min(int(cap * 0.8), 112 * 1024 * 1024)


# ----------------------------------------------------------------------------
# Fused kernel: BN1 + conv1(1x1 bin) + relu + BN2 + conv2(3x3 bin, stride) + relu
#               + BN3 + conv3(1x1 bin) + shortcut + add + relu   (one image / step)
# ----------------------------------------------------------------------------

def _make_bottleneck_kernel(s, h, w, ho, wo, eh, ew_pad, cin, cmid_p, cout_p):
    nph = s * s
    rows = ho * wo

    def kernel(xph_ref, s1_ref, w1s_ref, a1_ref, c1_ref, s2_ref, b2_ref,
               w2cat_ref, sc23_ref, b3_ref, w3s_ref, a3_ref,
               ws_ref, wsa_ref, wsc_ref, o_ref):
        s1 = s1_ref[...]                                  # (1, cin) f32
        xall = xph_ref[0]                                 # (nph*eh, ew_pad, cin) bf16

        # ---- stage 1 per stride-phase, fully in VMEM ----
        r1ph = []
        for p in range(nph):
            ph, pw = p // s, p % s
            xf = xall[p * eh:(p + 1) * eh].astype(jnp.float32)   # (eh, ew_pad, cin)
            xs = (xf * s1).reshape(eh * ew_pad, cin).astype(jnp.bfloat16)
            z = jnp.dot(xs, w1s_ref[...], preferred_element_type=jnp.float32)
            r1 = jnp.maximum(z * a1_ref[...] + c1_ref[...], 0.0)   # conv1(BN1 x), relu
            r1 = (r1 * s2_ref[...] + b2_ref[...]).reshape(eh, ew_pad, cmid_p)  # BN2
            # zero conv2's spatial padding (positions mapping outside the image)
            ra = lax.broadcasted_iota(jnp.int32, (eh, ew_pad, 1), 0) * s + ph
            ca = lax.broadcasted_iota(jnp.int32, (eh, ew_pad, 1), 1) * s + pw
            valid = (ra >= 1) & (ra <= h) & (ca >= 1) & (ca <= w)
            r1ph.append(jnp.where(valid, r1, 0.0))

        # ---- conv2 (3x3, stride s, pad 1): 9 taps concatenated along K,
        #      one MXU matmul instead of nine small dots + add chain ----
        taps = []
        for dh in range(3):
            for dw in range(3):
                p = (dh % s) * s + (dw % s)
                qh, qw = dh // s, dw // s
                taps.append(r1ph[p][qh:qh + ho, qw:qw + wo, :].reshape(rows, cmid_p))
        tapcat = jnp.concatenate(taps, axis=-1).astype(jnp.bfloat16)   # (rows, 9*cmid_p)
        acc = jnp.dot(tapcat, w2cat_ref[...], preferred_element_type=jnp.float32)

        # relu + (alpha2 * BN3); alpha2 = mean|W2| >= 0 so relu commutes with the scale
        r2 = jnp.maximum(acc, 0.0) * sc23_ref[...] + b3_ref[...]

        # ---- binary conv3 (1x1) ----
        z3 = jnp.dot(r2.astype(jnp.bfloat16), w3s_ref[...],
                     preferred_element_type=jnp.float32) * a3_ref[...]

        # ---- shortcut: conv_shortcut(BN1 x) or identity BN1(x) via an I matmul.
        #      The stride-s subsample of x is phase ((1%s),(1%s)) at offset 1//s.
        psc = (1 % s) * s + (1 % s)
        qsc = 1 // s
        xsc = xall[psc * eh + qsc: psc * eh + qsc + ho, qsc:qsc + wo, :]
        xsc = (xsc.astype(jnp.float32) * s1).reshape(rows, cin).astype(jnp.bfloat16)
        sc = (jnp.dot(xsc, ws_ref[...], preferred_element_type=jnp.float32)
              * wsa_ref[...] + wsc_ref[...])

        o_ref[0] = jnp.maximum(z3 + sc, 0.0)

    return kernel


# ----------------------------------------------------------------------------
# Parameter prep (hoisted: run once, not per forward).  All channel dims that only
# live in VMEM / in the output store are zero-padded to the 128-lane width.
# ----------------------------------------------------------------------------

def fold_bn(gamma, beta, mean, var):
    inv = gamma / jnp.sqrt(var + _BN_EPS)
    return inv, beta - mean * inv


def _sign(w):
    return jnp.where(w >= 0, 1.0, -1.0)


def binarize_weight(w):
    # XNOR-Net: sign(W) * mean(|W|) per output filter (reference path only).
    alpha = jnp.mean(jnp.abs(w), axis=(1, 2, 3), keepdims=True)
    return _sign(w) * alpha


def prepare_params(params):
    cmid, cin = params['w1'].shape[0], params['w1'].shape[1]
    cout = params['w3'].shape[0]
    cmid_p = _round_up(cmid, _LANE)
    cout_p = _round_up(cout, _LANE)

    s1, b1 = fold_bn(*params['bn1'])          # (cin,)
    s2, b2 = fold_bn(*params['bn2'])          # (cmid,)
    s3, b3 = fold_bn(*params['bn3'])          # (cmid,)

    def padc(v, n):
        return jnp.pad(v, (0, n - v.shape[0]))[None, :]

    # conv1 (1x1): W_b = sign(W1)*a1 per output filter; BN1 shift folded into c1.
    w1 = params['w1'].reshape(cmid, cin)
    a1 = jnp.mean(jnp.abs(params['w1']), axis=(1, 2, 3))           # (cmid,)
    w1s = jnp.transpose(_sign(w1), (1, 0))                         # (cin, cmid)
    c1 = a1 * (b1 @ w1s)                                           # (cmid,)
    w1s_p = jnp.pad(w1s, ((0, 0), (0, cmid_p - cmid))).astype(jnp.bfloat16)

    # conv2 (3x3): taps concatenated along K -> (9*cmid_p, cmid_p).
    w2 = params['w2']                                              # (cmid, cmid, 3, 3)
    a2 = jnp.mean(jnp.abs(w2), axis=(1, 2, 3))                     # (cmid,) >= 0
    w2s = jnp.transpose(_sign(w2), (2, 3, 1, 0))                   # (3,3,cin_m,cout_m)
    w2s = jnp.pad(w2s, ((0, 0), (0, 0), (0, cmid_p - cmid), (0, cmid_p - cmid)))
    w2cat = w2s.reshape(9 * cmid_p, cmid_p).astype(jnp.bfloat16)

    # conv3 (1x1)
    w3 = params['w3'].reshape(cout, cmid)
    a3 = jnp.mean(jnp.abs(params['w3']), axis=(1, 2, 3))           # (cout,)
    w3s = jnp.transpose(_sign(w3), (1, 0))                         # (cmid, cout)
    w3s_p = jnp.pad(w3s, ((0, cmid_p - cmid), (0, cout_p - cout))).astype(jnp.bfloat16)

    if 'ws' in params:
        ws = params['ws'].reshape(cout, cin)
        a_s = jnp.mean(jnp.abs(params['ws']), axis=(1, 2, 3))      # (cout,)
        wss = jnp.transpose(_sign(ws), (1, 0))                     # (cin, cout)
        ws_c = a_s * (b1 @ wss)
        ws_s = jnp.pad(wss, ((0, 0), (0, cout_p - cout))).astype(jnp.bfloat16)
        ws_a = padc(a_s, cout_p)
        ws_c = padc(ws_c, cout_p)
    else:
        # Identity shortcut = BN1(x), routed through the same matmul path (cin==cout).
        ws_s = jnp.pad(jnp.eye(cin, dtype=jnp.float32),
                       ((0, 0), (0, cout_p - cout))).astype(jnp.bfloat16)
        ws_a = padc(jnp.ones((cout,), jnp.float32), cout_p)
        ws_c = padc(b1, cout_p)

    return dict(
        s1=s1[None, :],
        w1s=w1s_p, a1=padc(a1, cmid_p), c1=padc(c1, cmid_p),
        s2=padc(s2, cmid_p), b2=padc(b2, cmid_p),
        w2cat=w2cat, sc23=padc(a2 * s3, cmid_p), b3=padc(b3, cmid_p),
        w3s=w3s_p, a3=padc(a3, cout_p),
        ws_s=ws_s, ws_a=ws_a, ws_c=ws_c,
    )


def init_params(key, cin, cmid, cout, stride):
    ks = jax.random.split(key, 8)

    def bn_params(k, c):
        k1, k2, k3, k4 = jax.random.split(k, 4)
        gamma = 1.0 + 0.1 * jax.random.normal(k1, (c,), jnp.float32)
        beta = 0.1 * jax.random.normal(k2, (c,), jnp.float32)
        mean = 0.1 * jax.random.normal(k3, (c,), jnp.float32)
        var = jax.random.uniform(k4, (c,), jnp.float32, 0.5, 1.5)
        return gamma, beta, mean, var

    p = {
        'bn1': bn_params(ks[0], cin),
        'bn2': bn_params(ks[1], cmid),
        'bn3': bn_params(ks[2], cmid),
        'w1': 0.1 * jax.random.normal(ks[3], (cmid, cin, 1, 1), jnp.float32),
        'w2': 0.1 * jax.random.normal(ks[4], (cmid, cmid, 3, 3), jnp.float32),
        'w3': 0.1 * jax.random.normal(ks[5], (cout, cmid, 1, 1), jnp.float32),
    }
    if stride != 1 or cin != cout:
        p['ws'] = 0.1 * jax.random.normal(ks[6], (cout, cin, 1, 1), jnp.float32)
    return p


# ----------------------------------------------------------------------------
# Bottleneck forward (single fused pallas_call)
# ----------------------------------------------------------------------------

def bottleneck_forward(x_nchw, prep, *, stride, cout):
    n, cin, h, w = x_nchw.shape
    s = stride
    cmid_p = prep['w1s'].shape[1]
    cout_p = prep['w3s'].shape[1]

    ho = (h - 1) // s + 1
    wo = (w - 1) // s + 1
    qmax = 2 // s
    eh = ho + qmax
    ew_pad = _round_up(wo + qmax, 8)
    hp, wp = s * eh, s * ew_pad
    rows = ho * wo
    nph = s * s

    # x only: NCHW->NHWC + bf16 cast, conv2 zero-pad, stride-phase split.
    # r1/r2 never leave VMEM (no intermediate HBM round trips).
    x_nhwc = jnp.transpose(x_nchw, (0, 2, 3, 1)).astype(jnp.bfloat16)
    xp = jnp.pad(x_nhwc, ((0, 0), (1, hp - 1 - h), (1, wp - 1 - w), (0, 0)))
    xph = jnp.stack([xp[:, a::s, b::s, :] for a in range(s) for b in range(s)],
                    axis=1).reshape(n, nph * eh, ew_pad, cin)

    weight_keys = ('s1', 'w1s', 'a1', 'c1', 's2', 'b2', 'w2cat', 'sc23', 'b3',
                   'w3s', 'a3', 'ws_s', 'ws_a', 'ws_c')
    weights = [prep[k] for k in weight_keys]

    def full_spec(arr):
        return pl.BlockSpec(arr.shape, lambda i, nd=arr.ndim: (0,) * nd)

    kernel = _make_bottleneck_kernel(s, h, w, ho, wo, eh, ew_pad, cin, cmid_p, cout_p)

    out = pl.pallas_call(
        kernel,
        out_shape=jax.ShapeDtypeStruct((n, rows, cout_p), jnp.float32),
        grid=(n,),
        in_specs=[pl.BlockSpec((1, nph * eh, ew_pad, cin), lambda i: (i, 0, 0, 0))]
                 + [full_spec(a) for a in weights],
        out_specs=pl.BlockSpec((1, rows, cout_p), lambda i: (i, 0, 0)),
        compiler_params=pltpu.CompilerParams(
            dimension_semantics=("parallel",),
            vmem_limit_bytes=_vmem_limit_bytes()),
    )(xph, *weights)

    # Drop lane padding and go back to NCHW (slice + transpose fuse into one pass).
    out = out.reshape(n, ho, wo, cout_p)[:, :, :, :cout]
    return jnp.transpose(out, (0, 3, 1, 2))


# ----------------------------------------------------------------------------
# Pure-JAX f32 reference (sanity check only)
# ----------------------------------------------------------------------------

def ref_forward(x, params, stride):
    def bn(v, prm):
        g, b, m, var = prm
        inv = (g / jnp.sqrt(var + _BN_EPS))[None, :, None, None]
        return (v - m[None, :, None, None]) * inv + b[None, :, None, None]

    def conv(v, w, s, p):
        return jax.lax.conv_general_dilated(
            v, w, (s, s), ((p, p), (p, p)),
            dimension_numbers=('NCHW', 'OIHW', 'NCHW'))

    xn = bn(x, params['bn1'])
    shortcut = xn
    if 'ws' in params:
        shortcut = conv(xn, binarize_weight(params['ws']), stride, 0)
    r = conv(xn, binarize_weight(params['w1']), 1, 0)
    r = jnp.maximum(r, 0.0)
    r = bn(r, params['bn2'])
    r = conv(r, binarize_weight(params['w2']), stride, 1)
    r = jnp.maximum(r, 0.0)
    r = bn(r, params['bn3'])
    r = conv(r, binarize_weight(params['w3']), 1, 0)
    return jnp.maximum(r + shortcut, 0.0)


# ----------------------------------------------------------------------------
# Main
# ----------------------------------------------------------------------------

if __name__ == "__main__":
    key = jax.random.PRNGKey(0)

    configs = [
        # (N, Cin, Cmid, Cout, H, W, stride)
        (2, 16, 16, 64, 16, 16, 2),   # downsample block: stride 2 + conv_shortcut
        (2, 32, 16, 32, 16, 16, 1),   # identity-shortcut block
    ]
    for (N, Cin, Cmid, Cout, H, W, stride) in configs:
        kx, kp, key = jax.random.split(key, 3)
        x = jax.random.normal(kx, (N, Cin, H, W), jnp.float32)
        params = init_params(kp, Cin, Cmid, Cout, stride)
        prep = prepare_params(params)

        fwd = jax.jit(functools.partial(bottleneck_forward, stride=stride, cout=Cout))
        out = jax.block_until_ready(fwd(x, prep))
        ref = jax.block_until_ready(ref_forward(x, params, stride))
        np.testing.assert_allclose(np.asarray(out), np.asarray(ref),
                                   rtol=3e-2, atol=3e-2)

    print("KERNEL_OK")
</pallas_src>

<mosaic_0001>
module attributes {stable_mosaic.version = 11 : i64} {
  func.func @kernel(%arg0: i32, %arg1: memref<1x36x16x16xbf16, #tpu.memory_space<vmem>>, %arg2: memref<1x16xf32, #tpu.memory_space<vmem>>, %arg3: memref<16x128xbf16, #tpu.memory_space<vmem>>, %arg4: memref<1x128xf32, #tpu.memory_space<vmem>>, %arg5: memref<1x128xf32, #tpu.memory_space<vmem>>, %arg6: memref<1x128xf32, #tpu.memory_space<vmem>>, %arg7: memref<1x128xf32, #tpu.memory_space<vmem>>, %arg8: memref<1152x128xbf16, #tpu.memory_space<vmem>>, %arg9: memref<1x128xf32, #tpu.memory_space<vmem>>, %arg10: memref<1x128xf32, #tpu.memory_space<vmem>>, %arg11: memref<128x128xbf16, #tpu.memory_space<vmem>>, %arg12: memref<1x128xf32, #tpu.memory_space<vmem>>, %arg13: memref<16x128xbf16, #tpu.memory_space<vmem>>, %arg14: memref<1x128xf32, #tpu.memory_space<vmem>>, %arg15: memref<1x128xf32, #tpu.memory_space<vmem>>, %arg16: memref<1x64x128xf32, #tpu.memory_space<vmem>>) attributes {dimension_semantics = [#tpu.dimension_semantics<parallel>], iteration_bounds = array<i64: 2>, scalar_prefetch = 0 : i64, scratch_operands = 0 : i64, tpu.core_type = #tpu.core_type<tc>, window_params = [{transform_indices = @transform_0, window_bounds = array<i64: 1, 36, 16, 16>}, {pipeline_mode = #tpu.pipeline_mode<synchronous>, transform_indices = @transform_1, window_bounds = array<i64: 1, 16>}, {pipeline_mode = #tpu.pipeline_mode<synchronous>, transform_indices = @transform_2, window_bounds = array<i64: 16, 128>}, {pipeline_mode = #tpu.pipeline_mode<synchronous>, transform_indices = @transform_3, window_bounds = array<i64: 1, 128>}, {pipeline_mode = #tpu.pipeline_mode<synchronous>, transform_indices = @transform_4, window_bounds = array<i64: 1, 128>}, {pipeline_mode = #tpu.pipeline_mode<synchronous>, transform_indices = @transform_5, window_bounds = array<i64: 1, 128>}, {pipeline_mode = #tpu.pipeline_mode<synchronous>, transform_indices = @transform_6, window_bounds = array<i64: 1, 128>}, {pipeline_mode = #tpu.pipeline_mode<synchronous>, transform_indices = @transform_7, window_bounds = array<i64: 1152, 128>}, {pipeline_mode = #tpu.pipeline_mode<synchronous>, transform_indices = @transform_8, window_bounds = array<i64: 1, 128>}, {pipeline_mode = #tpu.pipeline_mode<synchronous>, transform_indices = @transform_9, window_bounds = array<i64: 1, 128>}, {pipeline_mode = #tpu.pipeline_mode<synchronous>, transform_indices = @transform_10, window_bounds = array<i64: 128, 128>}, {pipeline_mode = #tpu.pipeline_mode<synchronous>, transform_indices = @transform_11, window_bounds = array<i64: 1, 128>}, {pipeline_mode = #tpu.pipeline_mode<synchronous>, transform_indices = @transform_12, window_bounds = array<i64: 16, 128>}, {pipeline_mode = #tpu.pipeline_mode<synchronous>, transform_indices = @transform_13, window_bounds = array<i64: 1, 128>}, {pipeline_mode = #tpu.pipeline_mode<synchronous>, transform_indices = @transform_14, window_bounds = array<i64: 1, 128>}, {transform_indices = @transform_15, window_bounds = array<i64: 1, 64, 128>}]} {
    %c0 = arith.constant 0 : index
    %c0_0 = arith.constant 0 : index
    %0 = vector.load %arg2[%c0, %c0_0] : memref<1x16xf32, #tpu.memory_space<vmem>>, vector<1x16xf32>
    %c0_1 = arith.constant 0 : index
    %c0_2 = arith.constant 0 : index
    %c0_3 = arith.constant 0 : index
    %c0_4 = arith.constant 0 : index
    %1 = vector.load %arg1[%c0_1, %c0_2, %c0_3, %c0_4] : memref<1x36x16x16xbf16, #tpu.memory_space<vmem>>, vector<1x36x16x16xbf16>
    %2 = vector.shape_cast %1 : vector<1x36x16x16xbf16> to vector<36x16x16xbf16>
    %3 = vector.extract_strided_slice %2 {offsets = [0, 0, 0], sizes = [9, 16, 16], strides = [1, 1, 1]} : vector<36x16x16xbf16> to vector<9x16x16xbf16>
    %4 = arith.extf %3 : vector<9x16x16xbf16> to vector<9x16x16xf32>
    %5 = vector.shape_cast %0 : vector<1x16xf32> to vector<1x1x16xf32>
    %6 = vector.broadcast %5 : vector<1x1x16xf32> to vector<9x16x16xf32>
    %7 = arith.mulf %4, %6 : vector<9x16x16xf32>
    %8 = vector.shape_cast %7 : vector<9x16x16xf32> to vector<144x16xf32>
    %9 = arith.truncf %8 : vector<144x16xf32> to vector<144x16xbf16>
    %c0_5 = arith.constant 0 : index
    %c0_6 = arith.constant 0 : index
    %10 = vector.load %arg3[%c0_5, %c0_6] : memref<16x128xbf16, #tpu.memory_space<vmem>>, vector<16x128xbf16>
    %cst = arith.constant dense<0.000000e+00> : vector<144x128xf32>
    %11 = tpu.matmul %9, %10, %cst {dimension_numbers = #tpu.dot_dimension_numbers<[1], [0], [0], [1], [0, 0, 1, 1], [], []>} : vector<144x16xbf16>, vector<16x128xbf16>, vector<144x128xf32> -> vector<144x128xf32>
    %c0_7 = arith.constant 0 : index
    %c0_8 = arith.constant 0 : index
    %12 = vector.load %arg4[%c0_7, %c0_8] : memref<1x128xf32, #tpu.memory_space<vmem>>, vector<1x128xf32>
    %13 = vector.broadcast %12 : vector<1x128xf32> to vector<144x128xf32>
    %14 = arith.mulf %11, %13 : vector<144x128xf32>
    %c0_9 = arith.constant 0 : index
    %c0_10 = arith.constant 0 : index
    %15 = vector.load %arg5[%c0_9, %c0_10] : memref<1x128xf32, #tpu.memory_space<vmem>>, vector<1x128xf32>
    %16 = vector.broadcast %15 : vector<1x128xf32> to vector<144x128xf32>
    %17 = arith.addf %14, %16 : vector<144x128xf32>
    %cst_11 = arith.constant 0.000000e+00 : f32
    %18 = vector.broadcast %cst_11 : f32 to vector<144x128xf32>
    %19 = arith.maximumf %17, %18 : vector<144x128xf32>
    %c0_12 = arith.constant 0 : index
    %c0_13 = arith.constant 0 : index
    %20 = vector.load %arg6[%c0_12, %c0_13] : memref<1x128xf32, #tpu.memory_space<vmem>>, vector<1x128xf32>
    %21 = vector.broadcast %20 : vector<1x128xf32> to vector<144x128xf32>
    %22 = arith.mulf %19, %21 : vector<144x128xf32>
    %c0_14 = arith.constant 0 : index
    %c0_15 = arith.constant 0 : index
    %23 = vector.load %arg7[%c0_14, %c0_15] : memref<1x128xf32, #tpu.memory_space<vmem>>, vector<1x128xf32>
    %24 = vector.broadcast %23 : vector<1x128xf32> to vector<144x128xf32>
    %25 = arith.addf %22, %24 : vector<144x128xf32>
    %26 = vector.shape_cast %25 : vector<144x128xf32> to vector<9x16x128xf32>
    %27 = tpu.iota {dimensions = array<i32: 0>} : vector<9x16x1xi32>
    %c2_i32 = arith.constant 2 : i32
    %28 = vector.broadcast %c2_i32 : i32 to vector<9x16x1xi32>
    %29 = arith.muli %27, %28 : vector<9x16x1xi32>
    %c0_i32 = arith.constant 0 : i32
    %30 = vector.broadcast %c0_i32 : i32 to vector<9x16x1xi32>
    %31 = arith.addi %29, %30 : vector<9x16x1xi32>
    %32 = tpu.iota {dimensions = array<i32: 1>} : vector<9x16x1xi32>
    %c2_i32_16 = arith.constant 2 : i32
    %33 = vector.broadcast %c2_i32_16 : i32 to vector<9x16x1xi32>
    %34 = arith.muli %32, %33 : vector<9x16x1xi32>
    %c0_i32_17 = arith.constant 0 : i32
    %35 = vector.broadcast %c0_i32_17 : i32 to vector<9x16x1xi32>
    %36 = arith.addi %34, %35 : vector<9x16x1xi32>
    %c1_i32 = arith.constant 1 : i32
    %37 = vector.broadcast %c1_i32 : i32 to vector<9x16x1xi32>
    %38 = arith.cmpi sge, %31, %37 : vector<9x16x1xi32>
    %c16_i32 = arith.constant 16 : i32
    %39 = vector.broadcast %c16_i32 : i32 to vector<9x16x1xi32>
    %40 = arith.cmpi sle, %31, %39 : vector<9x16x1xi32>
    %41 = arith.andi %38, %40 : vector<9x16x1xi1>
    %c1_i32_18 = arith.constant 1 : i32
    %42 = vector.broadcast %c1_i32_18 : i32 to vector<9x16x1xi32>
    %43 = arith.cmpi sge, %36, %42 : vector<9x16x1xi32>
    %44 = arith.andi %41, %43 : vector<9x16x1xi1>
    %c16_i32_19 = arith.constant 16 : i32
    %45 = vector.broadcast %c16_i32_19 : i32 to vector<9x16x1xi32>
    %46 = arith.cmpi sle, %36, %45 : vector<9x16x1xi32>
    %47 = arith.andi %44, %46 : vector<9x16x1xi1>
    %cst_20 = arith.constant 0.000000e+00 : f32
    %48 = vector.shape_cast %47 : vector<9x16x1xi1> to vector<9x16x1xi1>
    %49 = vector.broadcast %48 : vector<9x16x1xi1> to vector<9x16x128xi1>
    %50 = vector.broadcast %cst_20 : f32 to vector<9x16x128xf32>
    %51 = arith.select %49, %26, %50 : vector<9x16x128xi1>, vector<9x16x128xf32>
    %52 = vector.extract_strided_slice %2 {offsets = [9, 0, 0], sizes = [9, 16, 16], strides = [1, 1, 1]} : vector<36x16x16xbf16> to vector<9x16x16xbf16>
    %53 = arith.extf %52 : vector<9x16x16xbf16> to vector<9x16x16xf32>
    %54 = vector.shape_cast %0 : vector<1x16xf32> to vector<1x1x16xf32>
    %55 = vector.broadcast %54 : vector<1x1x16xf32> to vector<9x16x16xf32>
    %56 = arith.mulf %53, %55 : vector<9x16x16xf32>
    %57 = vector.shape_cast %56 : vector<9x16x16xf32> to vector<144x16xf32>
    %58 = arith.truncf %57 : vector<144x16xf32> to vector<144x16xbf16>
    %c0_21 = arith.constant 0 : index
    %c0_22 = arith.constant 0 : index
    %59 = vector.load %arg3[%c0_21, %c0_22] : memref<16x128xbf16, #tpu.memory_space<vmem>>, vector<16x128xbf16>
    %cst_23 = arith.constant dense<0.000000e+00> : vector<144x128xf32>
    %60 = tpu.matmul %58, %59, %cst_23 {dimension_numbers = #tpu.dot_dimension_numbers<[1], [0], [0], [1], [0, 0, 1, 1], [], []>} : vector<144x16xbf16>, vector<16x128xbf16>, vector<144x128xf32> -> vector<144x128xf32>
    %c0_24 = arith.constant 0 : index
    %c0_25 = arith.constant 0 : index
    %61 = vector.load %arg4[%c0_24, %c0_25] : memref<1x128xf32, #tpu.memory_space<vmem>>, vector<1x128xf32>
    %62 = vector.broadcast %61 : vector<1x128xf32> to vector<144x128xf32>
    %63 = arith.mulf %60, %62 : vector<144x128xf32>
    %c0_26 = arith.constant 0 : index
    %c0_27 = arith.constant 0 : index
    %64 = vector.load %arg5[%c0_26, %c0_27] : memref<1x128xf32, #tpu.memory_space<vmem>>, vector<1x128xf32>
    %65 = vector.broadcast %64 : vector<1x128xf32> to vector<144x128xf32>
    %66 = arith.addf %63, %65 : vector<144x128xf32>
    %cst_28 = arith.constant 0.000000e+00 : f32
    %67 = vector.broadcast %cst_28 : f32 to vector<144x128xf32>
    %68 = arith.maximumf %66, %67 : vector<144x128xf32>
    %c0_29 = arith.constant 0 : index
    %c0_30 = arith.constant 0 : index
    %69 = vector.load %arg6[%c0_29, %c0_30] : memref<1x128xf32, #tpu.memory_space<vmem>>, vector<1x128xf32>
    %70 = vector.broadcast %69 : vector<1x128xf32> to vector<144x128xf32>
    %71 = arith.mulf %68, %70 : vector<144x128xf32>
    %c0_31 = arith.constant 0 : index
    %c0_32 = arith.constant 0 : index
    %72 = vector.load %arg7[%c0_31, %c0_32] : memref<1x128xf32, #tpu.memory_space<vmem>>, vector<1x128xf32>
    %73 = vector.broadcast %72 : vector<1x128xf32> to vector<144x128xf32>
    %74 = arith.addf %71, %73 : vector<144x128xf32>
    %75 = vector.shape_cast %74 : vector<144x128xf32> to vector<9x16x128xf32>
    %76 = tpu.iota {dimensions = array<i32: 0>} : vector<9x16x1xi32>
    %c2_i32_33 = arith.constant 2 : i32
    %77 = vector.broadcast %c2_i32_33 : i32 to vector<9x16x1xi32>
    %78 = arith.muli %76, %77 : vector<9x16x1xi32>
    %c0_i32_34 = arith.constant 0 : i32
    %79 = vector.broadcast %c0_i32_34 : i32 to vector<9x16x1xi32>
    %80 = arith.addi %78, %79 : vector<9x16x1xi32>
    %81 = tpu.iota {dimensions = array<i32: 1>} : vector<9x16x1xi32>
    %c2_i32_35 = arith.constant 2 : i32
    %82 = vector.broadcast %c2_i32_35 : i32 to vector<9x16x1xi32>
    %83 = arith.muli %81, %82 : vector<9x16x1xi32>
    %c1_i32_36 = arith.constant 1 : i32
    %84 = vector.broadcast %c1_i32_36 : i32 to vector<9x16x1xi32>
    %85 = arith.addi %83, %84 : vector<9x16x1xi32>
    %c1_i32_37 = arith.constant 1 : i32
    %86 = vector.broadcast %c1_i32_37 : i32 to vector<9x16x1xi32>
    %87 = arith.cmpi sge, %80, %86 : vector<9x16x1xi32>
    %c16_i32_38 = arith.constant 16 : i32
    %88 = vector.broadcast %c16_i32_38 : i32 to vector<9x16x1xi32>
    %89 = arith.cmpi sle, %80, %88 : vector<9x16x1xi32>
    %90 = arith.andi %87, %89 : vector<9x16x1xi1>
    %c1_i32_39 = arith.constant 1 : i32
    %91 = vector.broadcast %c1_i32_39 : i32 to vector<9x16x1xi32>
    %92 = arith.cmpi sge, %85, %91 : vector<9x16x1xi32>
    %93 = arith.andi %90, %92 : vector<9x16x1xi1>
    %c16_i32_40 = arith.constant 16 : i32
    %94 = vector.broadcast %c16_i32_40 : i32 to vector<9x16x1xi32>
    %95 = arith.cmpi sle, %85, %94 : vector<9x16x1xi32>
    %96 = arith.andi %93, %95 : vector<9x16x1xi1>
    %cst_41 = arith.constant 0.000000e+00 : f32
    %97 = vector.shape_cast %96 : vector<9x16x1xi1> to vector<9x16x1xi1>
    %98 = vector.broadcast %97 : vector<9x16x1xi1> to vector<9x16x128xi1>
    %99 = vector.broadcast %cst_41 : f32 to vector<9x16x128xf32>
    %100 = arith.select %98, %75, %99 : vector<9x16x128xi1>, vector<9x16x128xf32>
    %101 = vector.extract_strided_slice %2 {offsets = [18, 0, 0], sizes = [9, 16, 16], strides = [1, 1, 1]} : vector<36x16x16xbf16> to vector<9x16x16xbf16>
    %102 = arith.extf %101 : vector<9x16x16xbf16> to vector<9x16x16xf32>
    %103 = vector.shape_cast %0 : vector<1x16xf32> to vector<1x1x16xf32>
    %104 = vector.broadcast %103 : vector<1x1x16xf32> to vector<9x16x16xf32>
    %105 = arith.mulf %102, %104 : vector<9x16x16xf32>
    %106 = vector.shape_cast %105 : vector<9x16x16xf32> to vector<144x16xf32>
    %107 = arith.truncf %106 : vector<144x16xf32> to vector<144x16xbf16>
    %c0_42 = arith.constant 0 : index
    %c0_43 = arith.constant 0 : index
    %108 = vector.load %arg3[%c0_42, %c0_43] : memref<16x128xbf16, #tpu.memory_space<vmem>>, vector<16x128xbf16>
    %cst_44 = arith.constant dense<0.000000e+00> : vector<144x128xf32>
    %109 = tpu.matmul %107, %108, %cst_44 {dimension_numbers = #tpu.dot_dimension_numbers<[1], [0], [0], [1], [0, 0, 1, 1], [], []>} : vector<144x16xbf16>, vector<16x128xbf16>, vector<144x128xf32> -> vector<144x128xf32>
    %c0_45 = arith.constant 0 : index
    %c0_46 = arith.constant 0 : index
    %110 = vector.load %arg4[%c0_45, %c0_46] : memref<1x128xf32, #tpu.memory_space<vmem>>, vector<1x128xf32>
    %111 = vector.broadcast %110 : vector<1x128xf32> to vector<144x128xf32>
    %112 = arith.mulf %109, %111 : vector<144x128xf32>
    %c0_47 = arith.constant 0 : index
    %c0_48 = arith.constant 0 : index
    %113 = vector.load %arg5[%c0_47, %c0_48] : memref<1x128xf32, #tpu.memory_space<vmem>>, vector<1x128xf32>
    %114 = vector.broadcast %113 : vector<1x128xf32> to vector<144x128xf32>
    %115 = arith.addf %112, %114 : vector<144x128xf32>
    %cst_49 = arith.constant 0.000000e+00 : f32
    %116 = vector.broadcast %cst_49 : f32 to vector<144x128xf32>
    %117 = arith.maximumf %115, %116 : vector<144x128xf32>
    %c0_50 = arith.constant 0 : index
    %c0_51 = arith.constant 0 : index
    %118 = vector.load %arg6[%c0_50, %c0_51] : memref<1x128xf32, #tpu.memory_space<vmem>>, vector<1x128xf32>
    %119 = vector.broadcast %118 : vector<1x128xf32> to vector<144x128xf32>
    %120 = arith.mulf %117, %119 : vector<144x128xf32>
    %c0_52 = arith.constant 0 : index
    %c0_53 = arith.constant 0 : index
    %121 = vector.load %arg7[%c0_52, %c0_53] : memref<1x128xf32, #tpu.memory_space<vmem>>, vector<1x128xf32>
    %122 = vector.broadcast %121 : vector<1x128xf32> to vector<144x128xf32>
    %123 = arith.addf %120, %122 : vector<144x128xf32>
    %124 = vector.shape_cast %123 : vector<144x128xf32> to vector<9x16x128xf32>
    %125 = tpu.iota {dimensions = array<i32: 0>} : vector<9x16x1xi32>
    %c2_i32_54 = arith.constant 2 : i32
    %126 = vector.broadcast %c2_i32_54 : i32 to vector<9x16x1xi32>
    %127 = arith.muli %125, %126 : vector<9x16x1xi32>
    %c1_i32_55 = arith.constant 1 : i32
    %128 = vector.broadcast %c1_i32_55 : i32 to vector<9x16x1xi32>
    %129 = arith.addi %127, %128 : vector<9x16x1xi32>
    %130 = tpu.iota {dimensions = array<i32: 1>} : vector<9x16x1xi32>
    %c2_i32_56 = arith.constant 2 : i32
    %131 = vector.broadcast %c2_i32_56 : i32 to vector<9x16x1xi32>
    %132 = arith.muli %130, %131 : vector<9x16x1xi32>
    %c0_i32_57 = arith.constant 0 : i32
    %133 = vector.broadcast %c0_i32_57 : i32 to vector<9x16x1xi32>
    %134 = arith.addi %132, %133 : vector<9x16x1xi32>
    %c1_i32_58 = arith.constant 1 : i32
    %135 = vector.broadcast %c1_i32_58 : i32 to vector<9x16x1xi32>
    %136 = arith.cmpi sge, %129, %135 : vector<9x16x1xi32>
    %c16_i32_59 = arith.constant 16 : i32
    %137 = vector.broadcast %c16_i32_59 : i32 to vector<9x16x1xi32>
    %138 = arith.cmpi sle, %129, %137 : vector<9x16x1xi32>
    %139 = arith.andi %136, %138 : vector<9x16x1xi1>
    %c1_i32_60 = arith.constant 1 : i32
    %140 = vector.broadcast %c1_i32_60 : i32 to vector<9x16x1xi32>
    %141 = arith.cmpi sge, %134, %140 : vector<9x16x1xi32>
    %142 = arith.andi %139, %141 : vector<9x16x1xi1>
    %c16_i32_61 = arith.constant 16 : i32
    %143 = vector.broadcast %c16_i32_61 : i32 to vector<9x16x1xi32>
    %144 = arith.cmpi sle, %134, %143 : vector<9x16x1xi32>
    %145 = arith.andi %142, %144 : vector<9x16x1xi1>
    %cst_62 = arith.constant 0.000000e+00 : f32
    %146 = vector.shape_cast %145 : vector<9x16x1xi1> to vector<9x16x1xi1>
    %147 = vector.broadcast %146 : vector<9x16x1xi1> to vector<9x16x128xi1>
    %148 = vector.broadcast %cst_62 : f32 to vector<9x16x128xf32>
    %149 = arith.select %147, %124, %148 : vector<9x16x128xi1>, vector<9x16x128xf32>
    %150 = vector.extract_strided_slice %2 {offsets = [27, 0, 0], sizes = [9, 16, 16], strides = [1, 1, 1]} : vector<36x16x16xbf16> to vector<9x16x16xbf16>
    %151 = arith.extf %150 : vector<9x16x16xbf16> to vector<9x16x16xf32>
    %152 = vector.shape_cast %0 : vector<1x16xf32> to vector<1x1x16xf32>
    %153 = vector.broadcast %152 : vector<1x1x16xf32> to vector<9x16x16xf32>
    %154 = arith.mulf %151, %153 : vector<9x16x16xf32>
    %155 = vector.shape_cast %154 : vector<9x16x16xf32> to vector<144x16xf32>
    %156 = arith.truncf %155 : vector<144x16xf32> to vector<144x16xbf16>
    %c0_63 = arith.constant 0 : index
    %c0_64 = arith.constant 0 : index
    %157 = vector.load %arg3[%c0_63, %c0_64] : memref<16x128xbf16, #tpu.memory_space<vmem>>, vector<16x128xbf16>
    %cst_65 = arith.constant dense<0.000000e+00> : vector<144x128xf32>
    %158 = tpu.matmul %156, %157, %cst_65 {dimension_numbers = #tpu.dot_dimension_numbers<[1], [0], [0], [1], [0, 0, 1, 1], [], []>} : vector<144x16xbf16>, vector<16x128xbf16>, vector<144x128xf32> -> vector<144x128xf32>
    %c0_66 = arith.constant 0 : index
    %c0_67 = arith.constant 0 : index
    %159 = vector.load %arg4[%c0_66, %c0_67] : memref<1x128xf32, #tpu.memory_space<vmem>>, vector<1x128xf32>
    %160 = vector.broadcast %159 : vector<1x128xf32> to vector<144x128xf32>
    %161 = arith.mulf %158, %160 : vector<144x128xf32>
    %c0_68 = arith.constant 0 : index
    %c0_69 = arith.constant 0 : index
    %162 = vector.load %arg5[%c0_68, %c0_69] : memref<1x128xf32, #tpu.memory_space<vmem>>, vector<1x128xf32>
    %163 = vector.broadcast %162 : vector<1x128xf32> to vector<144x128xf32>
    %164 = arith.addf %161, %163 : vector<144x128xf32>
    %cst_70 = arith.constant 0.000000e+00 : f32
    %165 = vector.broadcast %cst_70 : f32 to vector<144x128xf32>
    %166 = arith.maximumf %164, %165 : vector<144x128xf32>
    %c0_71 = arith.constant 0 : index
    %c0_72 = arith.constant 0 : index
    %167 = vector.load %arg6[%c0_71, %c0_72] : memref<1x128xf32, #tpu.memory_space<vmem>>, vector<1x128xf32>
    %168 = vector.broadcast %167 : vector<1x128xf32> to vector<144x128xf32>
    %169 = arith.mulf %166, %168 : vector<144x128xf32>
    %c0_73 = arith.constant 0 : index
    %c0_74 = arith.constant 0 : index
    %170 = vector.load %arg7[%c0_73, %c0_74] : memref<1x128xf32, #tpu.memory_space<vmem>>, vector<1x128xf32>
    %171 = vector.broadcast %170 : vector<1x128xf32> to vector<144x128xf32>
    %172 = arith.addf %169, %171 : vector<144x128xf32>
    %173 = vector.shape_cast %172 : vector<144x128xf32> to vector<9x16x128xf32>
    %174 = tpu.iota {dimensions = array<i32: 0>} : vector<9x16x1xi32>
    %c2_i32_75 = arith.constant 2 : i32
    %175 = vector.broadcast %c2_i32_75 : i32 to vector<9x16x1xi32>
    %176 = arith.muli %174, %175 : vector<9x16x1xi32>
    %c1_i32_76 = arith.constant 1 : i32
    %177 = vector.broadcast %c1_i32_76 : i32 to vector<9x16x1xi32>
    %178 = arith.addi %176, %177 : vector<9x16x1xi32>
    %179 = tpu.iota {dimensions = array<i32: 1>} : vector<9x16x1xi32>
    %c2_i32_77 = arith.constant 2 : i32
    %180 = vector.broadcast %c2_i32_77 : i32 to vector<9x16x1xi32>
    %181 = arith.muli %179, %180 : vector<9x16x1xi32>
    %c1_i32_78 = arith.constant 1 : i32
    %182 = vector.broadcast %c1_i32_78 : i32 to vector<9x16x1xi32>
    %183 = arith.addi %181, %182 : vector<9x16x1xi32>
    %c1_i32_79 = arith.constant 1 : i32
    %184 = vector.broadcast %c1_i32_79 : i32 to vector<9x16x1xi32>
    %185 = arith.cmpi sge, %178, %184 : vector<9x16x1xi32>
    %c16_i32_80 = arith.constant 16 : i32
    %186 = vector.broadcast %c16_i32_80 : i32 to vector<9x16x1xi32>
    %187 = arith.cmpi sle, %178, %186 : vector<9x16x1xi32>
    %188 = arith.andi %185, %187 : vector<9x16x1xi1>
    %c1_i32_81 = arith.constant 1 : i32
    %189 = vector.broadcast %c1_i32_81 : i32 to vector<9x16x1xi32>
    %190 = arith.cmpi sge, %183, %189 : vector<9x16x1xi32>
    %191 = arith.andi %188, %190 : vector<9x16x1xi1>
    %c16_i32_82 = arith.constant 16 : i32
    %192 = vector.broadcast %c16_i32_82 : i32 to vector<9x16x1xi32>
    %193 = arith.cmpi sle, %183, %192 : vector<9x16x1xi32>
    %194 = arith.andi %191, %193 : vector<9x16x1xi1>
    %cst_83 = arith.constant 0.000000e+00 : f32
    %195 = vector.shape_cast %194 : vector<9x16x1xi1> to vector<9x16x1xi1>
    %196 = vector.broadcast %195 : vector<9x16x1xi1> to vector<9x16x128xi1>
    %197 = vector.broadcast %cst_83 : f32 to vector<9x16x128xf32>
    %198 = arith.select %196, %173, %197 : vector<9x16x128xi1>, vector<9x16x128xf32>
    %199 = vector.extract_strided_slice %51 {offsets = [0, 0, 0], sizes = [8, 8, 128], strides = [1, 1, 1]} : vector<9x16x128xf32> to vector<8x8x128xf32>
    %200 = vector.shape_cast %199 : vector<8x8x128xf32> to vector<64x128xf32>
    %201 = vector.extract_strided_slice %100 {offsets = [0, 0, 0], sizes = [8, 8, 128], strides = [1, 1, 1]} : vector<9x16x128xf32> to vector<8x8x128xf32>
    %202 = vector.shape_cast %201 : vector<8x8x128xf32> to vector<64x128xf32>
    %203 = vector.extract_strided_slice %51 {offsets = [0, 1, 0], sizes = [8, 8, 128], strides = [1, 1, 1]} : vector<9x16x128xf32> to vector<8x8x128xf32>
    %204 = vector.shape_cast %203 : vector<8x8x128xf32> to vector<64x128xf32>
    %205 = vector.extract_strided_slice %149 {offsets = [0, 0, 0], sizes = [8, 8, 128], strides = [1, 1, 1]} : vector<9x16x128xf32> to vector<8x8x128xf32>
    %206 = vector.shape_cast %205 : vector<8x8x128xf32> to vector<64x128xf32>
    %207 = vector.extract_strided_slice %198 {offsets = [0, 0, 0], sizes = [8, 8, 128], strides = [1, 1, 1]} : vector<9x16x128xf32> to vector<8x8x128xf32>
    %208 = vector.shape_cast %207 : vector<8x8x128xf32> to vector<64x128xf32>
    %209 = vector.extract_strided_slice %149 {offsets = [0, 1, 0], sizes = [8, 8, 128], strides = [1, 1, 1]} : vector<9x16x128xf32> to vector<8x8x128xf32>
    %210 = vector.shape_cast %209 : vector<8x8x128xf32> to vector<64x128xf32>
    %211 = vector.extract_strided_slice %51 {offsets = [1, 0, 0], sizes = [8, 8, 128], strides = [1, 1, 1]} : vector<9x16x128xf32> to vector<8x8x128xf32>
    %212 = vector.shape_cast %211 : vector<8x8x128xf32> to vector<64x128xf32>
    %213 = vector.extract_strided_slice %100 {offsets = [1, 0, 0], sizes = [8, 8, 128], strides = [1, 1, 1]} : vector<9x16x128xf32> to vector<8x8x128xf32>
    %214 = vector.shape_cast %213 : vector<8x8x128xf32> to vector<64x128xf32>
    %215 = vector.extract_strided_slice %51 {offsets = [1, 1, 0], sizes = [8, 8, 128], strides = [1, 1, 1]} : vector<9x16x128xf32> to vector<8x8x128xf32>
    %216 = vector.shape_cast %215 : vector<8x8x128xf32> to vector<64x128xf32>
    %217 = tpu.concatenate %200, %202, %204, %206, %208, %210, %212, %214, %216 in 1 : vector<64x128xf32>, vector<64x128xf32>, vector<64x128xf32>, vector<64x128xf32>, vector<64x128xf32>, vector<64x128xf32>, vector<64x128xf32>, vector<64x128xf32>, vector<64x128xf32> -> vector<64x1152xf32>
    %218 = arith.truncf %217 : vector<64x1152xf32> to vector<64x1152xbf16>
    %c0_84 = arith.constant 0 : index
    %c0_85 = arith.constant 0 : index
    %219 = vector.load %arg8[%c0_84, %c0_85] : memref<1152x128xbf16, #tpu.memory_space<vmem>>, vector<1152x128xbf16>
    %cst_86 = arith.constant dense<0.000000e+00> : vector<64x128xf32>
    %220 = tpu.matmul %218, %219, %cst_86 {dimension_numbers = #tpu.dot_dimension_numbers<[1], [0], [0], [1], [0, 0, 1, 1], [], []>} : vector<64x1152xbf16>, vector<1152x128xbf16>, vector<64x128xf32> -> vector<64x128xf32>
    %cst_87 = arith.constant 0.000000e+00 : f32
    %221 = vector.broadcast %cst_87 : f32 to vector<64x128xf32>
    %222 = arith.maximumf %220, %221 : vector<64x128xf32>
    %c0_88 = arith.constant 0 : index
    %c0_89 = arith.constant 0 : index
    %223 = vector.load %arg9[%c0_88, %c0_89] : memref<1x128xf32, #tpu.memory_space<vmem>>, vector<1x128xf32>
    %224 = vector.broadcast %223 : vector<1x128xf32> to vector<64x128xf32>
    %225 = arith.mulf %222, %224 : vector<64x128xf32>
    %c0_90 = arith.constant 0 : index
    %c0_91 = arith.constant 0 : index
    %226 = vector.load %arg10[%c0_90, %c0_91] : memref<1x128xf32, #tpu.memory_space<vmem>>, vector<1x128xf32>
    %227 = vector.broadcast %226 : vector<1x128xf32> to vector<64x128xf32>
    %228 = arith.addf %225, %227 : vector<64x128xf32>
    %229 = arith.truncf %228 : vector<64x128xf32> to vector<64x128xbf16>
    %c0_92 = arith.constant 0 : index
    %c0_93 = arith.constant 0 : index
    %230 = vector.load %arg11[%c0_92, %c0_93] : memref<128x128xbf16, #tpu.memory_space<vmem>>, vector<128x128xbf16>
    %cst_94 = arith.constant dense<0.000000e+00> : vector<64x128xf32>
    %231 = tpu.matmul %229, %230, %cst_94 {dimension_numbers = #tpu.dot_dimension_numbers<[1], [0], [0], [1], [0, 0, 1, 1], [], []>} : vector<64x128xbf16>, vector<128x128xbf16>, vector<64x128xf32> -> vector<64x128xf32>
    %c0_95 = arith.constant 0 : index
    %c0_96 = arith.constant 0 : index
    %232 = vector.load %arg12[%c0_95, %c0_96] : memref<1x128xf32, #tpu.memory_space<vmem>>, vector<1x128xf32>
    %233 = vector.broadcast %232 : vector<1x128xf32> to vector<64x128xf32>
    %234 = arith.mulf %231, %233 : vector<64x128xf32>
    %235 = vector.extract_strided_slice %2 {offsets = [27, 0, 0], sizes = [8, 8, 16], strides = [1, 1, 1]} : vector<36x16x16xbf16> to vector<8x8x16xbf16>
    %236 = arith.extf %235 : vector<8x8x16xbf16> to vector<8x8x16xf32>
    %237 = vector.shape_cast %0 : vector<1x16xf32> to vector<1x1x16xf32>
    %238 = vector.broadcast %237 : vector<1x1x16xf32> to vector<8x8x16xf32>
    %239 = arith.mulf %236, %238 : vector<8x8x16xf32>
    %240 = vector.shape_cast %239 : vector<8x8x16xf32> to vector<64x16xf32>
    %241 = arith.truncf %240 : vector<64x16xf32> to vector<64x16xbf16>
    %c0_97 = arith.constant 0 : index
    %c0_98 = arith.constant 0 : index
    %242 = vector.load %arg13[%c0_97, %c0_98] : memref<16x128xbf16, #tpu.memory_space<vmem>>, vector<16x128xbf16>
    %cst_99 = arith.constant dense<0.000000e+00> : vector<64x128xf32>
    %243 = tpu.matmul %241, %242, %cst_99 {dimension_numbers = #tpu.dot_dimension_numbers<[1], [0], [0], [1], [0, 0, 1, 1], [], []>} : vector<64x16xbf16>, vector<16x128xbf16>, vector<64x128xf32> -> vector<64x128xf32>
    %c0_100 = arith.constant 0 : index
    %c0_101 = arith.constant 0 : index
    %244 = vector.load %arg14[%c0_100, %c0_101] : memref<1x128xf32, #tpu.memory_space<vmem>>, vector<1x128xf32>
    %245 = vector.broadcast %244 : vector<1x128xf32> to vector<64x128xf32>
    %246 = arith.mulf %243, %245 : vector<64x128xf32>
    %c0_102 = arith.constant 0 : index
    %c0_103 = arith.constant 0 : index
    %247 = vector.load %arg15[%c0_102, %c0_103] : memref<1x128xf32, #tpu.memory_space<vmem>>, vector<1x128xf32>
    %248 = vector.broadcast %247 : vector<1x128xf32> to vector<64x128xf32>
    %249 = arith.addf %246, %248 : vector<64x128xf32>
    %250 = arith.addf %234, %249 : vector<64x128xf32>
    %cst_104 = arith.constant 0.000000e+00 : f32
    %251 = vector.broadcast %cst_104 : f32 to vector<64x128xf32>
    %252 = arith.maximumf %250, %251 : vector<64x128xf32>
    %c0_105 = arith.constant 0 : index
    %c0_106 = arith.constant 0 : index
    %c0_107 = arith.constant 0 : index
    %253 = vector.load %arg16[%c0_105, %c0_106, %c0_107] : memref<1x64x128xf32, #tpu.memory_space<vmem>>, vector<1x64x128xf32>
    %254 = vector.shape_cast %253 : vector<1x64x128xf32> to vector<64x128xf32>
    %255 = vector.shape_cast %252 : vector<64x128xf32> to vector<1x64x128xf32>
    tpu.vector_store %arg16[%c0_105, %c0_106, %c0_107], %255 {strides = array<i32>} : memref<1x64x128xf32, #tpu.memory_space<vmem>>, vector<1x64x128xf32>,
    return
  }
  func.func @transform_0(%arg0: i32) -> (i32, i32, i32, i32) {
    %c0_i32 = arith.constant 0 : i32
    %c0_i32_0 = arith.constant 0 : i32
    %c0_i32_1 = arith.constant 0 : i32
    %c0_i32_2 = arith.constant 0 : i32
    return %arg0, %c0_i32, %c0_i32_0, %c0_i32_1 : i32, i32, i32, i32
  }
  func.func @transform_1(%arg0: i32) -> (i32, i32) {
    %c0_i32 = arith.constant 0 : i32
    %c0_i32_0 = arith.constant 0 : i32
    %c0_i32_1 = arith.constant 0 : i32
    return %c0_i32, %c0_i32_0 : i32, i32
  }
  func.func @transform_2(%arg0: i32) -> (i32, i32) {
    %c0_i32 = arith.constant 0 : i32
    %c0_i32_0 = arith.constant 0 : i32
    %c0_i32_1 = arith.constant 0 : i32
    return %c0_i32, %c0_i32_0 : i32, i32
  }
  func.func @transform_3(%arg0: i32) -> (i32, i32) {
    %c0_i32 = arith.constant 0 : i32
    %c0_i32_0 = arith.constant 0 : i32
    %c0_i32_1 = arith.constant 0 : i32
    return %c0_i32, %c0_i32_0 : i32, i32
  }
  func.func @transform_4(%arg0: i32) -> (i32, i32) {
    %c0_i32 = arith.constant 0 : i32
    %c0_i32_0 = arith.constant 0 : i32
    %c0_i32_1 = arith.constant 0 : i32
    return %c0_i32, %c0_i32_0 : i32, i32
  }
  func.func @transform_5(%arg0: i32) -> (i32, i32) {
    %c0_i32 = arith.constant 0 : i32
    %c0_i32_0 = arith.constant 0 : i32
    %c0_i32_1 = arith.constant 0 : i32
    return %c0_i32, %c0_i32_0 : i32, i32
  }
  func.func @transform_6(%arg0: i32) -> (i32, i32) {
    %c0_i32 = arith.constant 0 : i32
    %c0_i32_0 = arith.constant 0 : i32
    %c0_i32_1 = arith.constant 0 : i32
    return %c0_i32, %c0_i32_0 : i32, i32
  }
  func.func @transform_7(%arg0: i32) -> (i32, i32) {
    %c0_i32 = arith.constant 0 : i32
    %c0_i32_0 = arith.constant 0 : i32
    %c0_i32_1 = arith.constant 0 : i32
    return %c0_i32, %c0_i32_0 : i32, i32
  }
  func.func @transform_8(%arg0: i32) -> (i32, i32) {
    %c0_i32 = arith.constant 0 : i32
    %c0_i32_0 = arith.constant 0 : i32
    %c0_i32_1 = arith.constant 0 : i32
    return %c0_i32, %c0_i32_0 : i32, i32
  }
  func.func @transform_9(%arg0: i32) -> (i32, i32) {
    %c0_i32 = arith.constant 0 : i32
    %c0_i32_0 = arith.constant 0 : i32
    %c0_i32_1 = arith.constant 0 : i32
    return %c0_i32, %c0_i32_0 : i32, i32
  }
  func.func @transform_10(%arg0: i32) -> (i32, i32) {
    %c0_i32 = arith.constant 0 : i32
    %c0_i32_0 = arith.constant 0 : i32
    %c0_i32_1 = arith.constant 0 : i32
    return %c0_i32, %c0_i32_0 : i32, i32
  }
  func.func @transform_11(%arg0: i32) -> (i32, i32) {
    %c0_i32 = arith.constant 0 : i32
    %c0_i32_0 = arith.constant 0 : i32
    %c0_i32_1 = arith.constant 0 : i32
    return %c0_i32, %c0_i32_0 : i32, i32
  }
  func.func @transform_12(%arg0: i32) -> (i32, i32) {
    %c0_i32 = arith.constant 0 : i32
    %c0_i32_0 = arith.constant 0 : i32
    %c0_i32_1 = arith.constant 0 : i32
    return %c0_i32, %c0_i32_0 : i32, i32
  }
  func.func @transform_13(%arg0: i32) -> (i32, i32) {
    %c0_i32 = arith.constant 0 : i32
    %c0_i32_0 = arith.constant 0 : i32
    %c0_i32_1 = arith.constant 0 : i32
    return %c0_i32, %c0_i32_0 : i32, i32
  }
  func.func @transform_14(%arg0: i32) -> (i32, i32) {
    %c0_i32 = arith.constant 0 : i32
    %c0_i32_0 = arith.constant 0 : i32
    %c0_i32_1 = arith.constant 0 : i32
    return %c0_i32, %c0_i32_0 : i32, i32
  }
  func.func @transform_15(%arg0: i32) -> (i32, i32, i32) {
    %c0_i32 = arith.constant 0 : i32
    %c0_i32_0 = arith.constant 0 : i32
    %c0_i32_1 = arith.constant 0 : i32
    return %arg0, %c0_i32, %c0_i32_0 : i32, i32, i32
  }
}

</mosaic_0001>

<llo_original>
// kernel: bottleneck_forward.1
$region0: #{bottleneck_forward.1}
  #allocation0 [shape = 'u32[]', space=smem, size = 0x4, offset = 0x4, fixed_abs, tag = 'smem constant byte address 0x4 - core index']
  #allocation1 [shape = 'u32[144,128]{1,0:T(1,128)}', space=vmem, size = 0x12000, scoped, tag = 'internal scratch']
  %s0 = inlined_call_operand.vmem [shape: bf16[2,36,16,16], index: 0, kind: input, shape index: {}]
  %s1 = inlined_call_operand.vmem [shape: f32[1,16], index: 1, kind: input, shape index: {}]
  %s2 = inlined_call_operand.vmem [shape: bf16[16,128], index: 2, kind: input, shape index: {}]
  %s3 = inlined_call_operand.vmem [shape: f32[1,128], index: 3, kind: input, shape index: {}]
  %s4 = inlined_call_operand.vmem [shape: f32[1,128], index: 4, kind: input, shape index: {}]
  %s5 = inlined_call_operand.vmem [shape: f32[1,128], index: 5, kind: input, shape index: {}]
  %s6 = inlined_call_operand.vmem [shape: f32[1,128], index: 6, kind: input, shape index: {}]
  %s7 = inlined_call_operand.vmem [shape: bf16[1152,128], index: 7, kind: input, shape index: {}]
  %s8 = inlined_call_operand.vmem [shape: f32[1,128], index: 8, kind: input, shape index: {}]
  %s9 = inlined_call_operand.vmem [shape: f32[1,128], index: 9, kind: input, shape index: {}]
  %s10 = inlined_call_operand.vmem [shape: bf16[128,128], index: 10, kind: input, shape index: {}]
  %s11 = inlined_call_operand.vmem [shape: f32[1,128], index: 11, kind: input, shape index: {}]
  %s12 = inlined_call_operand.vmem [shape: bf16[16,128], index: 12, kind: input, shape index: {}]
  %s13 = inlined_call_operand.vmem [shape: f32[1,128], index: 13, kind: input, shape index: {}]
  %s14 = inlined_call_operand.vmem [shape: f32[1,128], index: 14, kind: input, shape index: {}]
  %s15 = inlined_call_operand.vmem [shape: f32[2,64,128], index: 15, kind: output, shape index: {}]
  %s16 = sld [smem:[#allocation0]]
  $region93: #{bottleneck_forward.1} parent=0
    _
  %s18 = ssub.s32 1, %s16
  %s19 = scalar_select 0, %s18, %s16
  loop: start=0, step=1, limit=4
  $region2: #{bottleneck_forward.1} parent=0 // loop_pre_header
    _
  $region3: #{bottleneck_forward.1} parent=0 // loop_header
    %s21 = sphi 0, %s25
    %p22 = scmp.ge.s32.totalorder %s21, 4
    %s31 = sphi 0, %s33
    %s34 = sphi 0, %s31
    %s35 = sphi 0, %s34
    %s51 = sphi 0, %s35
    %s55 = sphi 0, %s55
    %s57 = sphi 0, %s55
    %s58 = sphi 0, %s57
    %s72 = sphi 0, %s58
    %s76 = sphi 0, %s76
    %s78 = sphi 0, %s76
    %s79 = sphi 0, %s78
    %s93 = sphi 0, %s79
    %s97 = sphi 0, %s97
    %s99 = sphi 0, %s97
    %s100 = sphi 0, %s99
    %s114 = sphi 0, %s100
    %s118 = sphi 0, %s118
    %s120 = sphi 0, %s118
    %s121 = sphi 0, %s120
    %s135 = sphi 0, %s121
    %s139 = sphi 0, %s139
    %s141 = sphi 0, %s139
    %s142 = sphi 0, %s141
    %s156 = sphi 0, %s142
    %s160 = sphi 0, %s160
    %s162 = sphi 0, %s160
    %s163 = sphi 0, %s162
    %s177 = sphi 0, %s163
    %s181 = sphi 0, %s181
    %s183 = sphi 0, %s181
    %s184 = sphi 0, %s183
    %s198 = sphi 0, %s184
    %s202 = sphi 0, %s202
    %s204 = sphi 0, %s202
    %s205 = sphi 0, %s204
    %s219 = sphi 0, %s205
    %s223 = sphi 0, %s223
    %s225 = sphi 0, %s223
    %s226 = sphi 0, %s225
    %s240 = sphi 0, %s226
    %s244 = sphi 0, %s244
    %s246 = sphi 0, %s244
    %s247 = sphi 0, %s246
    %s261 = sphi 0, %s247
    %s265 = sphi 0, %s265
    %s267 = sphi 0, %s265
    %s268 = sphi 0, %s267
    %s282 = sphi 0, %s268
    %s286 = sphi 0, %s286
    %s288 = sphi 0, %s286
    %s289 = sphi 0, %s288
    %s303 = sphi 0, %s289
    %s307 = sphi 0, %s307
    %s309 = sphi 0, %s307
    %s310 = sphi 0, %s309
    %s324 = sphi 0, %s310
    %s328 = sphi 0, %s328
    %s330 = sphi 0, %s328
    %s331 = sphi 0, %s330
    %s345 = sphi 0, %s331
    %s351 = sphi 0, %s353
    %s354 = sphi 0, %s351
    %s355 = sphi 0, %s354
    %s371 = sphi 0, %s355
  $region4: #{bottleneck_forward.1} parent=0 // loop_header_branch
    %24 = sbr.rel (%p22) target = $region8
  $region5: #{bottleneck_forward.1} parent=0 // loop_body
    %s26 = ssub.s32 %s21, 1
    %s27 = ssub.s32 %s21, 2
    %s28 = sadd.s32 %s21, 1
    %s29 = ssub.s32 %s21, %s28
    %p30 = scmp.eq.s32.totalorder %s29, 0
    %s32 = sadd.s32 %s31, 1
    %s33 = scalar_select %p30, %s31, %s32
    %p36 = pneg %p30
    %p37 = scmp.eq.s32.totalorder %s21, 1
    %p38 = por %p36, %p37
    %p39 = scmp.ne.s32.totalorder %s31, %s34
    %p40 = scmp.eq.s32.totalorder %s21, 0
    %p41 = por %p39, %p40
    %p42 = scmp.ne.s32.totalorder %s31, %s34
    %p43 = scmp.eq.s32.totalorder %s26, 1
    %p44 = por %p42, %p43
    %p45 = scmp.ne.s32.totalorder %s34, %s35
    %p46 = scmp.eq.s32.totalorder %s26, 0
    %p47 = por %p45, %p46
    %p48 = scmp.ne.s32.totalorder %s34, %s35
    %p49 = scmp.eq.s32.totalorder %s27, 1
    %p50 = por %p48, %p49
    %p52 = scmp.ne.s32.totalorder %s35, %s51
    %p53 = scmp.eq.s32.totalorder %s27, 0
    %p54 = por %p52, %p53
    %s56 = sadd.s32 %s55, 1
    %p59 = scmp.eq.s32.totalorder %s21, 1
    %p60 = scmp.ne.s32.totalorder %s55, %s57
    %p61 = scmp.eq.s32.totalorder %s21, 0
    %p62 = por %p60, %p61
    %p63 = scmp.ne.s32.totalorder %s55, %s57
    %p64 = scmp.eq.s32.totalorder %s26, 1
    %p65 = por %p63, %p64
    %p66 = scmp.ne.s32.totalorder %s57, %s58
    %p67 = scmp.eq.s32.totalorder %s26, 0
    %p68 = por %p66, %p67
    %p69 = scmp.ne.s32.totalorder %s57, %s58
    %p70 = scmp.eq.s32.totalorder %s27, 1
    %p71 = por %p69, %p70
    %p73 = scmp.ne.s32.totalorder %s58, %s72
    %p74 = scmp.eq.s32.totalorder %s27, 0
    %p75 = por %p73, %p74
    %s77 = sadd.s32 %s76, 1
    %p80 = scmp.eq.s32.totalorder %s21, 1
    %p81 = scmp.ne.s32.totalorder %s76, %s78
    %p82 = scmp.eq.s32.totalorder %s21, 0
    %p83 = por %p81, %p82
    %p84 = scmp.ne.s32.totalorder %s76, %s78
    %p85 = scmp.eq.s32.totalorder %s26, 1
    %p86 = por %p84, %p85
    %p87 = scmp.ne.s32.totalorder %s78, %s79
    %p88 = scmp.eq.s32.totalorder %s26, 0
    %p89 = por %p87, %p88
    %p90 = scmp.ne.s32.totalorder %s78, %s79
    %p91 = scmp.eq.s32.totalorder %s27, 1
    %p92 = por %p90, %p91
    %p94 = scmp.ne.s32.totalorder %s79, %s93
    %p95 = scmp.eq.s32.totalorder %s27, 0
    %p96 = por %p94, %p95
    %s98 = sadd.s32 %s97, 1
    %p101 = scmp.eq.s32.totalorder %s21, 1
    %p102 = scmp.ne.s32.totalorder %s97, %s99
    %p103 = scmp.eq.s32.totalorder %s21, 0
    %p104 = por %p102, %p103
    %p105 = scmp.ne.s32.totalorder %s97, %s99
    %p106 = scmp.eq.s32.totalorder %s26, 1
    %p107 = por %p105, %p106
    %p108 = scmp.ne.s32.totalorder %s99, %s100
    %p109 = scmp.eq.s32.totalorder %s26, 0
    %p110 = por %p108, %p109
    %p111 = scmp.ne.s32.totalorder %s99, %s100
    %p112 = scmp.eq.s32.totalorder %s27, 1
    %p113 = por %p111, %p112
    %p115 = scmp.ne.s32.totalorder %s100, %s114
    %p116 = scmp.eq.s32.totalorder %s27, 0
    %p117 = por %p115, %p116
    %s119 = sadd.s32 %s118, 1
    %p122 = scmp.eq.s32.totalorder %s21, 1
    %p123 = scmp.ne.s32.totalorder %s118, %s120
    %p124 = scmp.eq.s32.totalorder %s21, 0
    %p125 = por %p123, %p124
    %p126 = scmp.ne.s32.totalorder %s118, %s120
    %p127 = scmp.eq.s32.totalorder %s26, 1
    %p128 = por %p126, %p127
    %p129 = scmp.ne.s32.totalorder %s120, %s121
    %p130 = scmp.eq.s32.totalorder %s26, 0
    %p131 = por %p129, %p130
    %p132 = scmp.ne.s32.totalorder %s120, %s121
    %p133 = scmp.eq.s32.totalorder %s27, 1
    %p134 = por %p132, %p133
    %p136 = scmp.ne.s32.totalorder %s121, %s135
    %p137 = scmp.eq.s32.totalorder %s27, 0
    %p138 = por %p136, %p137
    %s140 = sadd.s32 %s139, 1
    %p143 = scmp.eq.s32.totalorder %s21, 1
    %p144 = scmp.ne.s32.totalorder %s139, %s141
    %p145 = scmp.eq.s32.totalorder %s21, 0
    %p146 = por %p144, %p145
    %p147 = scmp.ne.s32.totalorder %s139, %s141
    %p148 = scmp.eq.s32.totalorder %s26, 1
    %p149 = por %p147, %p148
    %p150 = scmp.ne.s32.totalorder %s141, %s142
    %p151 = scmp.eq.s32.totalorder %s26, 0
    %p152 = por %p150, %p151
    %p153 = scmp.ne.s32.totalorder %s141, %s142
    %p154 = scmp.eq.s32.totalorder %s27, 1
    %p155 = por %p153, %p154
    %p157 = scmp.ne.s32.totalorder %s142, %s156
    %p158 = scmp.eq.s32.totalorder %s27, 0
    %p159 = por %p157, %p158
    %s161 = sadd.s32 %s160, 1
    %p164 = scmp.eq.s32.totalorder %s21, 1
    %p165 = scmp.ne.s32.totalorder %s160, %s162
    %p166 = scmp.eq.s32.totalorder %s21, 0
    %p167 = por %p165, %p166
    %p168 = scmp.ne.s32.totalorder %s160, %s162
    %p169 = scmp.eq.s32.totalorder %s26, 1
    %p170 = por %p168, %p169
    %p171 = scmp.ne.s32.totalorder %s162, %s163
    %p172 = scmp.eq.s32.totalorder %s26, 0
    %p173 = por %p171, %p172
    %p174 = scmp.ne.s32.totalorder %s162, %s163
    %p175 = scmp.eq.s32.totalorder %s27, 1
    %p176 = por %p174, %p175
    %p178 = scmp.ne.s32.totalorder %s163, %s177
    %p179 = scmp.eq.s32.totalorder %s27, 0
    %p180 = por %p178, %p179
    %s182 = sadd.s32 %s181, 1
    %p185 = scmp.eq.s32.totalorder %s21, 1
    %p186 = scmp.ne.s32.totalorder %s181, %s183
    %p187 = scmp.eq.s32.totalorder %s21, 0
    %p188 = por %p186, %p187
    %p189 = scmp.ne.s32.totalorder %s181, %s183
    %p190 = scmp.eq.s32.totalorder %s26, 1
    %p191 = por %p189, %p190
    %p192 = scmp.ne.s32.totalorder %s183, %s184
    %p193 = scmp.eq.s32.totalorder %s26, 0
    %p194 = por %p192, %p193
    %p195 = scmp.ne.s32.totalorder %s183, %s184
    %p196 = scmp.eq.s32.totalorder %s27, 1
    %p197 = por %p195, %p196
    %p199 = scmp.ne.s32.totalorder %s184, %s198
    %p200 = scmp.eq.s32.totalorder %s27, 0
    %p201 = por %p199, %p200
    %s203 = sadd.s32 %s202, 1
    %p206 = scmp.eq.s32.totalorder %s21, 1
    %p207 = scmp.ne.s32.totalorder %s202, %s204
    %p208 = scmp.eq.s32.totalorder %s21, 0
    %p209 = por %p207, %p208
    %p210 = scmp.ne.s32.totalorder %s202, %s204
    %p211 = scmp.eq.s32.totalorder %s26, 1
    %p212 = por %p210, %p211
    %p213 = scmp.ne.s32.totalorder %s204, %s205
    %p214 = scmp.eq.s32.totalorder %s26, 0
    %p215 = por %p213, %p214
    %p216 = scmp.ne.s32.totalorder %s204, %s205
    %p217 = scmp.eq.s32.totalorder %s27, 1
    %p218 = por %p216, %p217
    %p220 = scmp.ne.s32.totalorder %s205, %s219
    %p221 = scmp.eq.s32.totalorder %s27, 0
    %p222 = por %p220, %p221
    %s224 = sadd.s32 %s223, 1
    %p227 = scmp.eq.s32.totalorder %s21, 1
    %p228 = scmp.ne.s32.totalorder %s223, %s225
    %p229 = scmp.eq.s32.totalorder %s21, 0
    %p230 = por %p228, %p229
    %p231 = scmp.ne.s32.totalorder %s223, %s225
    %p232 = scmp.eq.s32.totalorder %s26, 1
    %p233 = por %p231, %p232
    %p234 = scmp.ne.s32.totalorder %s225, %s226
    %p235 = scmp.eq.s32.totalorder %s26, 0
    %p236 = por %p234, %p235
    %p237 = scmp.ne.s32.totalorder %s225, %s226
    %p238 = scmp.eq.s32.totalorder %s27, 1
    %p239 = por %p237, %p238
    %p241 = scmp.ne.s32.totalorder %s226, %s240
    %p242 = scmp.eq.s32.totalorder %s27, 0
    %p243 = por %p241, %p242
    %s245 = sadd.s32 %s244, 1
    %p248 = scmp.eq.s32.totalorder %s21, 1
    %p249 = scmp.ne.s32.totalorder %s244, %s246
    %p250 = scmp.eq.s32.totalorder %s21, 0
    %p251 = por %p249, %p250
    %p252 = scmp.ne.s32.totalorder %s244, %s246
    %p253 = scmp.eq.s32.totalorder %s26, 1
    %p254 = por %p252, %p253
    %p255 = scmp.ne.s32.totalorder %s246, %s247
    %p256 = scmp.eq.s32.totalorder %s26, 0
    %p257 = por %p255, %p256
    %p258 = scmp.ne.s32.totalorder %s246, %s247
    %p259 = scmp.eq.s32.totalorder %s27, 1
    %p260 = por %p258, %p259
    %p262 = scmp.ne.s32.totalorder %s247, %s261
    %p263 = scmp.eq.s32.totalorder %s27, 0
    %p264 = por %p262, %p263
    %s266 = sadd.s32 %s265, 1
    %p269 = scmp.eq.s32.totalorder %s21, 1
    %p270 = scmp.ne.s32.totalorder %s265, %s267
    %p271 = scmp.eq.s32.totalorder %s21, 0
    %p272 = por %p270, %p271
    %p273 = scmp.ne.s32.totalorder %s265, %s267
    %p274 = scmp.eq.s32.totalorder %s26, 1
    %p275 = por %p273, %p274
    %p276 = scmp.ne.s32.totalorder %s267, %s268
    %p277 = scmp.eq.s32.totalorder %s26, 0
    %p278 = por %p276, %p277
    %p279 = scmp.ne.s32.totalorder %s267, %s268
    %p280 = scmp.eq.s32.totalorder %s27, 1
    %p281 = por %p279, %p280
    %p283 = scmp.ne.s32.totalorder %s268, %s282
    %p284 = scmp.eq.s32.totalorder %s27, 0
    %p285 = por %p283, %p284
    %s287 = sadd.s32 %s286, 1
    %p290 = scmp.eq.s32.totalorder %s21, 1
    %p291 = scmp.ne.s32.totalorder %s286, %s288
    %p292 = scmp.eq.s32.totalorder %s21, 0
    %p293 = por %p291, %p292
    %p294 = scmp.ne.s32.totalorder %s286, %s288
    %p295 = scmp.eq.s32.totalorder %s26, 1
    %p296 = por %p294, %p295
    %p297 = scmp.ne.s32.totalorder %s288, %s289
    %p298 = scmp.eq.s32.totalorder %s26, 0
    %p299 = por %p297, %p298
    %p300 = scmp.ne.s32.totalorder %s288, %s289
    %p301 = scmp.eq.s32.totalorder %s27, 1
    %p302 = por %p300, %p301
    %p304 = scmp.ne.s32.totalorder %s289, %s303
    %p305 = scmp.eq.s32.totalorder %s27, 0
    %p306 = por %p304, %p305
    %s308 = sadd.s32 %s307, 1
    %p311 = scmp.eq.s32.totalorder %s21, 1
    %p312 = scmp.ne.s32.totalorder %s307, %s309
    %p313 = scmp.eq.s32.totalorder %s21, 0
    %p314 = por %p312, %p313
    %p315 = scmp.ne.s32.totalorder %s307, %s309
    %p316 = scmp.eq.s32.totalorder %s26, 1
    %p317 = por %p315, %p316
    %p318 = scmp.ne.s32.totalorder %s309, %s310
    %p319 = scmp.eq.s32.totalorder %s26, 0
    %p320 = por %p318, %p319
    %p321 = scmp.ne.s32.totalorder %s309, %s310
    %p322 = scmp.eq.s32.totalorder %s27, 1
    %p323 = por %p321, %p322
    %p325 = scmp.ne.s32.totalorder %s310, %s324
    %p326 = scmp.eq.s32.totalorder %s27, 0
    %p327 = por %p325, %p326
    %s329 = sadd.s32 %s328, 1
    %p332 = scmp.eq.s32.totalorder %s21, 1
    %p333 = scmp.ne.s32.totalorder %s328, %s330
    %p334 = scmp.eq.s32.totalorder %s21, 0
    %p335 = por %p333, %p334
    %p336 = scmp.ne.s32.totalorder %s328, %s330
    %p337 = scmp.eq.s32.totalorder %s26, 1
    %p338 = por %p336, %p337
    %p339 = scmp.ne.s32.totalorder %s330, %s331
    %p340 = scmp.eq.s32.totalorder %s26, 0
    %p341 = por %p339, %p340
    %p342 = scmp.ne.s32.totalorder %s330, %s331
    %p343 = scmp.eq.s32.totalorder %s27, 1
    %p344 = por %p342, %p343
    %p346 = scmp.ne.s32.totalorder %s331, %s345
    %p347 = scmp.eq.s32.totalorder %s27, 0
    %p348 = por %p346, %p347
    %s349 = ssub.s32 %s21, %s28
    %p350 = scmp.eq.s32.totalorder %s349, 0
    %s352 = sadd.s32 %s351, 1
    %s353 = scalar_select %p350, %s351, %s352
    %p356 = pneg %p350
    %p357 = scmp.eq.s32.totalorder %s21, 1
    %p358 = por %p356, %p357
    %p359 = scmp.ne.s32.totalorder %s351, %s354
    %p360 = scmp.eq.s32.totalorder %s21, 0
    %p361 = por %p359, %p360
    %p362 = scmp.ne.s32.totalorder %s351, %s354
    %p363 = scmp.eq.s32.totalorder %s26, 1
    %p364 = por %p362, %p363
    %p365 = scmp.ne.s32.totalorder %s354, %s355
    %p366 = scmp.eq.s32.totalorder %s26, 0
    %p367 = por %p365, %p366
    %p368 = scmp.ne.s32.totalorder %s354, %s355
    %p369 = scmp.eq.s32.totalorder %s27, 1
    %p370 = por %p368, %p369
    %p372 = scmp.ne.s32.totalorder %s355, %s371
    %p373 = scmp.eq.s32.totalorder %s27, 0
    %p374 = por %p372, %p373
    %p375 = scmp.le.s32.totalorder 1, %s21
    %p376 = scmp.lt.s32.totalorder %s21, 3
    %p377 = pnand %p375, %p376
    %p378 = pneg %p377
    // Predicated region
    $region9: #{bottleneck_forward.1} parent=5 // pred_check
      _
    $region10: #{bottleneck_forward.1} parent=5 // pred_check_branch
      %380 = sbr.rel (%p377) target = $region12
    $region11: #{bottleneck_forward.1} parent=5 // pred_region
      %s381 = ssub.s32 %s21, 1
      // Predicated region
      $region13: #{bottleneck_forward.1} parent=11 // pred_check
        %p382 = pneg %p68
      $region14: #{bottleneck_forward.1} parent=11 // pred_check_branch
        %384 = sbr.rel (%p382) target = $region16
      $region15: #{bottleneck_forward.1} parent=11 // pred_region
        _
      $region16: #{bottleneck_forward.1} parent=11 // pred_fallthru
        _
      // Predicated region
      $region17: #{bottleneck_forward.1} parent=11 // pred_check
        %p385 = pneg %p89
      $region18: #{bottleneck_forward.1} parent=11 // pred_check_branch
        %387 = sbr.rel (%p385) target = $region20
      $region19: #{bottleneck_forward.1} parent=11 // pred_region
        _
      $region20: #{bottleneck_forward.1} parent=11 // pred_fallthru
        _
      // Predicated region
      $region21: #{bottleneck_forward.1} parent=11 // pred_check
        %p388 = pneg %p110
      $region22: #{bottleneck_forward.1} parent=11 // pred_check_branch
        %390 = sbr.rel (%p388) target = $region24
      $region23: #{bottleneck_forward.1} parent=11 // pred_region
        _
      $region24: #{bottleneck_forward.1} parent=11 // pred_fallthru
        _
      // Predicated region
      $region25: #{bottleneck_forward.1} parent=11 // pred_check
        %p391 = pneg %p131
      $region26: #{bottleneck_forward.1} parent=11 // pred_check_branch
        %393 = sbr.rel (%p391) target = $region28
      $region27: #{bottleneck_forward.1} parent=11 // pred_region
        _
      $region28: #{bottleneck_forward.1} parent=11 // pred_fallthru
        _
      // Predicated region
      $region29: #{bottleneck_forward.1} parent=11 // pred_check
        %p394 = pneg %p152
      $region30: #{bottleneck_forward.1} parent=11 // pred_check_branch
        %396 = sbr.rel (%p394) target = $region32
      $region31: #{bottleneck_forward.1} parent=11 // pred_region
        _
      $region32: #{bottleneck_forward.1} parent=11 // pred_fallthru
        _
      // Predicated region
      $region33: #{bottleneck_forward.1} parent=11 // pred_check
        %p397 = pneg %p173
      $region34: #{bottleneck_forward.1} parent=11 // pred_check_branch
        %399 = sbr.rel (%p397) target = $region36
      $region35: #{bottleneck_forward.1} parent=11 // pred_region
        _
      $region36: #{bottleneck_forward.1} parent=11 // pred_fallthru
        _
      // Predicated region
      $region37: #{bottleneck_forward.1} parent=11 // pred_check
        %p400 = pneg %p194
      $region38: #{bottleneck_forward.1} parent=11 // pred_check_branch
        %402 = sbr.rel (%p400) target = $region40
      $region39: #{bottleneck_forward.1} parent=11 // pred_region
        _
      $region40: #{bottleneck_forward.1} parent=11 // pred_fallthru
        _
      // Predicated region
      $region41: #{bottleneck_forward.1} parent=11 // pred_check
        %p403 = pneg %p215
      $region42: #{bottleneck_forward.1} parent=11 // pred_check_branch
        %405 = sbr.rel (%p403) target = $region44
      $region43: #{bottleneck_forward.1} parent=11 // pred_region
        _
      $region44: #{bottleneck_forward.1} parent=11 // pred_fallthru
        _
      // Predicated region
      $region45: #{bottleneck_forward.1} parent=11 // pred_check
        %p406 = pneg %p236
      $region46: #{bottleneck_forward.1} parent=11 // pred_check_branch
        %408 = sbr.rel (%p406) target = $region48
      $region47: #{bottleneck_forward.1} parent=11 // pred_region
        _
      $region48: #{bottleneck_forward.1} parent=11 // pred_fallthru
        _
      // Predicated region
      $region49: #{bottleneck_forward.1} parent=11 // pred_check
        %p409 = pneg %p257
      $region50: #{bottleneck_forward.1} parent=11 // pred_check_branch
        %411 = sbr.rel (%p409) target = $region52
      $region51: #{bottleneck_forward.1} parent=11 // pred_region
        _
      $region52: #{bottleneck_forward.1} parent=11 // pred_fallthru
        _
      // Predicated region
      $region53: #{bottleneck_forward.1} parent=11 // pred_check
        %p412 = pneg %p278
      $region54: #{bottleneck_forward.1} parent=11 // pred_check_branch
        %414 = sbr.rel (%p412) target = $region56
      $region55: #{bottleneck_forward.1} parent=11 // pred_region
        _
      $region56: #{bottleneck_forward.1} parent=11 // pred_fallthru
        _
      // Predicated region
      $region57: #{bottleneck_forward.1} parent=11 // pred_check
        %p415 = pneg %p299
      $region58: #{bottleneck_forward.1} parent=11 // pred_check_branch
        %417 = sbr.rel (%p415) target = $region60
      $region59: #{bottleneck_forward.1} parent=11 // pred_region
        _
      $region60: #{bottleneck_forward.1} parent=11 // pred_fallthru
        _
      // Predicated region
      $region61: #{bottleneck_forward.1} parent=11 // pred_check
        %p418 = pneg %p320
      $region62: #{bottleneck_forward.1} parent=11 // pred_check_branch
        %420 = sbr.rel (%p418) target = $region64
      $region63: #{bottleneck_forward.1} parent=11 // pred_region
        _
      $region64: #{bottleneck_forward.1} parent=11 // pred_fallthru
        _
      // Predicated region
      $region65: #{bottleneck_forward.1} parent=11 // pred_check
        %p421 = pneg %p341
      $region66: #{bottleneck_forward.1} parent=11 // pred_check_branch
        %423 = sbr.rel (%p421) target = $region68
      $region67: #{bottleneck_forward.1} parent=11 // pred_region
        _
      $region68: #{bottleneck_forward.1} parent=11 // pred_fallthru
        _
    $region12: #{bottleneck_forward.1} parent=5 // pred_fallthru
      _
    %p424 = scmp.lt.s32.totalorder %s21, 2
    // Predicated region
    $region69: #{bottleneck_forward.1} parent=5 // pred_check
      %p425 = pneg %p424
    $region70: #{bottleneck_forward.1} parent=5 // pred_check_branch
      %427 = sbr.rel (%p425) target = $region72
    $region71: #{bottleneck_forward.1} parent=5 // pred_region
      // Predicated region
      $region73: #{bottleneck_forward.1} parent=71 // pred_check
        %p428 = pneg %p41
      $region74: #{bottleneck_forward.1} parent=71 // pred_check_branch
        %430 = sbr.rel (%p428) target = $region76
      $region75: #{bottleneck_forward.1} parent=71 // pred_region
        %p431 = scmp.lt.s32.totalorder %s21, 1
        %s432 = scalar_select %p431, %s21, 1
        %s433 = smul.addr %s432, 72
        %s434 = smul.addr %s433, 4
        %s435 = scalar_lea.vmem %s0, %s434
      $region76: #{bottleneck_forward.1} parent=71 // pred_fallthru
        _
    $region72: #{bottleneck_forward.1} parent=5 // pred_fallthru
      _
    %p436 = scmp.le.s32.totalorder 1, %s21
    %p437 = scmp.lt.s32.totalorder %s21, 3
    %p438 = pnand %p436, %p437
    %p439 = pneg %p438
    // Predicated region
    $region77: #{bottleneck_forward.1} parent=5 // pred_check
      _
    $region78: #{bottleneck_forward.1} parent=5 // pred_check_branch
      %441 = sbr.rel (%p438) target = $region80
    $region79: #{bottleneck_forward.1} parent=5 // pred_region
      %s442 = ssub.s32 %s21, 1
      %p443 = scmp.lt.s32.totalorder %s26, 1
      %s444 = scalar_select %p443, %s26, 1
      %s445 = smul.addr %s444, 72
      %s446 = smul.addr %s445, 4
      %s447 = scalar_lea.vmem %s0, %s446
      %p448 = pneg %p47
      %p449 = pneg %p44
      %p450 = pneg %p68
      %p451 = pneg %p65
      %p452 = pneg %p89
      %p453 = pneg %p86
      %p454 = pneg %p110
      %p455 = pneg %p107
      %p456 = pneg %p131
      %p457 = pneg %p128
      %p458 = pneg %p152
      %p459 = pneg %p149
      %p460 = pneg %p173
      %p461 = pneg %p170
      %p462 = pneg %p194
      %p463 = pneg %p191
      %p464 = pneg %p215
      %p465 = pneg %p212
      %p466 = pneg %p236
      %p467 = pneg %p233
      %p468 = pneg %p257
      %p469 = pneg %p254
      %p470 = pneg %p278
      %p471 = pneg %p275
      %p472 = pneg %p299
      %p473 = pneg %p296
      %p474 = pneg %p320
      %p475 = pneg %p317
      %p476 = pneg %p341
      %p477 = pneg %p338
      %p478 = pneg %p367
      %p479 = pneg %p364
      %p480 = scmp.lt.s32.totalorder %s26, 1
      %s481 = scalar_select %p480, %s26, 1
      %s482 = smul.addr %s481, 8
      %s483 = smul.addr %s482, 8
      %s484 = scalar_lea.vmem %s15, %s483
      %p485 = scmp.lt.s32.totalorder %s26, 1
      %s486 = scalar_select %p485, %s26, 1
      %s487 = smul.addr %s486, 72
      %s488 = smul.addr %s487, 4
      %s489 = scalar_lea.vmem %s0, %s488
      %p490 = scmp.lt.s32.totalorder %s26, 1
      %s491 = scalar_select %p490, %s26, 1
      %s492 = smul.addr %s491, 8
      %s493 = smul.addr %s492, 8
      %s494 = scalar_lea.vmem %s15, %s493
      %v496 = vld [vmem:[%s1] sm:$0x1]
      %v497 = vld [vmem:[%s489] sm:$0xf]
      %v498 = vld [vmem:[%s489 + $0x4] sm:$0xf]
      %v499 = vld [vmem:[%s489 + $0x8] sm:$0xf]
      %v500 = vld [vmem:[%s489 + $0xc] sm:$0xf]
      %v501 = vld [vmem:[%s489 + $0x10] sm:$0xf]
      %v502 = vld [vmem:[%s489 + $0x14] sm:$0xf]
      %v503 = vld [vmem:[%s489 + $0x18] sm:$0xf]
      %v504 = vld [vmem:[%s489 + $0x1c] sm:$0xf]
      %v505 = vld [vmem:[%s489 + $0x20] sm:$0xf]
      %v506 = vld [vmem:[%s489 + $0x24] sm:$0xf]
      %v507 = vld [vmem:[%s489 + $0x28] sm:$0xf]
      %v508 = vld [vmem:[%s489 + $0x2c] sm:$0xf]
      %v509 = vld [vmem:[%s489 + $0x30] sm:$0xf]
      %v510 = vld [vmem:[%s489 + $0x34] sm:$0xf]
      %v511 = vld [vmem:[%s489 + $0x38] sm:$0xf]
      %v512 = vld [vmem:[%s489 + $0x3c] sm:$0xf]
      %v513 = vld [vmem:[%s489 + $0x40] sm:$0xf]
      %v514 = vld [vmem:[%s489 + $0x44] sm:$0xf]
      %v515 = vld [vmem:[%s489 + $0x48] sm:$0xf]
      %v516 = vld [vmem:[%s489 + $0x4c] sm:$0xf]
      %v517 = vld [vmem:[%s489 + $0x50] sm:$0xf]
      %v518 = vld [vmem:[%s489 + $0x54] sm:$0xf]
      %v519 = vld [vmem:[%s489 + $0x58] sm:$0xf]
      %v520 = vld [vmem:[%s489 + $0x5c] sm:$0xf]
      %v521 = vld [vmem:[%s489 + $0x60] sm:$0xf]
      %v522 = vld [vmem:[%s489 + $0x64] sm:$0xf]
      %v523 = vld [vmem:[%s489 + $0x68] sm:$0xf]
      %v524 = vld [vmem:[%s489 + $0x6c] sm:$0xf]
      %v525 = vld [vmem:[%s489 + $0x70] sm:$0xf]
      %v526 = vld [vmem:[%s489 + $0x74] sm:$0xf]
      %v527 = vld [vmem:[%s489 + $0x78] sm:$0xf]
      %v528 = vld [vmem:[%s489 + $0x7c] sm:$0xf]
      %v529 = vld [vmem:[%s489 + $0x80] sm:$0xf]
      %v530 = vld [vmem:[%s489 + $0x84] sm:$0xf]
      %v531 = vld [vmem:[%s489 + $0x88] sm:$0xf]
      %v532 = vld [vmem:[%s489 + $0x8c] sm:$0xf]
      %v533 = vld [vmem:[%s489 + $0x90] sm:$0xf]
      %v534 = vld [vmem:[%s489 + $0x94] sm:$0xf]
      %v535 = vld [vmem:[%s489 + $0x98] sm:$0xf]
      %v536 = vld [vmem:[%s489 + $0x9c] sm:$0xf]
      %v537 = vld [vmem:[%s489 + $0xa0] sm:$0xf]
      %v538 = vld [vmem:[%s489 + $0xa4] sm:$0xf]
      %v539 = vld [vmem:[%s489 + $0xa8] sm:$0xf]
      %v540 = vld [vmem:[%s489 + $0xac] sm:$0xf]
      %v541 = vld [vmem:[%s489 + $0xb0] sm:$0xf]
      %v542 = vld [vmem:[%s489 + $0xb4] sm:$0xf]
      %v543 = vld [vmem:[%s489 + $0xb8] sm:$0xf]
      %v544 = vld [vmem:[%s489 + $0xbc] sm:$0xf]
      %v545 = vld [vmem:[%s489 + $0xc0] sm:$0xf]
      %v546 = vld [vmem:[%s489 + $0xc4] sm:$0xf]
      %v547 = vld [vmem:[%s489 + $0xc8] sm:$0xf]
      %v548 = vld [vmem:[%s489 + $0xcc] sm:$0xf]
      %v549 = vld [vmem:[%s489 + $0xd0] sm:$0xf]
      %v550 = vld [vmem:[%s489 + $0xd4] sm:$0xf]
      %v551 = vld [vmem:[%s489 + $0xd8] sm:$0xf]
      %v552 = vld [vmem:[%s489 + $0xdc] sm:$0xf]
      %v553 = vld [vmem:[%s489 + $0xe0] sm:$0xf]
      %v554 = vld [vmem:[%s489 + $0xe4] sm:$0xf]
      %v555 = vld [vmem:[%s489 + $0xe8] sm:$0xf]
      %v556 = vld [vmem:[%s489 + $0xec] sm:$0xf]
      %v557 = vld [vmem:[%s489 + $0xf0] sm:$0xf]
      %v558 = vld [vmem:[%s489 + $0xf4] sm:$0xf]
      %v559 = vld [vmem:[%s489 + $0xf8] sm:$0xf]
      %v560 = vld [vmem:[%s489 + $0xfc] sm:$0xf]
      %v561 = vld [vmem:[%s489 + $0x100] sm:$0xf]
      %v562 = vld [vmem:[%s489 + $0x104] sm:$0xf]
      %v563 = vld [vmem:[%s489 + $0x108] sm:$0xf]
      %v564 = vld [vmem:[%s489 + $0x10c] sm:$0xf]
      %v565 = vld [vmem:[%s489 + $0x110] sm:$0xf]
      %v566 = vld [vmem:[%s489 + $0x114] sm:$0xf]
      %v567 = vld [vmem:[%s489 + $0x118] sm:$0xf]
      %v568 = vld [vmem:[%s489 + $0x11c] sm:$0xf]
      %v569 = vunpack.c.l.bf16 %v497
      %v570 = vunpack.c.l.bf16 %v498
      %v571 = vunpack.c.l.bf16 %v499
      %v572 = vunpack.c.l.bf16 %v500
      %v573 = vunpack.c.l.bf16 %v501
      %v574 = vunpack.c.l.bf16 %v502
      %v575 = vunpack.c.l.bf16 %v503
      %v576 = vunpack.c.l.bf16 %v504
      %v577 = vunpack.c.l.bf16 %v505
      %v578 = vunpack.c.l.bf16 %v506
      %v579 = vunpack.c.l.bf16 %v507
      %v580 = vunpack.c.l.bf16 %v508
      %v581 = vunpack.c.l.bf16 %v509
      %v582 = vunpack.c.l.bf16 %v510
      %v583 = vunpack.c.l.bf16 %v511
      %v584 = vunpack.c.l.bf16 %v512
      %v585 = vunpack.c.l.bf16 %v513
      %v586 = vunpack.c.l.bf16 %v514
      %v588 = vlaneseq
      %v589 = vshrl.u32 %v588, 7
      %v590 = vsub.s32 0, %v589
      %v591 = vrot.slane %v496, %v590
      %v593 = vmul.f32 %v569, %v591
      %v594 = vmul.f32 %v570, %v591
      %v595 = vmul.f32 %v571, %v591
      %v596 = vmul.f32 %v572, %v591
      %v597 = vmul.f32 %v573, %v591
      %v598 = vmul.f32 %v574, %v591
      %v599 = vmul.f32 %v575, %v591
      %v600 = vmul.f32 %v576, %v591
      %v601 = vmul.f32 %v577, %v591
      %v602 = vmul.f32 %v578, %v591
      %v603 = vmul.f32 %v579, %v591
      %v604 = vmul.f32 %v580, %v591
      %v605 = vmul.f32 %v581, %v591
      %v606 = vmul.f32 %v582, %v591
      %v607 = vmul.f32 %v583, %v591
      %v608 = vmul.f32 %v584, %v591
      %v609 = vmul.f32 %v585, %v591
      %v610 = vmul.f32 %v586, %v591
      %v611 = vpack.c.bf16 %v594, %v593
      %v612 = vpack.c.bf16 %v596, %v595
      %v613 = vpack.c.bf16 %v598, %v597
      %v614 = vpack.c.bf16 %v600, %v599
      %v615 = vpack.c.bf16 %v602, %v601
      %v616 = vpack.c.bf16 %v604, %v603
      %v617 = vpack.c.bf16 %v606, %v605
      %v618 = vpack.c.bf16 %v608, %v607
      %v619 = vpack.c.bf16 %v610, %v609
      %v620 = vld [vmem:[%s2] sm:$0xf]
      %v621 = vld [vmem:[%s2 + $0x4] sm:$0xf]
      %v624 = vunpack.c.l.b16 %v620
      %v625 = vunpack.c.l.b16 %v621
      %v626 = vpack.c.b16 %v625, %v624
      %vm628 = vcmask 130048
      %v630 = vsel %vm628, %v611, 0
      %v633 = vsel %vm628, %v612, 0
      %v636 = vsel %vm628, %v613, 0
      %v639 = vsel %vm628, %v614, 0
      %v642 = vsel %vm628, %v615, 0
      %v645 = vsel %vm628, %v616, 0
      %v648 = vsel %vm628, %v617, 0
      %v651 = vsel %vm628, %v618, 0
      %v654 = vsel %vm628, %v619, 0
      %656 = vmatprep.subr.bf16.mxu0 0
      %657 = vmatpush1.bf16.msra.mxu0 %v626
      %658 = vmatprep.subr.bf16.mxu0 0
      %659 = vmatpush1.bf16.msra.mxu0 0
      %660 = vmatprep.subr.bf16.mxu0 0
      %661 = vmatpush1.bf16.msra.mxu0 0
      %662 = vmatprep.subr.bf16.mxu0 0
      %663 = vmatpush1.bf16.msra.mxu0 0
      %664 = vmatprep.subr.bf16.mxu0 0
      %665 = vmatpush1.bf16.msra.mxu0 0
      %666 = vmatprep.subr.bf16.mxu0 0
      %667 = vmatpush1.bf16.msra.mxu0 0
      %668 = vmatprep.subr.bf16.mxu0 0
      %669 = vmatpush1.bf16.msra.mxu0 0
      %670 = vmatprep.subr.bf16.mxu0 0
      %671 = vmatpush1.bf16.msra.mxu0 0
      %672 = vmatprep.subr.bf16.mxu0 0
      %673 = vmatpush1.bf16.msra.mxu0 0
      %674 = vmatprep.subr.bf16.mxu0 0
      %675 = vmatpush1.bf16.msra.mxu0 0
      %676 = vmatprep.subr.bf16.mxu0 0
      %677 = vmatpush1.bf16.msra.mxu0 0
      %678 = vmatprep.subr.bf16.mxu0 0
      %679 = vmatpush1.bf16.msra.mxu0 0
      %680 = vmatprep.subr.bf16.mxu0 0
      %681 = vmatpush1.bf16.msra.mxu0 0
      %682 = vmatprep.subr.bf16.mxu0 0
      %683 = vmatpush1.bf16.msra.mxu0 0
      %684 = vmatprep.subr.bf16.mxu0 0
      %685 = vmatpush1.bf16.msra.mxu0 0
      %686 = vmatprep.subr.bf16.mxu0 0
      %687 = vmatpush1.bf16.msra.mxu0 0
      %688 = vmatprep.mubr.bf16.mxu0 0
      %689 = vmatmul.mubr.bf16.gmra.mrb[0].mxu0 %v630
      %v690 = vpop.f32.mrb[0].mxu0
      %v691 = vadd.f32 0.0, %v690
      %v692 = vpop.f32.mrb[0].mxu0
      %v693 = vpop.f32.mrb[0].mxu0
      %v694 = vadd.f32 0.0, %v693
      %v695 = vpop.f32.mrb[0].mxu0
      %696 = vmatprep.mubr.bf16.mxu0 0
      %697 = vmatmul.mubr.bf16.gmra.mrb[0].mxu0 %v633
      %v698 = vpop.f32.mrb[0].mxu0
      %v699 = vadd.f32 0.0, %v698
      %v700 = vpop.f32.mrb[0].mxu0
      %v701 = vpop.f32.mrb[0].mxu0
      %v702 = vadd.f32 0.0, %v701
      %v703 = vpop.f32.mrb[0].mxu0
      %704 = vmatprep.mubr.bf16.mxu0 0
      %705 = vmatmul.mubr.bf16.gmra.mrb[0].mxu0 %v636
      %v706 = vpop.f32.mrb[0].mxu0
      %v707 = vadd.f32 0.0, %v706
      %v708 = vpop.f32.mrb[0].mxu0
      %v709 = vpop.f32.mrb[0].mxu0
      %v710 = vadd.f32 0.0, %v709
      %v711 = vpop.f32.mrb[0].mxu0
      %712 = vmatprep.mubr.bf16.mxu0 0
      %713 = vmatmul.mubr.bf16.gmra.mrb[0].mxu0 %v639
      %v714 = vpop.f32.mrb[0].mxu0
      %v715 = vadd.f32 0.0, %v714
      %v716 = vpop.f32.mrb[0].mxu0
      %v717 = vpop.f32.mrb[0].mxu0
      %v718 = vadd.f32 0.0, %v717
      %v719 = vpop.f32.mrb[0].mxu0
      %720 = vmatprep.mubr.bf16.mxu0 0
      %721 = vmatmul.mubr.bf16.gmra.mrb[0].mxu0 %v642
      %v722 = vpop.f32.mrb[0].mxu0
      %v723 = vadd.f32 0.0, %v722
      %v724 = vpop.f32.mrb[0].mxu0
      %v725 = vpop.f32.mrb[0].mxu0
      %v726 = vadd.f32 0.0, %v725
      %v727 = vpop.f32.mrb[0].mxu0
      %728 = vmatprep.mubr.bf16.mxu0 0
      %729 = vmatmul.mubr.bf16.gmra.mrb[0].mxu0 %v645
      %v730 = vpop.f32.mrb[0].mxu0
      %v731 = vadd.f32 0.0, %v730
      %v732 = vpop.f32.mrb[0].mxu0
      %v733 = vpop.f32.mrb[0].mxu0
      %v734 = vadd.f32 0.0, %v733
      %v735 = vpop.f32.mrb[0].mxu0
      %736 = vmatprep.mubr.bf16.mxu0 0
      %737 = vmatmul.mubr.bf16.gmra.mrb[0].mxu0 %v648
      %v738 = vpop.f32.mrb[0].mxu0
      %v739 = vadd.f32 0.0, %v738
      %v740 = vpop.f32.mrb[0].mxu0
      %v741 = vpop.f32.mrb[0].mxu0
      %v742 = vadd.f32 0.0, %v741
      %v743 = vpop.f32.mrb[0].mxu0
      %744 = vmatprep.mubr.bf16.mxu0 0
      %745 = vmatmul.mubr.bf16.gmra.mrb[0].mxu0 %v651
      %v746 = vpop.f32.mrb[0].mxu0
      %v747 = vadd.f32 0.0, %v746
      %v748 = vpop.f32.mrb[0].mxu0
      %v749 = vpop.f32.mrb[0].mxu0
      %v750 = vadd.f32 0.0, %v749
      %v751 = vpop.f32.mrb[0].mxu0
      %752 = vmatprep.mubr.bf16.mxu0 0
      %753 = vmatmul.mubr.bf16.gmra.mrb[0].mxu0 %v654
      %v754 = vpop.f32.mrb[0].mxu0
      %v755 = vadd.f32 0.0, %v754
      %v756 = vpop.f32.mrb[0].mxu0
      %v757 = vpop.f32.mrb[0].mxu0
      %v758 = vadd.f32 0.0, %v757
      %v759 = vpop.f32.mrb[0].mxu0
      %760 = vdwg.mxu0
      %v761 = vld [vmem:[%s3] sm:$0x1]
      %v763 = vlaneseq
      %v764 = vshrl.u32 %v763, 7
      %v765 = vsub.s32 0, %v764
      %v766 = vrot.slane %v761, %v765
      %v768 = vmul.f32 %v691, %v766
      %v769 = vmul.f32 %v694, %v766
      %v770 = vmul.f32 %v699, %v766
      %v771 = vmul.f32 %v702, %v766
      %v772 = vmul.f32 %v707, %v766
      %v773 = vmul.f32 %v710, %v766
      %v774 = vmul.f32 %v715, %v766
      %v775 = vmul.f32 %v718, %v766
      %v776 = vmul.f32 %v723, %v766
      %v777 = vmul.f32 %v726, %v766
      %v778 = vmul.f32 %v731, %v766
      %v779 = vmul.f32 %v734, %v766
      %v780 = vmul.f32 %v739, %v766
      %v781 = vmul.f32 %v742, %v766
      %v782 = vmul.f32 %v747, %v766
      %v783 = vmul.f32 %v750, %v766
      %v784 = vmul.f32 %v755, %v766
      %v785 = vmul.f32 %v758, %v766
      %v786 = vld [vmem:[%s4] sm:$0x1]
      %v788 = vlaneseq
      %v789 = vshrl.u32 %v788, 7
      %v790 = vsub.s32 0, %v789
      %v791 = vrot.slane %v786, %v790
      %v793 = vadd.f32 %v768, %v791
      %v794 = vadd.f32 %v769, %v791
      %v795 = vadd.f32 %v770, %v791
      %v796 = vadd.f32 %v771, %v791
      %v797 = vadd.f32 %v772, %v791
      %v798 = vadd.f32 %v773, %v791
      %v799 = vadd.f32 %v774, %v791
      %v800 = vadd.f32 %v775, %v791
      %v801 = vadd.f32 %v776, %v791
      %v802 = vadd.f32 %v777, %v791
      %v803 = vadd.f32 %v778, %v791
      %v804 = vadd.f32 %v779, %v791
      %v805 = vadd.f32 %v780, %v791
      %v806 = vadd.f32 %v781, %v791
      %v807 = vadd.f32 %v782, %v791
      %v808 = vadd.f32 %v783, %v791
      %v809 = vadd.f32 %v784, %v791
      %v810 = vadd.f32 %v785, %v791
      %v811 = vmax.f32 %v793, 0.0
      %v812 = vmax.f32 %v794, 0.0
      %v813 = vmax.f32 %v795, 0.0
      %v814 = vmax.f32 %v796, 0.0
      %v815 = vmax.f32 %v797, 0.0
      %v816 = vmax.f32 %v798, 0.0
      %v817 = vmax.f32 %v799, 0.0
      %v818 = vmax.f32 %v800, 0.0
      %v819 = vmax.f32 %v801, 0.0
      %v820 = vmax.f32 %v802, 0.0
      %v821 = vmax.f32 %v803, 0.0
      %v822 = vmax.f32 %v804, 0.0
      %v823 = vmax.f32 %v805, 0.0
      %v824 = vmax.f32 %v806, 0.0
      %v825 = vmax.f32 %v807, 0.0
      %v826 = vmax.f32 %v808, 0.0
      %v827 = vmax.f32 %v809, 0.0
      %v828 = vmax.f32 %v810, 0.0
      %v829 = vld [vmem:[%s5] sm:$0x1]
      %v831 = vlaneseq
      %v832 = vshrl.u32 %v831, 7
      %v833 = vsub.s32 0, %v832
      %v834 = vrot.slane %v829, %v833
      %v836 = vmul.f32 %v811, %v834
      %v837 = vmul.f32 %v812, %v834
      %v838 = vmul.f32 %v813, %v834
      %v839 = vmul.f32 %v814, %v834
      %v840 = vmul.f32 %v815, %v834
      %v841 = vmul.f32 %v816, %v834
      %v842 = vmul.f32 %v817, %v834
      %v843 = vmul.f32 %v818, %v834
      %v844 = vmul.f32 %v819, %v834
      %v845 = vmul.f32 %v820, %v834
      %v846 = vmul.f32 %v821, %v834
      %v847 = vmul.f32 %v822, %v834
      %v848 = vmul.f32 %v823, %v834
      %v849 = vmul.f32 %v824, %v834
      %v850 = vmul.f32 %v825, %v834
      %v851 = vmul.f32 %v826, %v834
      %v852 = vmul.f32 %v827, %v834
      %v853 = vmul.f32 %v828, %v834
      %v854 = vld [vmem:[%s6] sm:$0x1]
      %v856 = vlaneseq
      %v857 = vshrl.u32 %v856, 7
      %v858 = vsub.s32 0, %v857
      %v859 = vrot.slane %v854, %v858
      %v861 = vadd.f32 %v836, %v859
      %v862 = vadd.f32 %v837, %v859
      %v863 = vadd.f32 %v838, %v859
      %v864 = vadd.f32 %v839, %v859
      %v865 = vadd.f32 %v840, %v859
      %v866 = vadd.f32 %v841, %v859
      %v867 = vadd.f32 %v842, %v859
      %v868 = vadd.f32 %v843, %v859
      %v869 = vadd.f32 %v844, %v859
      %v870 = vadd.f32 %v845, %v859
      %v871 = vadd.f32 %v846, %v859
      %v872 = vadd.f32 %v847, %v859
      %v873 = vadd.f32 %v848, %v859
      %v874 = vadd.f32 %v849, %v859
      %v875 = vadd.f32 %v850, %v859
      %v876 = vadd.f32 %v851, %v859
      %v877 = vadd.f32 %v852, %v859
      %v878 = vadd.f32 %v853, %v859
      %v879 = vlaneseq
      %v880 = vshrl.u32 %v879, 7
      %v881 = vadd.s32 %v880, 8
      %v882 = vmul.u32 %v880, 2
      %v883 = vmul.u32 %v881, 2
      %vm884 = vcmp.ge.s32.totalorder %v882, 1
      %vm885 = vcmp.ge.s32.totalorder %v883, 1
      %vm886 = vmand 0, %vm884
      %vm887 = vmand 0, %vm885
      %vm888 = vmand 1, %vm884
      %vm889 = vmand 1, %vm885
      %vm890 = vcmp.le.s32.totalorder %v882, 16
      %vm891 = vcmp.le.s32.totalorder %v883, 16
      %vm892 = vmand %vm886, %vm890
      %vm893 = vmand %vm887, %vm891
      %vm894 = vmand %vm888, %vm890
      %vm895 = vmand %vm889, %vm891
      %v896 = vsel %vm892, 1, 0
      %v897 = vsel %vm893, 1, 0
      %v898 = vsel %vm894, 1, 0
      %v899 = vsel %vm895, 1, 0
      %vm900 = vcmp.eq.s32.totalorder %v896, 1
      %vm901 = vcmp.eq.s32.totalorder %v897, 1
      %vm902 = vcmp.eq.s32.totalorder %v898, 1
      %vm903 = vcmp.eq.s32.totalorder %v899, 1
      %v904 = vsel %vm900, %v861, 0.0
      %v905 = vsel %vm901, %v862, 0.0
      %v906 = vsel %vm902, %v863, 0.0
      %v907 = vsel %vm903, %v864, 0.0
      %v908 = vsel %vm902, %v865, 0.0
      %v909 = vsel %vm903, %v866, 0.0
      %v910 = vsel %vm902, %v867, 0.0
      %v911 = vsel %vm903, %v868, 0.0
      %v912 = vsel %vm902, %v869, 0.0
      %v913 = vsel %vm903, %v870, 0.0
      %v914 = vsel %vm902, %v871, 0.0
      %v915 = vsel %vm903, %v872, 0.0
      %v916 = vsel %vm902, %v873, 0.0
      %v917 = vsel %vm903, %v874, 0.0
      %v918 = vsel %vm902, %v875, 0.0
      %v919 = vsel %vm903, %v876, 0.0
      %v920 = vsel %vm902, %v877, 0.0
      %v921 = vsel %vm903, %v878, 0.0
      %v922 = vunpack.c.l.bf16 %v515
      %v923 = vunpack.c.l.bf16 %v516
      %v924 = vunpack.c.l.bf16 %v517
      %v925 = vunpack.c.l.bf16 %v518
      %v926 = vunpack.c.l.bf16 %v519
      %v927 = vunpack.c.l.bf16 %v520
      %v928 = vunpack.c.l.bf16 %v521
      %v929 = vunpack.c.l.bf16 %v522
      %v930 = vunpack.c.l.bf16 %v523
      %v931 = vunpack.c.l.bf16 %v524
      %v932 = vunpack.c.l.bf16 %v525
      %v933 = vunpack.c.l.bf16 %v526
      %v934 = vunpack.c.l.bf16 %v527
      %v935 = vunpack.c.l.bf16 %v528
      %v936 = vunpack.c.l.bf16 %v529
      %v937 = vunpack.c.l.bf16 %v530
      %v938 = vunpack.c.l.bf16 %v531
      %v939 = vunpack.c.l.bf16 %v532
      %v940 = vmul.f32 %v922, %v591
      %v941 = vmul.f32 %v923, %v591
      %v942 = vmul.f32 %v924, %v591
      %v943 = vmul.f32 %v925, %v591
      %v944 = vmul.f32 %v926, %v591
      %v945 = vmul.f32 %v927, %v591
      %v946 = vmul.f32 %v928, %v591
      %v947 = vmul.f32 %v929, %v591
      %v948 = vmul.f32 %v930, %v591
      %v949 = vmul.f32 %v931, %v591
      %v950 = vmul.f32 %v932, %v591
      %v951 = vmul.f32 %v933, %v591
      %v952 = vmul.f32 %v934, %v591
      %v953 = vmul.f32 %v935, %v591
      %v954 = vmul.f32 %v936, %v591
      %v955 = vmul.f32 %v937, %v591
      %v956 = vmul.f32 %v938, %v591
      %v957 = vmul.f32 %v939, %v591
      %v958 = vpack.c.bf16 %v941, %v940
      %v959 = vpack.c.bf16 %v943, %v942
      %v960 = vpack.c.bf16 %v945, %v944
      %v961 = vpack.c.bf16 %v947, %v946
      %v962 = vpack.c.bf16 %v949, %v948
      %v963 = vpack.c.bf16 %v951, %v950
      %v964 = vpack.c.bf16 %v953, %v952
      %v965 = vpack.c.bf16 %v955, %v954
      %v966 = vpack.c.bf16 %v957, %v956
      %v968 = vsel %vm628, %v958, 0
      %v971 = vsel %vm628, %v959, 0
      %v974 = vsel %vm628, %v960, 0
      %v977 = vsel %vm628, %v961, 0
      %v980 = vsel %vm628, %v962, 0
      %v983 = vsel %vm628, %v963, 0
      %v986 = vsel %vm628, %v964, 0
      %v989 = vsel %vm628, %v965, 0
      %v992 = vsel %vm628, %v966, 0
      %994 = vmatprep.subr.bf16.mxu0 0
      %995 = vmatpush1.bf16.msra.mxu0 %v626
      %996 = vmatprep.subr.bf16.mxu0 0
      %997 = vmatpush1.bf16.msra.mxu0 0
      %998 = vmatprep.subr.bf16.mxu0 0
      %999 = vmatpush1.bf16.msra.mxu0 0
      %1000 = vmatprep.subr.bf16.mxu0 0
      %1001 = vmatpush1.bf16.msra.mxu0 0
      %1002 = vmatprep.subr.bf16.mxu0 0
      %1003 = vmatpush1.bf16.msra.mxu0 0
      %1004 = vmatprep.subr.bf16.mxu0 0
      %1005 = vmatpush1.bf16.msra.mxu0 0
      %1006 = vmatprep.subr.bf16.mxu0 0
      %1007 = vmatpush1.bf16.msra.mxu0 0
      %1008 = vmatprep.subr.bf16.mxu0 0
      %1009 = vmatpush1.bf16.msra.mxu0 0
      %1010 = vmatprep.subr.bf16.mxu0 0
      %1011 = vmatpush1.bf16.msra.mxu0 0
      %1012 = vmatprep.subr.bf16.mxu0 0
      %1013 = vmatpush1.bf16.msra.mxu0 0
      %1014 = vmatprep.subr.bf16.mxu0 0
      %1015 = vmatpush1.bf16.msra.mxu0 0
      %1016 = vmatprep.subr.bf16.mxu0 0
      %1017 = vmatpush1.bf16.msra.mxu0 0
      %1018 = vmatprep.subr.bf16.mxu0 0
      %1019 = vmatpush1.bf16.msra.mxu0 0
      %1020 = vmatprep.subr.bf16.mxu0 0
      %1021 = vmatpush1.bf16.msra.mxu0 0
      %1022 = vmatprep.subr.bf16.mxu0 0
      %1023 = vmatpush1.bf16.msra.mxu0 0
      %1024 = vmatprep.subr.bf16.mxu0 0
      %1025 = vmatpush1.bf16.msra.mxu0 0
      %1026 = vmatprep.mubr.bf16.mxu0 0
      %1027 = vmatmul.mubr.bf16.gmra.mrb[0].mxu0 %v968
      %v1028 = vpop.f32.mrb[0].mxu0
      %v1029 = vadd.f32 0.0, %v1028
      %v1030 = vpop.f32.mrb[0].mxu0
      %v1031 = vpop.f32.mrb[0].mxu0
      %v1032 = vpop.f32.mrb[0].mxu0
      %1033 = vmatprep.mubr.bf16.mxu0 0
      %1034 = vmatmul.mubr.bf16.gmra.mrb[0].mxu0 %v971
      %v1035 = vpop.f32.mrb[0].mxu0
      %v1036 = vadd.f32 0.0, %v1035
      %v1037 = vpop.f32.mrb[0].mxu0
      %v1038 = vpop.f32.mrb[0].mxu0
      %v1039 = vpop.f32.mrb[0].mxu0
      %1040 = vmatprep.mubr.bf16.mxu0 0
      %1041 = vmatmul.mubr.bf16.gmra.mrb[0].mxu0 %v974
      %v1042 = vpop.f32.mrb[0].mxu0
      %v1043 = vadd.f32 0.0, %v1042
      %v1044 = vpop.f32.mrb[0].mxu0
      %v1045 = vpop.f32.mrb[0].mxu0
      %v1046 = vpop.f32.mrb[0].mxu0
      %1047 = vmatprep.mubr.bf16.mxu0 0
      %1048 = vmatmul.mubr.bf16.gmra.mrb[0].mxu0 %v977
      %v1049 = vpop.f32.mrb[0].mxu0
      %v1050 = vadd.f32 0.0, %v1049
      %v1051 = vpop.f32.mrb[0].mxu0
      %v1052 = vpop.f32.mrb[0].mxu0
      %v1053 = vpop.f32.mrb[0].mxu0
      %1054 = vmatprep.mubr.bf16.mxu0 0
      %1055 = vmatmul.mubr.bf16.gmra.mrb[0].mxu0 %v980
      %v1056 = vpop.f32.mrb[0].mxu0
      %v1057 = vadd.f32 0.0, %v1056
      %v1058 = vpop.f32.mrb[0].mxu0
      %v1059 = vpop.f32.mrb[0].mxu0
      %v1060 = vpop.f32.mrb[0].mxu0
      %1061 = vmatprep.mubr.bf16.mxu0 0
      %1062 = vmatmul.mubr.bf16.gmra.mrb[0].mxu0 %v983
      %v1063 = vpop.f32.mrb[0].mxu0
      %v1064 = vadd.f32 0.0, %v1063
      %v1065 = vpop.f32.mrb[0].mxu0
      %v1066 = vpop.f32.mrb[0].mxu0
      %v1067 = vpop.f32.mrb[0].mxu0
      %1068 = vmatprep.mubr.bf16.mxu0 0
      %1069 = vmatmul.mubr.bf16.gmra.mrb[0].mxu0 %v986
      %v1070 = vpop.f32.mrb[0].mxu0
      %v1071 = vadd.f32 0.0, %v1070
      %v1072 = vpop.f32.mrb[0].mxu0
      %v1073 = vpop.f32.mrb[0].mxu0
      %v1074 = vpop.f32.mrb[0].mxu0
      %1075 = vmatprep.mubr.bf16.mxu0 0
      %1076 = vmatmul.mubr.bf16.gmra.mrb[0].mxu0 %v989
      %v1077 = vpop.f32.mrb[0].mxu0
      %v1078 = vadd.f32 0.0, %v1077
      %v1079 = vpop.f32.mrb[0].mxu0
      %v1080 = vpop.f32.mrb[0].mxu0
      %v1081 = vpop.f32.mrb[0].mxu0
      %1082 = vmatprep.mubr.bf16.mxu0 0
      %1083 = vmatmul.mubr.bf16.gmra.mrb[0].mxu0 %v992
      %v1084 = vpop.f32.mrb[0].mxu0
      %v1085 = vadd.f32 0.0, %v1084
      %v1086 = vpop.f32.mrb[0].mxu0
      %v1087 = vpop.f32.mrb[0].mxu0
      %v1088 = vpop.f32.mrb[0].mxu0
      %1089 = vdwg.mxu0
      %v1090 = vmul.f32 %v1029, %v766
      %v1091 = vmul.f32 %v1036, %v766
      %v1092 = vmul.f32 %v1043, %v766
      %v1093 = vmul.f32 %v1050, %v766
      %v1094 = vmul.f32 %v1057, %v766
      %v1095 = vmul.f32 %v1064, %v766
      %v1096 = vmul.f32 %v1071, %v766
      %v1097 = vmul.f32 %v1078, %v766
      %v1098 = vmul.f32 %v1085, %v766
      %v1099 = vadd.f32 %v1090, %v791
      %v1100 = vadd.f32 %v1091, %v791
      %v1101 = vadd.f32 %v1092, %v791
      %v1102 = vadd.f32 %v1093, %v791
      %v1103 = vadd.f32 %v1094, %v791
      %v1104 = vadd.f32 %v1095, %v791
      %v1105 = vadd.f32 %v1096, %v791
      %v1106 = vadd.f32 %v1097, %v791
      %v1107 = vadd.f32 %v1098, %v791
      %v1108 = vmax.f32 %v1099, 0.0
      %v1109 = vmax.f32 %v1100, 0.0
      %v1110 = vmax.f32 %v1101, 0.0
      %v1111 = vmax.f32 %v1102, 0.0
      %v1112 = vmax.f32 %v1103, 0.0
      %v1113 = vmax.f32 %v1104, 0.0
      %v1114 = vmax.f32 %v1105, 0.0
      %v1115 = vmax.f32 %v1106, 0.0
      %v1116 = vmax.f32 %v1107, 0.0
      %v1117 = vmul.f32 %v1108, %v834
      %v1118 = vmul.f32 %v1109, %v834
      %v1119 = vmul.f32 %v1110, %v834
      %v1120 = vmul.f32 %v1111, %v834
      %v1121 = vmul.f32 %v1112, %v834
      %v1122 = vmul.f32 %v1113, %v834
      %v1123 = vmul.f32 %v1114, %v834
      %v1124 = vmul.f32 %v1115, %v834
      %v1125 = vmul.f32 %v1116, %v834
      %v1126 = vadd.f32 %v1117, %v859
      %v1127 = vadd.f32 %v1118, %v859
      %v1128 = vadd.f32 %v1119, %v859
      %v1129 = vadd.f32 %v1120, %v859
      %v1130 = vadd.f32 %v1121, %v859
      %v1131 = vadd.f32 %v1122, %v859
      %v1132 = vadd.f32 %v1123, %v859
      %v1133 = vadd.f32 %v1124, %v859
      %v1134 = vadd.f32 %v1125, %v859
      %v1135 = vadd.s32 %v882, 1
      %vm1136 = vcmp.ge.s32.totalorder %v1135, 1
      %vm1137 = vmand 0, %vm1136
      %vm1138 = vmand 1, %vm1136
      %vm1139 = vcmp.le.s32.totalorder %v1135, 16
      %vm1140 = vmand %vm1137, %vm1139
      %vm1141 = vmand %vm1138, %vm1139
      %v1142 = vsel %vm1140, 1, 0
      %v1143 = vsel %vm1141, 1, 0
      %vm1144 = vcmp.eq.s32.totalorder %v1142, 1
      %vm1145 = vcmp.eq.s32.totalorder %v1143, 1
      %v1146 = vsel %vm1144, %v1126, 0.0
      %v1147 = vsel %vm1145, %v1127, 0.0
      %v1148 = vsel %vm1145, %v1128, 0.0
      %v1149 = vsel %vm1145, %v1129, 0.0
      %v1150 = vsel %vm1145, %v1130, 0.0
      %v1151 = vsel %vm1145, %v1131, 0.0
      %v1152 = vsel %vm1145, %v1132, 0.0
      %v1153 = vsel %vm1145, %v1133, 0.0
      %v1154 = vsel %vm1145, %v1134, 0.0
      %v1155 = vunpack.c.l.bf16 %v533
      %v1156 = vunpack.c.l.bf16 %v534
      %v1157 = vunpack.c.l.bf16 %v535
      %v1158 = vunpack.c.l.bf16 %v536
      %v1159 = vunpack.c.l.bf16 %v537
      %v1160 = vunpack.c.l.bf16 %v538
      %v1161 = vunpack.c.l.bf16 %v539
      %v1162 = vunpack.c.l.bf16 %v540
      %v1163 = vunpack.c.l.bf16 %v541
      %v1164 = vunpack.c.l.bf16 %v542
      %v1165 = vunpack.c.l.bf16 %v543
      %v1166 = vunpack.c.l.bf16 %v544
      %v1167 = vunpack.c.l.bf16 %v545
      %v1168 = vunpack.c.l.bf16 %v546
      %v1169 = vunpack.c.l.bf16 %v547
      %v1170 = vunpack.c.l.bf16 %v548
      %v1171 = vunpack.c.l.bf16 %v549
      %v1172 = vunpack.c.l.bf16 %v550
      %v1173 = vmul.f32 %v1155, %v591
      %v1174 = vmul.f32 %v1156, %v591
      %v1175 = vmul.f32 %v1157, %v591
      %v1176 = vmul.f32 %v1158, %v591
      %v1177 = vmul.f32 %v1159, %v591
      %v1178 = vmul.f32 %v1160, %v591
      %v1179 = vmul.f32 %v1161, %v591
      %v1180 = vmul.f32 %v1162, %v591
      %v1181 = vmul.f32 %v1163, %v591
      %v1182 = vmul.f32 %v1164, %v591
      %v1183 = vmul.f32 %v1165, %v591
      %v1184 = vmul.f32 %v1166, %v591
      %v1185 = vmul.f32 %v1167, %v591
      %v1186 = vmul.f32 %v1168, %v591
      %v1187 = vmul.f32 %v1169, %v591
      %v1188 = vmul.f32 %v1170, %v591
      %v1189 = vmul.f32 %v1171, %v591
      %v1190 = vmul.f32 %v1172, %v591
      %v1191 = vpack.c.bf16 %v1174, %v1173
      %v1192 = vpack.c.bf16 %v1176, %v1175
      %v1193 = vpack.c.bf16 %v1178, %v1177
      %v1194 = vpack.c.bf16 %v1180, %v1179
      %v1195 = vpack.c.bf16 %v1182, %v1181
      %v1196 = vpack.c.bf16 %v1184, %v1183
      %v1197 = vpack.c.bf16 %v1186, %v1185
      %v1198 = vpack.c.bf16 %v1188, %v1187
      %v1199 = vpack.c.bf16 %v1190, %v1189
      %v1201 = vsel %vm628, %v1191, 0
      %v1204 = vsel %vm628, %v1192, 0
      %v1207 = vsel %vm628, %v1193, 0
      %v1210 = vsel %vm628, %v1194, 0
      %v1213 = vsel %vm628, %v1195, 0
      %v1216 = vsel %vm628, %v1196, 0
      %v1219 = vsel %vm628, %v1197, 0
      %v1222 = vsel %vm628, %v1198, 0
      %v1225 = vsel %vm628, %v1199, 0
      %1227 = vmatprep.subr.bf16.mxu0 0
      %1228 = vmatpush1.bf16.msra.mxu0 %v626
      %1229 = vmatprep.subr.bf16.mxu0 0
      %1230 = vmatpush1.bf16.msra.mxu0 0
      %1231 = vmatprep.subr.bf16.mxu0 0
      %1232 = vmatpush1.bf16.msra.mxu0 0
      %1233 = vmatprep.subr.bf16.mxu0 0
      %1234 = vmatpush1.bf16.msra.mxu0 0
      %1235 = vmatprep.subr.bf16.mxu0 0
      %1236 = vmatpush1.bf16.msra.mxu0 0
      %1237 = vmatprep.subr.bf16.mxu0 0
      %1238 = vmatpush1.bf16.msra.mxu0 0
      %1239 = vmatprep.subr.bf16.mxu0 0
      %1240 = vmatpush1.bf16.msra.mxu0 0
      %1241 = vmatprep.subr.bf16.mxu0 0
      %1242 = vmatpush1.bf16.msra.mxu0 0
      %1243 = vmatprep.subr.bf16.mxu0 0
      %1244 = vmatpush1.bf16.msra.mxu0 0
      %1245 = vmatprep.subr.bf16.mxu0 0
      %1246 = vmatpush1.bf16.msra.mxu0 0
      %1247 = vmatprep.subr.bf16.mxu0 0
      %1248 = vmatpush1.bf16.msra.mxu0 0
      %1249 = vmatprep.subr.bf16.mxu0 0
      %1250 = vmatpush1.bf16.msra.mxu0 0
      %1251 = vmatprep.subr.bf16.mxu0 0
      %1252 = vmatpush1.bf16.msra.mxu0 0
      %1253 = vmatprep.subr.bf16.mxu0 0
      %1254 = vmatpush1.bf16.msra.mxu0 0
      %1255 = vmatprep.subr.bf16.mxu0 0
      %1256 = vmatpush1.bf16.msra.mxu0 0
      %1257 = vmatprep.subr.bf16.mxu0 0
      %1258 = vmatpush1.bf16.msra.mxu0 0
      %1259 = vmatprep.mubr.bf16.mxu0 0
      %1260 = vmatmul.mubr.bf16.gmra.mrb[0].mxu0 %v1201
      %v1261 = vpop.f32.mrb[0].mxu0
      %v1262 = vadd.f32 0.0, %v1261
      %v1263 = vpop.f32.mrb[0].mxu0
      %v1264 = vpop.f32.mrb[0].mxu0
      %v1265 = vadd.f32 0.0, %v1264
      %v1266 = vpop.f32.mrb[0].mxu0
      %1267 = vmatprep.mubr.bf16.mxu0 0
      %1268 = vmatmul.mubr.bf16.gmra.mrb[0].mxu0 %v1204
      %v1269 = vpop.f32.mrb[0].mxu0
      %v1270 = vadd.f32 0.0, %v1269
      %v1271 = vpop.f32.mrb[0].mxu0
      %v1272 = vpop.f32.mrb[0].mxu0
      %v1273 = vadd.f32 0.0, %v1272
      %v1274 = vpop.f32.mrb[0].mxu0
      %1275 = vmatprep.mubr.bf16.mxu0 0
      %1276 = vmatmul.mubr.bf16.gmra.mrb[0].mxu0 %v1207
      %v1277 = vpop.f32.mrb[0].mxu0
      %v1278 = vadd.f32 0.0, %v1277
      %v1279 = vpop.f32.mrb[0].mxu0
      %v1280 = vpop.f32.mrb[0].mxu0
      %v1281 = vadd.f32 0.0, %v1280
      %v1282 = vpop.f32.mrb[0].mxu0
      %1283 = vmatprep.mubr.bf16.mxu0 0
      %1284 = vmatmul.mubr.bf16.gmra.mrb[0].mxu0 %v1210
      %v1285 = vpop.f32.mrb[0].mxu0
      %v1286 = vadd.f32 0.0, %v1285
      %v1287 = vpop.f32.mrb[0].mxu0
      %v1288 = vpop.f32.mrb[0].mxu0
      %v1289 = vadd.f32 0.0, %v1288
      %v1290 = vpop.f32.mrb[0].mxu0
      %1291 = vmatprep.mubr.bf16.mxu0 0
      %1292 = vmatmul.mubr.bf16.gmra.mrb[0].mxu0 %v1213
      %v1293 = vpop.f32.mrb[0].mxu0
      %v1294 = vadd.f32 0.0, %v1293
      %v1295 = vpop.f32.mrb[0].mxu0
      %v1296 = vpop.f32.mrb[0].mxu0
      %v1297 = vadd.f32 0.0, %v1296
      %v1298 = vpop.f32.mrb[0].mxu0
      %1299 = vmatprep.mubr.bf16.mxu0 0
      %1300 = vmatmul.mubr.bf16.gmra.mrb[0].mxu0 %v1216
      %v1301 = vpop.f32.mrb[0].mxu0
      %v1302 = vadd.f32 0.0, %v1301
      %v1303 = vpop.f32.mrb[0].mxu0
      %v1304 = vpop.f32.mrb[0].mxu0
      %v1305 = vadd.f32 0.0, %v1304
      %v1306 = vpop.f32.mrb[0].mxu0
      %1307 = vmatprep.mubr.bf16.mxu0 0
      %1308 = vmatmul.mubr.bf16.gmra.mrb[0].mxu0 %v1219
      %v1309 = vpop.f32.mrb[0].mxu0
      %v1310 = vadd.f32 0.0, %v1309
      %v1311 = vpop.f32.mrb[0].mxu0
      %v1312 = vpop.f32.mrb[0].mxu0
      %v1313 = vadd.f32 0.0, %v1312
      %v1314 = vpop.f32.mrb[0].mxu0
      %1315 = vmatprep.mubr.bf16.mxu0 0
      %1316 = vmatmul.mubr.bf16.gmra.mrb[0].mxu0 %v1222
      %v1317 = vpop.f32.mrb[0].mxu0
      %v1318 = vadd.f32 0.0, %v1317
      %v1319 = vpop.f32.mrb[0].mxu0
      %v1320 = vpop.f32.mrb[0].mxu0
      %v1321 = vadd.f32 0.0, %v1320
      %v1322 = vpop.f32.mrb[0].mxu0
      %1323 = vmatprep.mubr.bf16.mxu0 0
      %1324 = vmatmul.mubr.bf16.gmra.mrb[0].mxu0 %v1225
      %v1325 = vpop.f32.mrb[0].mxu0
      %v1326 = vpop.f32.mrb[0].mxu0
      %v1327 = vpop.f32.mrb[0].mxu0
      %v1328 = vpop.f32.mrb[0].mxu0
      %1329 = vdwg.mxu0
      %v1330 = vmul.f32 %v1262, %v766
      %v1331 = vmul.f32 %v1265, %v766
      %v1332 = vmul.f32 %v1270, %v766
      %v1333 = vmul.f32 %v1273, %v766
      %v1334 = vmul.f32 %v1278, %v766
      %v1335 = vmul.f32 %v1281, %v766
      %v1336 = vmul.f32 %v1286, %v766
      %v1337 = vmul.f32 %v1289, %v766
      %v1338 = vmul.f32 %v1294, %v766
      %v1339 = vmul.f32 %v1297, %v766
      %v1340 = vmul.f32 %v1302, %v766
      %v1341 = vmul.f32 %v1305, %v766
      %v1342 = vmul.f32 %v1310, %v766
      %v1343 = vmul.f32 %v1313, %v766
      %v1344 = vmul.f32 %v1318, %v766
      %v1345 = vmul.f32 %v1321, %v766
      %v1346 = vadd.f32 %v1330, %v791
      %v1347 = vadd.f32 %v1331, %v791
      %v1348 = vadd.f32 %v1332, %v791
      %v1349 = vadd.f32 %v1333, %v791
      %v1350 = vadd.f32 %v1334, %v791
      %v1351 = vadd.f32 %v1335, %v791
      %v1352 = vadd.f32 %v1336, %v791
      %v1353 = vadd.f32 %v1337, %v791
      %v1354 = vadd.f32 %v1338, %v791
      %v1355 = vadd.f32 %v1339, %v791
      %v1356 = vadd.f32 %v1340, %v791
      %v1357 = vadd.f32 %v1341, %v791
      %v1358 = vadd.f32 %v1342, %v791
      %v1359 = vadd.f32 %v1343, %v791
      %v1360 = vadd.f32 %v1344, %v791
      %v1361 = vadd.f32 %v1345, %v791
      %v1362 = vmax.f32 %v1346, 0.0
      %v1363 = vmax.f32 %v1347, 0.0
      %v1364 = vmax.f32 %v1348, 0.0
      %v1365 = vmax.f32 %v1349, 0.0
      %v1366 = vmax.f32 %v1350, 0.0
      %v1367 = vmax.f32 %v1351, 0.0
      %v1368 = vmax.f32 %v1352, 0.0
      %v1369 = vmax.f32 %v1353, 0.0
      %v1370 = vmax.f32 %v1354, 0.0
      %v1371 = vmax.f32 %v1355, 0.0
      %v1372 = vmax.f32 %v1356, 0.0
      %v1373 = vmax.f32 %v1357, 0.0
      %v1374 = vmax.f32 %v1358, 0.0
      %v1375 = vmax.f32 %v1359, 0.0
      %v1376 = vmax.f32 %v1360, 0.0
      %v1377 = vmax.f32 %v1361, 0.0
      %v1378 = vmul.f32 %v1362, %v834
      %v1379 = vmul.f32 %v1363, %v834
      %v1380 = vmul.f32 %v1364, %v834
      %v1381 = vmul.f32 %v1365, %v834
      %v1382 = vmul.f32 %v1366, %v834
      %v1383 = vmul.f32 %v1367, %v834
      %v1384 = vmul.f32 %v1368, %v834
      %v1385 = vmul.f32 %v1369, %v834
      %v1386 = vmul.f32 %v1370, %v834
      %v1387 = vmul.f32 %v1371, %v834
      %v1388 = vmul.f32 %v1372, %v834
      %v1389 = vmul.f32 %v1373, %v834
      %v1390 = vmul.f32 %v1374, %v834
      %v1391 = vmul.f32 %v1375, %v834
      %v1392 = vmul.f32 %v1376, %v834
      %v1393 = vmul.f32 %v1377, %v834
      %v1394 = vadd.f32 %v1378, %v859
      %v1395 = vadd.f32 %v1379, %v859
      %v1396 = vadd.f32 %v1380, %v859
      %v1397 = vadd.f32 %v1381, %v859
      %v1398 = vadd.f32 %v1382, %v859
      %v1399 = vadd.f32 %v1383, %v859
      %v1400 = vadd.f32 %v1384, %v859
      %v1401 = vadd.f32 %v1385, %v859
      %v1402 = vadd.f32 %v1386, %v859
      %v1403 = vadd.f32 %v1387, %v859
      %v1404 = vadd.f32 %v1388, %v859
      %v1405 = vadd.f32 %v1389, %v859
      %v1406 = vadd.f32 %v1390, %v859
      %v1407 = vadd.f32 %v1391, %v859
      %v1408 = vadd.f32 %v1392, %v859
      %v1409 = vadd.f32 %v1393, %v859
      %v1410 = vsel %vm902, %v1394, 0.0
      %v1411 = vsel %vm903, %v1395, 0.0
      %v1412 = vsel %vm902, %v1396, 0.0
      %v1413 = vsel %vm903, %v1397, 0.0
      %v1414 = vsel %vm902, %v1398, 0.0
      %v1415 = vsel %vm903, %v1399, 0.0
      %v1416 = vsel %vm902, %v1400, 0.0
      %v1417 = vsel %vm903, %v1401, 0.0
      %v1418 = vsel %vm902, %v1402, 0.0
      %v1419 = vsel %vm903, %v1403, 0.0
      %v1420 = vsel %vm902, %v1404, 0.0
      %v1421 = vsel %vm903, %v1405, 0.0
      %v1422 = vsel %vm902, %v1406, 0.0
      %v1423 = vsel %vm903, %v1407, 0.0
      %v1424 = vsel %vm902, %v1408, 0.0
      %v1425 = vsel %vm903, %v1409, 0.0
      %v1426 = vunpack.c.l.bf16 %v551
      %v1427 = vunpack.c.l.bf16 %v552
      %v1428 = vunpack.c.l.bf16 %v553
      %v1429 = vunpack.c.l.bf16 %v554
      %v1430 = vunpack.c.l.bf16 %v555
      %v1431 = vunpack.c.l.bf16 %v556
      %v1432 = vunpack.c.l.bf16 %v557
      %v1433 = vunpack.c.l.bf16 %v558
      %v1434 = vunpack.c.l.bf16 %v559
      %v1435 = vunpack.c.l.bf16 %v560
      %v1436 = vunpack.c.l.bf16 %v561
      %v1437 = vunpack.c.l.bf16 %v562
      %v1438 = vunpack.c.l.bf16 %v563
      %v1439 = vunpack.c.l.bf16 %v564
      %v1440 = vunpack.c.l.bf16 %v565
      %v1441 = vunpack.c.l.bf16 %v566
      %v1442 = vunpack.c.l.bf16 %v567
      %v1443 = vunpack.c.l.bf16 %v568
      %v1444 = vmul.f32 %v1426, %v591
      %v1445 = vmul.f32 %v1427, %v591
      %v1446 = vmul.f32 %v1428, %v591
      %v1447 = vmul.f32 %v1429, %v591
      %v1448 = vmul.f32 %v1430, %v591
      %v1449 = vmul.f32 %v1431, %v591
      %v1450 = vmul.f32 %v1432, %v591
      %v1451 = vmul.f32 %v1433, %v591
      %v1452 = vmul.f32 %v1434, %v591
      %v1453 = vmul.f32 %v1435, %v591
      %v1454 = vmul.f32 %v1436, %v591
      %v1455 = vmul.f32 %v1437, %v591
      %v1456 = vmul.f32 %v1438, %v591
      %v1457 = vmul.f32 %v1439, %v591
      %v1458 = vmul.f32 %v1440, %v591
      %v1459 = vmul.f32 %v1441, %v591
      %v1460 = vmul.f32 %v1442, %v591
      %v1461 = vmul.f32 %v1443, %v591
      %v1462 = vpack.c.bf16 %v1445, %v1444
      %v1463 = vpack.c.bf16 %v1447, %v1446
      %v1464 = vpack.c.bf16 %v1449, %v1448
      %v1465 = vpack.c.bf16 %v1451, %v1450
      %v1466 = vpack.c.bf16 %v1453, %v1452
      %v1467 = vpack.c.bf16 %v1455, %v1454
      %v1468 = vpack.c.bf16 %v1457, %v1456
      %v1469 = vpack.c.bf16 %v1459, %v1458
      %v1470 = vpack.c.bf16 %v1461, %v1460
      %v1472 = vsel %vm628, %v1462, 0
      %v1475 = vsel %vm628, %v1463, 0
      %v1478 = vsel %vm628, %v1464, 0
      %v1481 = vsel %vm628, %v1465, 0
      %v1484 = vsel %vm628, %v1466, 0
      %v1487 = vsel %vm628, %v1467, 0
      %v1490 = vsel %vm628, %v1468, 0
      %v1493 = vsel %vm628, %v1469, 0
      %v1496 = vsel %vm628, %v1470, 0
      %1498 = vmatprep.subr.bf16.mxu0 0
      %1499 = vmatpush1.bf16.msra.mxu0 %v626
      %1500 = vmatprep.subr.bf16.mxu0 0
      %1501 = vmatpush1.bf16.msra.mxu0 0
      %1502 = vmatprep.subr.bf16.mxu0 0
      %1503 = vmatpush1.bf16.msra.mxu0 0
      %1504 = vmatprep.subr.bf16.mxu0 0
      %1505 = vmatpush1.bf16.msra.mxu0 0
      %1506 = vmatprep.subr.bf16.mxu0 0
      %1507 = vmatpush1.bf16.msra.mxu0 0
      %1508 = vmatprep.subr.bf16.mxu0 0
      %1509 = vmatpush1.bf16.msra.mxu0 0
      %1510 = vmatprep.subr.bf16.mxu0 0
      %1511 = vmatpush1.bf16.msra.mxu0 0
      %1512 = vmatprep.subr.bf16.mxu0 0
      %1513 = vmatpush1.bf16.msra.mxu0 0
      %1514 = vmatprep.subr.bf16.mxu0 0
      %1515 = vmatpush1.bf16.msra.mxu0 0
      %1516 = vmatprep.subr.bf16.mxu0 0
      %1517 = vmatpush1.bf16.msra.mxu0 0
      %1518 = vmatprep.subr.bf16.mxu0 0
      %1519 = vmatpush1.bf16.msra.mxu0 0
      %1520 = vmatprep.subr.bf16.mxu0 0
      %1521 = vmatpush1.bf16.msra.mxu0 0
      %1522 = vmatprep.subr.bf16.mxu0 0
      %1523 = vmatpush1.bf16.msra.mxu0 0
      %1524 = vmatprep.subr.bf16.mxu0 0
      %1525 = vmatpush1.bf16.msra.mxu0 0
      %1526 = vmatprep.subr.bf16.mxu0 0
      %1527 = vmatpush1.bf16.msra.mxu0 0
      %1528 = vmatprep.subr.bf16.mxu0 0
      %1529 = vmatpush1.bf16.msra.mxu0 0
      %1530 = vmatprep.mubr.bf16.mxu0 0
      %1531 = vmatmul.mubr.bf16.gmra.mrb[0].mxu0 %v1472
      %v1532 = vpop.f32.mrb[0].mxu0
      %v1533 = vadd.f32 0.0, %v1532
      %v1534 = vpop.f32.mrb[0].mxu0
      %v1535 = vpop.f32.mrb[0].mxu0
      %v1536 = vpop.f32.mrb[0].mxu0
      %1537 = vmatprep.mubr.bf16.mxu0 0
      %1538 = vmatmul.mubr.bf16.gmra.mrb[0].mxu0 %v1475
      %v1539 = vpop.f32.mrb[0].mxu0
      %v1540 = vadd.f32 0.0, %v1539
      %v1541 = vpop.f32.mrb[0].mxu0
      %v1542 = vpop.f32.mrb[0].mxu0
      %v1543 = vpop.f32.mrb[0].mxu0
      %1544 = vmatprep.mubr.bf16.mxu0 0
      %1545 = vmatmul.mubr.bf16.gmra.mrb[0].mxu0 %v1478
      %v1546 = vpop.f32.mrb[0].mxu0
      %v1547 = vadd.f32 0.0, %v1546
      %v1548 = vpop.f32.mrb[0].mxu0
      %v1549 = vpop.f32.mrb[0].mxu0
      %v1550 = vpop.f32.mrb[0].mxu0
      %1551 = vmatprep.mubr.bf16.mxu0 0
      %1552 = vmatmul.mubr.bf16.gmra.mrb[0].mxu0 %v1481
      %v1553 = vpop.f32.mrb[0].mxu0
      %v1554 = vadd.f32 0.0, %v1553
      %v1555 = vpop.f32.mrb[0].mxu0
      %v1556 = vpop.f32.mrb[0].mxu0
      %v1557 = vpop.f32.mrb[0].mxu0
      %1558 = vmatprep.mubr.bf16.mxu0 0
      %1559 = vmatmul.mubr.bf16.gmra.mrb[0].mxu0 %v1484
      %v1560 = vpop.f32.mrb[0].mxu0
      %v1561 = vadd.f32 0.0, %v1560
      %v1562 = vpop.f32.mrb[0].mxu0
      %v1563 = vpop.f32.mrb[0].mxu0
      %v1564 = vpop.f32.mrb[0].mxu0
      %1565 = vmatprep.mubr.bf16.mxu0 0
      %1566 = vmatmul.mubr.bf16.gmra.mrb[0].mxu0 %v1487
      %v1567 = vpop.f32.mrb[0].mxu0
      %v1568 = vadd.f32 0.0, %v1567
      %v1569 = vpop.f32.mrb[0].mxu0
      %v1570 = vpop.f32.mrb[0].mxu0
      %v1571 = vpop.f32.mrb[0].mxu0
      %1572 = vmatprep.mubr.bf16.mxu0 0
      %1573 = vmatmul.mubr.bf16.gmra.mrb[0].mxu0 %v1490
      %v1574 = vpop.f32.mrb[0].mxu0
      %v1575 = vadd.f32 0.0, %v1574
      %v1576 = vpop.f32.mrb[0].mxu0
      %v1577 = vpop.f32.mrb[0].mxu0
      %v1578 = vpop.f32.mrb[0].mxu0
      %1579 = vmatprep.mubr.bf16.mxu0 0
      %1580 = vmatmul.mubr.bf16.gmra.mrb[0].mxu0 %v1493
      %v1581 = vpop.f32.mrb[0].mxu0
      %v1582 = vadd.f32 0.0, %v1581
      %v1583 = vpop.f32.mrb[0].mxu0
      %v1584 = vpop.f32.mrb[0].mxu0
      %v1585 = vpop.f32.mrb[0].mxu0
      %1586 = vmatprep.mubr.bf16.mxu0 0
      %1587 = vmatmul.mubr.bf16.gmra.mrb[0].mxu0 %v1496
      %v1588 = vpop.f32.mrb[0].mxu0
      %v1589 = vpop.f32.mrb[0].mxu0
      %v1590 = vpop.f32.mrb[0].mxu0
      %v1591 = vpop.f32.mrb[0].mxu0
      %1592 = vdwg.mxu0
      %v1593 = vmul.f32 %v1533, %v766
      %v1594 = vmul.f32 %v1540, %v766
      %v1595 = vmul.f32 %v1547, %v766
      %v1596 = vmul.f32 %v1554, %v766
      %v1597 = vmul.f32 %v1561, %v766
      %v1598 = vmul.f32 %v1568, %v766
      %v1599 = vmul.f32 %v1575, %v766
      %v1600 = vmul.f32 %v1582, %v766
      %v1601 = vadd.f32 %v1593, %v791
      %v1602 = vadd.f32 %v1594, %v791
      %v1603 = vadd.f32 %v1595, %v791
      %v1604 = vadd.f32 %v1596, %v791
      %v1605 = vadd.f32 %v1597, %v791
      %v1606 = vadd.f32 %v1598, %v791
      %v1607 = vadd.f32 %v1599, %v791
      %v1608 = vadd.f32 %v1600, %v791
      %v1609 = vmax.f32 %v1601, 0.0
      %v1610 = vmax.f32 %v1602, 0.0
      %v1611 = vmax.f32 %v1603, 0.0
      %v1612 = vmax.f32 %v1604, 0.0
      %v1613 = vmax.f32 %v1605, 0.0
      %v1614 = vmax.f32 %v1606, 0.0
      %v1615 = vmax.f32 %v1607, 0.0
      %v1616 = vmax.f32 %v1608, 0.0
      %v1617 = vmul.f32 %v1609, %v834
      %v1618 = vmul.f32 %v1610, %v834
      %v1619 = vmul.f32 %v1611, %v834
      %v1620 = vmul.f32 %v1612, %v834
      %v1621 = vmul.f32 %v1613, %v834
      %v1622 = vmul.f32 %v1614, %v834
      %v1623 = vmul.f32 %v1615, %v834
      %v1624 = vmul.f32 %v1616, %v834
      %v1625 = vadd.f32 %v1617, %v859
      %v1626 = vadd.f32 %v1618, %v859
      %v1627 = vadd.f32 %v1619, %v859
      %v1628 = vadd.f32 %v1620, %v859
      %v1629 = vadd.f32 %v1621, %v859
      %v1630 = vadd.f32 %v1622, %v859
      %v1631 = vadd.f32 %v1623, %v859
      %v1632 = vadd.f32 %v1624, %v859
      %v1633 = vsel %vm1145, %v1625, 0.0
      %v1634 = vsel %vm1145, %v1626, 0.0
      %v1635 = vsel %vm1145, %v1627, 0.0
      %v1636 = vsel %vm1145, %v1628, 0.0
      %v1637 = vsel %vm1145, %v1629, 0.0
      %v1638 = vsel %vm1145, %v1630, 0.0
      %v1639 = vsel %vm1145, %v1631, 0.0
      %v1640 = vsel %vm1145, %v1632, 0.0
      %vm1657 = vcmask 1046528
      %v1658 = vrot.slane %v904, 1
      %v1659 = vrot.slane %v905, 1
      %v1660 = vsel %vm1657, %v1658, %v1659
      %v1661 = vrot.slane %v906, 1
      %v1662 = vrot.slane %v907, 1
      %v1663 = vsel %vm1657, %v1661, %v1662
      %v1664 = vrot.slane %v908, 1
      %v1665 = vrot.slane %v909, 1
      %v1666 = vsel %vm1657, %v1664, %v1665
      %v1667 = vrot.slane %v910, 1
      %v1668 = vrot.slane %v911, 1
      %v1669 = vsel %vm1657, %v1667, %v1668
      %v1670 = vrot.slane %v912, 1
      %v1671 = vrot.slane %v913, 1
      %v1672 = vsel %vm1657, %v1670, %v1671
      %v1673 = vrot.slane %v914, 1
      %v1674 = vrot.slane %v915, 1
      %v1675 = vsel %vm1657, %v1673, %v1674
      %v1676 = vrot.slane %v916, 1
      %v1677 = vrot.slane %v917, 1
      %v1678 = vsel %vm1657, %v1676, %v1677
      %v1679 = vrot.slane %v918, 1
      %v1680 = vrot.slane %v919, 1
      %v1681 = vsel %vm1657, %v1679, %v1680
      %v1706 = vrot.slane %v1410, 1
      %v1707 = vrot.slane %v1411, 1
      %v1708 = vsel %vm1657, %v1706, %v1707
      %v1709 = vrot.slane %v1412, 1
      %v1710 = vrot.slane %v1413, 1
      %v1711 = vsel %vm1657, %v1709, %v1710
      %v1712 = vrot.slane %v1414, 1
      %v1713 = vrot.slane %v1415, 1
      %v1714 = vsel %vm1657, %v1712, %v1713
      %v1715 = vrot.slane %v1416, 1
      %v1716 = vrot.slane %v1417, 1
      %v1717 = vsel %vm1657, %v1715, %v1716
      %v1718 = vrot.slane %v1418, 1
      %v1719 = vrot.slane %v1419, 1
      %v1720 = vsel %vm1657, %v1718, %v1719
      %v1721 = vrot.slane %v1420, 1
      %v1722 = vrot.slane %v1421, 1
      %v1723 = vsel %vm1657, %v1721, %v1722
      %v1724 = vrot.slane %v1422, 1
      %v1725 = vrot.slane %v1423, 1
      %v1726 = vsel %vm1657, %v1724, %v1725
      %v1727 = vrot.slane %v1424, 1
      %v1728 = vrot.slane %v1425, 1
      %v1729 = vsel %vm1657, %v1727, %v1728
      %v1740 = vrot.slane %v920, 1
      %v1741 = vrot.slane %v921, 1
      %v1742 = vsel %vm1657, %v1740, %v1741
      %v1744 = vpack.c.bf16 %v906, %v904
      %v1745 = vpack.c.bf16 %v1147, %v1146
      %v1746 = vpack.c.bf16 %v1663, %v1660
      %v1747 = vpack.c.bf16 %v1412, %v1410
      %v1748 = vpack.c.bf16 %v1634, %v1633
      %v1749 = vpack.c.bf16 %v1711, %v1708
      %v1750 = vpack.c.bf16 %v908, %v906
      %v1751 = vpack.c.bf16 %v1148, %v1147
      %v1752 = vpack.c.bf16 %v1666, %v1663
      %v1753 = vpack.c.bf16 %v910, %v908
      %v1754 = vpack.c.bf16 %v1149, %v1148
      %v1755 = vpack.c.bf16 %v1669, %v1666
      %v1756 = vpack.c.bf16 %v1416, %v1414
      %v1757 = vpack.c.bf16 %v1636, %v1635
      %v1758 = vpack.c.bf16 %v1717, %v1714
      %v1759 = vpack.c.bf16 %v912, %v910
      %v1760 = vpack.c.bf16 %v1150, %v1149
      %v1761 = vpack.c.bf16 %v1672, %v1669
      %v1762 = vpack.c.bf16 %v914, %v912
      %v1763 = vpack.c.bf16 %v1151, %v1150
      %v1764 = vpack.c.bf16 %v1675, %v1672
      %v1765 = vpack.c.bf16 %v1420, %v1418
      %v1766 = vpack.c.bf16 %v1638, %v1637
      %v1767 = vpack.c.bf16 %v1723, %v1720
      %v1768 = vpack.c.bf16 %v916, %v914
      %v1769 = vpack.c.bf16 %v1152, %v1151
      %v1770 = vpack.c.bf16 %v1678, %v1675
      %v1771 = vpack.c.bf16 %v918, %v916
      %v1772 = vpack.c.bf16 %v1153, %v1152
      %v1773 = vpack.c.bf16 %v1681, %v1678
      %v1774 = vpack.c.bf16 %v1424, %v1422
      %v1775 = vpack.c.bf16 %v1640, %v1639
      %v1776 = vpack.c.bf16 %v1729, %v1726
      %v1777 = vpack.c.bf16 %v920, %v918
      %v1778 = vpack.c.bf16 %v1154, %v1153
      %v1779 = vpack.c.bf16 %v1742, %v1681
      %v1780 = vld [vmem:[%s7] sm:$0xf]
      %v1781 = vld [vmem:[%s7 + $0x4] sm:$0xf]
      %v1782 = vld [vmem:[%s7 + $0x8] sm:$0xf]
      %v1783 = vld [vmem:[%s7 + $0xc] sm:$0xf]
      %v1784 = vld [vmem:[%s7 + $0x10] sm:$0xf]
      %v1785 = vld [vmem:[%s7 + $0x14] sm:$0xf]
      %v1786 = vld [vmem:[%s7 + $0x18] sm:$0xf]
      %v1787 = vld [vmem:[%s7 + $0x1c] sm:$0xf]
      %v1788 = vld [vmem:[%s7 + $0x20] sm:$0xf]
      %v1789 = vld [vmem:[%s7 + $0x24] sm:$0xf]
      %v1790 = vld [vmem:[%s7 + $0x28] sm:$0xf]
      %v1791 = vld [vmem:[%s7 + $0x2c] sm:$0xf]
      %v1792 = vld [vmem:[%s7 + $0x30] sm:$0xf]
      %v1793 = vld [vmem:[%s7 + $0x34] sm:$0xf]
      %v1794 = vld [vmem:[%s7 + $0x38] sm:$0xf]
      %v1795 = vld [vmem:[%s7 + $0x3c] sm:$0xf]
      %v1796 = vld [vmem:[%s7 + $0x40] sm:$0xf]
      %v1797 = vld [vmem:[%s7 + $0x44] sm:$0xf]
      %v1798 = vld [vmem:[%s7 + $0x48] sm:$0xf]
      %v1799 = vld [vmem:[%s7 + $0x4c] sm:$0xf]
      %v1800 = vld [vmem:[%s7 + $0x50] sm:$0xf]
      %v1801 = vld [vmem:[%s7 + $0x54] sm:$0xf]
      %v1802 = vld [vmem:[%s7 + $0x58] sm:$0xf]
      %v1803 = vld [vmem:[%s7 + $0x5c] sm:$0xf]
      %v1804 = vld [vmem:[%s7 + $0x60] sm:$0xf]
      %v1805 = vld [vmem:[%s7 + $0x64] sm:$0xf]
      %v1806 = vld [vmem:[%s7 + $0x68] sm:$0xf]
      %v1807 = vld [vmem:[%s7 + $0x6c] sm:$0xf]
      %v1808 = vld [vmem:[%s7 + $0x70] sm:$0xf]
      %v1809 = vld [vmem:[%s7 + $0x74] sm:$0xf]
      %v1810 = vld [vmem:[%s7 + $0x78] sm:$0xf]
      %v1811 = vld [vmem:[%s7 + $0x7c] sm:$0xf]
      %v1812 = vld [vmem:[%s7 + $0x80] sm:$0xf]
      %v1813 = vld [vmem:[%s7 + $0x84] sm:$0xf]
      %v1814 = vld [vmem:[%s7 + $0x88] sm:$0xf]
      %v1815 = vld [vmem:[%s7 + $0x8c] sm:$0xf]
      %v1816 = vld [vmem:[%s7 + $0x90] sm:$0xf]
      %v1817 = vld [vmem:[%s7 + $0x94] sm:$0xf]
      %v1818 = vld [vmem:[%s7 + $0x98] sm:$0xf]
      %v1819 = vld [vmem:[%s7 + $0x9c] sm:$0xf]
      %v1820 = vld [vmem:[%s7 + $0xa0] sm:$0xf]
      %v1821 = vld [vmem:[%s7 + $0xa4] sm:$0xf]
      %v1822 = vld [vmem:[%s7 + $0xa8] sm:$0xf]
      %v1823 = vld [vmem:[%s7 + $0xac] sm:$0xf]
      %v1824 = vld [vmem:[%s7 + $0xb0] sm:$0xf]
      %v1825 = vld [vmem:[%s7 + $0xb4] sm:$0xf]
      %v1826 = vld [vmem:[%s7 + $0xb8] sm:$0xf]
      %v1827 = vld [vmem:[%s7 + $0xbc] sm:$0xf]
      %v1828 = vld [vmem:[%s7 + $0xc0] sm:$0xf]
      %v1829 = vld [vmem:[%s7 + $0xc4] sm:$0xf]
      %v1830 = vld [vmem:[%s7 + $0xc8] sm:$0xf]
      %v1831 = vld [vmem:[%s7 + $0xcc] sm:$0xf]
      %v1832 = vld [vmem:[%s7 + $0xd0] sm:$0xf]
      %v1833 = vld [vmem:[%s7 + $0xd4] sm:$0xf]
      %v1834 = vld [vmem:[%s7 + $0xd8] sm:$0xf]
      %v1835 = vld [vmem:[%s7 + $0xdc] sm:$0xf]
      %v1836 = vld [vmem:[%s7 + $0xe0] sm:$0xf]
      %v1837 = vld [vmem:[%s7 + $0xe4] sm:$0xf]
      %v1838 = vld [vmem:[%s7 + $0xe8] sm:$0xf]
      %v1839 = vld [vmem:[%s7 + $0xec] sm:$0xf]
      %v1840 = vld [vmem:[%s7 + $0xf0] sm:$0xf]
      %v1841 = vld [vmem:[%s7 + $0xf4] sm:$0xf]
      %v1842 = vld [vmem:[%s7 + $0xf8] sm:$0xf]
      %v1843 = vld [vmem:[%s7 + $0xfc] sm:$0xf]
      %v1844 = vld [vmem:[%s7 + $0x100] sm:$0xf]
      %v1845 = vld [vmem:[%s7 + $0x104] sm:$0xf]
      %v1846 = vld [vmem:[%s7 + $0x108] sm:$0xf]
      %v1847 = vld [vmem:[%s7 + $0x10c] sm:$0xf]
      %v1848 = vld [vmem:[%s7 + $0x110] sm:$0xf]
      %v1849 = vld [vmem:[%s7 + $0x114] sm:$0xf]
      %v1850 = vld [vmem:[%s7 + $0x118] sm:$0xf]
      %v1851 = vld [vmem:[%s7 + $0x11c] sm:$0xf]
      %v1852 = vld [vmem:[%s7 + $0x120] sm:$0xf]
      %v1853 = vld [vmem:[%s7 + $0x124] sm:$0xf]
      %v1854 = vld [vmem:[%s7 + $0x128] sm:$0xf]
      %v1855 = vld [vmem:[%s7 + $0x12c] sm:$0xf]
      %v1856 = vld [vmem:[%s7 + $0x130] sm:$0xf]
      %v1857 = vld [vmem:[%s7 + $0x134] sm:$0xf]
      %v1858 = vld [vmem:[%s7 + $0x138] sm:$0xf]
      %v1859 = vld [vmem:[%s7 + $0x13c] sm:$0xf]
      %v1860 = vld [vmem:[%s7 + $0x140] sm:$0xf]
      %v1861 = vld [vmem:[%s7 + $0x144] sm:$0xf]
      %v1862 = vld [vmem:[%s7 + $0x148] sm:$0xf]
      %v1863 = vld [vmem:[%s7 + $0x14c] sm:$0xf]
      %v1864 = vld [vmem:[%s7 + $0x150] sm:$0xf]
      %v1865 = vld [vmem:[%s7 + $0x154] sm:$0xf]
      %v1866 = vld [vmem:[%s7 + $0x158] sm:$0xf]
      %v1867 = vld [vmem:[%s7 + $0x15c] sm:$0xf]
      %v1868 = vld [vmem:[%s7 + $0x160] sm:$0xf]
      %v1869 = vld [vmem:[%s7 + $0x164] sm:$0xf]
      %v1870 = vld [vmem:[%s7 + $0x168] sm:$0xf]
      %v1871 = vld [vmem:[%s7 + $0x16c] sm:$0xf]
      %v1872 = vld [vmem:[%s7 + $0x170] sm:$0xf]
      %v1873 = vld [vmem:[%s7 + $0x174] sm:$0xf]
      %v1874 = vld [vmem:[%s7 + $0x178] sm:$0xf]
      %v1875 = vld [vmem:[%s7 + $0x17c] sm:$0xf]
      %v1876 = vld [vmem:[%s7 + $0x180] sm:$0xf]
      %v1877 = vld [vmem:[%s7 + $0x184] sm:$0xf]
      %v1878 = vld [vmem:[%s7 + $0x188] sm:$0xf]
      %v1879 = vld [vmem:[%s7 + $0x18c] sm:$0xf]
      %v1880 = vld [vmem:[%s7 + $0x190] sm:$0xf]
      %v1881 = vld [vmem:[%s7 + $0x194] sm:$0xf]
      %v1882 = vld [vmem:[%s7 + $0x198] sm:$0xf]
      %v1883 = vld [vmem:[%s7 + $0x19c] sm:$0xf]
      %v1884 = vld [vmem:[%s7 + $0x1a0] sm:$0xf]
      %v1885 = vld [vmem:[%s7 + $0x1a4] sm:$0xf]
      %v1886 = vld [vmem:[%s7 + $0x1a8] sm:$0xf]
      %v1887 = vld [vmem:[%s7 + $0x1ac] sm:$0xf]
      %v1888 = vld [vmem:[%s7 + $0x1b0] sm:$0xf]
      %v1889 = vld [vmem:[%s7 + $0x1b4] sm:$0xf]
      %v1890 = vld [vmem:[%s7 + $0x1b8] sm:$0xf]
      %v1891 = vld [vmem:[%s7 + $0x1bc] sm:$0xf]
      %v1892 = vld [vmem:[%s7 + $0x1c0] sm:$0xf]
      %v1893 = vld [vmem:[%s7 + $0x1c4] sm:$0xf]
      %v1894 = vld [vmem:[%s7 + $0x1c8] sm:$0xf]
      %v1895 = vld [vmem:[%s7 + $0x1cc] sm:$0xf]
      %v1896 = vld [vmem:[%s7 + $0x1d0] sm:$0xf]
      %v1897 = vld [vmem:[%s7 + $0x1d4] sm:$0xf]
      %v1898 = vld [vmem:[%s7 + $0x1d8] sm:$0xf]
      %v1899 = vld [vmem:[%s7 + $0x1dc] sm:$0xf]
      %v1900 = vld [vmem:[%s7 + $0x1e0] sm:$0xf]
      %v1901 = vld [vmem:[%s7 + $0x1e4] sm:$0xf]
      %v1902 = vld [vmem:[%s7 + $0x1e8] sm:$0xf]
      %v1903 = vld [vmem:[%s7 + $0x1ec] sm:$0xf]
      %v1904 = vld [vmem:[%s7 + $0x1f0] sm:$0xf]
      %v1905 = vld [vmem:[%s7 + $0x1f4] sm:$0xf]
      %v1906 = vld [vmem:[%s7 + $0x1f8] sm:$0xf]
      %v1907 = vld [vmem:[%s7 + $0x1fc] sm:$0xf]
      %v1908 = vld [vmem:[%s7 + $0x200] sm:$0xf]
      %v1909 = vld [vmem:[%s7 + $0x204] sm:$0xf]
      %v1910 = vld [vmem:[%s7 + $0x208] sm:$0xf]
      %v1911 = vld [vmem:[%s7 + $0x20c] sm:$0xf]
      %v1912 = vld [vmem:[%s7 + $0x210] sm:$0xf]
      %v1913 = vld [vmem:[%s7 + $0x214] sm:$0xf]
      %v1914 = vld [vmem:[%s7 + $0x218] sm:$0xf]
      %v1915 = vld [vmem:[%s7 + $0x21c] sm:$0xf]
      %v1916 = vld [vmem:[%s7 + $0x220] sm:$0xf]
      %v1917 = vld [vmem:[%s7 + $0x224] sm:$0xf]
      %v1918 = vld [vmem:[%s7 + $0x228] sm:$0xf]
      %v1919 = vld [vmem:[%s7 + $0x22c] sm:$0xf]
      %v1920 = vld [vmem:[%s7 + $0x230] sm:$0xf]
      %v1921 = vld [vmem:[%s7 + $0x234] sm:$0xf]
      %v1922 = vld [vmem:[%s7 + $0x238] sm:$0xf]
      %v1923 = vld [vmem:[%s7 + $0x23c] sm:$0xf]
      %v2068 = vunpack.c.l.b16 %v1780
      %v2069 = vunpack.c.l.b16 %v1781
      %v2070 = vunpack.c.l.b16 %v1782
      %v2071 = vunpack.c.l.b16 %v1783
      %v2072 = vunpack.c.l.b16 %v1784
      %v2073 = vunpack.c.l.b16 %v1785
      %v2074 = vunpack.c.l.b16 %v1786
      %v2075 = vunpack.c.l.b16 %v1787
      %v2076 = vunpack.c.l.b16 %v1788
      %v2077 = vunpack.c.l.b16 %v1789
      %v2078 = vunpack.c.l.b16 %v1790
      %v2079 = vunpack.c.l.b16 %v1791
      %v2080 = vunpack.c.l.b16 %v1792
      %v2081 = vunpack.c.l.b16 %v1793
      %v2082 = vunpack.c.l.b16 %v1794
      %v2083 = vunpack.c.l.b16 %v1795
      %v2084 = vunpack.c.l.b16 %v1796
      %v2085 = vunpack.c.l.b16 %v1797
      %v2086 = vunpack.c.l.b16 %v1798
      %v2087 = vunpack.c.l.b16 %v1799
      %v2088 = vunpack.c.l.b16 %v1800
      %v2089 = vunpack.c.l.b16 %v1801
      %v2090 = vunpack.c.l.b16 %v1802
      %v2091 = vunpack.c.l.b16 %v1803
      %v2092 = vunpack.c.l.b16 %v1804
      %v2093 = vunpack.c.l.b16 %v1805
      %v2094 = vunpack.c.l.b16 %v1806
      %v2095 = vunpack.c.l.b16 %v1807
      %v2096 = vunpack.c.l.b16 %v1808
      %v2097 = vunpack.c.l.b16 %v1809
      %v2098 = vunpack.c.l.b16 %v1810
      %v2099 = vunpack.c.l.b16 %v1811
      %v2100 = vunpack.c.l.b16 %v1812
      %v2101 = vunpack.c.l.b16 %v1813
      %v2102 = vunpack.c.l.b16 %v1814
      %v2103 = vunpack.c.l.b16 %v1815
      %v2104 = vunpack.c.l.b16 %v1816
      %v2105 = vunpack.c.l.b16 %v1817
      %v2106 = vunpack.c.l.b16 %v1818
      %v2107 = vunpack.c.l.b16 %v1819
      %v2108 = vunpack.c.l.b16 %v1820
      %v2109 = vunpack.c.l.b16 %v1821
      %v2110 = vunpack.c.l.b16 %v1822
      %v2111 = vunpack.c.l.b16 %v1823
      %v2112 = vunpack.c.l.b16 %v1824
      %v2113 = vunpack.c.l.b16 %v1825
      %v2114 = vunpack.c.l.b16 %v1826
      %v2115 = vunpack.c.l.b16 %v1827
      %v2116 = vunpack.c.l.b16 %v1828
      %v2117 = vunpack.c.l.b16 %v1829
      %v2118 = vunpack.c.l.b16 %v1830
      %v2119 = vunpack.c.l.b16 %v1831
      %v2120 = vunpack.c.l.b16 %v1832
      %v2121 = vunpack.c.l.b16 %v1833
      %v2122 = vunpack.c.l.b16 %v1834
      %v2123 = vunpack.c.l.b16 %v1835
      %v2124 = vunpack.c.l.b16 %v1836
      %v2125 = vunpack.c.l.b16 %v1837
      %v2126 = vunpack.c.l.b16 %v1838
      %v2127 = vunpack.c.l.b16 %v1839
      %v2128 = vunpack.c.l.b16 %v1840
      %v2129 = vunpack.c.l.b16 %v1841
      %v2130 = vunpack.c.l.b16 %v1842
      %v2131 = vunpack.c.l.b16 %v1843
      %v2132 = vunpack.c.l.b16 %v1844
      %v2133 = vunpack.c.l.b16 %v1845
      %v2134 = vunpack.c.l.b16 %v1846
      %v2135 = vunpack.c.l.b16 %v1847
      %v2136 = vunpack.c.l.b16 %v1848
      %v2137 = vunpack.c.l.b16 %v1849
      %v2138 = vunpack.c.l.b16 %v1850
      %v2139 = vunpack.c.l.b16 %v1851
      %v2140 = vunpack.c.l.b16 %v1852
      %v2141 = vunpack.c.l.b16 %v1853
      %v2142 = vunpack.c.l.b16 %v1854
      %v2143 = vunpack.c.l.b16 %v1855
      %v2144 = vunpack.c.l.b16 %v1856
      %v2145 = vunpack.c.l.b16 %v1857
      %v2146 = vunpack.c.l.b16 %v1858
      %v2147 = vunpack.c.l.b16 %v1859
      %v2148 = vunpack.c.l.b16 %v1860
      %v2149 = vunpack.c.l.b16 %v1861
      %v2150 = vunpack.c.l.b16 %v1862
      %v2151 = vunpack.c.l.b16 %v1863
      %v2152 = vunpack.c.l.b16 %v1864
      %v2153 = vunpack.c.l.b16 %v1865
      %v2154 = vunpack.c.l.b16 %v1866
      %v2155 = vunpack.c.l.b16 %v1867
      %v2156 = vunpack.c.l.b16 %v1868
      %v2157 = vunpack.c.l.b16 %v1869
      %v2158 = vunpack.c.l.b16 %v1870
      %v2159 = vunpack.c.l.b16 %v1871
      %v2160 = vunpack.c.l.b16 %v1872
      %v2161 = vunpack.c.l.b16 %v1873
      %v2162 = vunpack.c.l.b16 %v1874
      %v2163 = vunpack.c.l.b16 %v1875
      %v2164 = vunpack.c.l.b16 %v1876
      %v2165 = vunpack.c.l.b16 %v1877
      %v2166 = vunpack.c.l.b16 %v1878
      %v2167 = vunpack.c.l.b16 %v1879
      %v2168 = vunpack.c.l.b16 %v1880
      %v2169 = vunpack.c.l.b16 %v1881
      %v2170 = vunpack.c.l.b16 %v1882
      %v2171 = vunpack.c.l.b16 %v1883
      %v2172 = vunpack.c.l.b16 %v1884
      %v2173 = vunpack.c.l.b16 %v1885
      %v2174 = vunpack.c.l.b16 %v1886
      %v2175 = vunpack.c.l.b16 %v1887
      %v2176 = vunpack.c.l.b16 %v1888
      %v2177 = vunpack.c.l.b16 %v1889
      %v2178 = vunpack.c.l.b16 %v1890
      %v2179 = vunpack.c.l.b16 %v1891
      %v2180 = vunpack.c.l.b16 %v1892
      %v2181 = vunpack.c.l.b16 %v1893
      %v2182 = vunpack.c.l.b16 %v1894
      %v2183 = vunpack.c.l.b16 %v1895
      %v2184 = vunpack.c.l.b16 %v1896
      %v2185 = vunpack.c.l.b16 %v1897
      %v2186 = vunpack.c.l.b16 %v1898
      %v2187 = vunpack.c.l.b16 %v1899
      %v2188 = vunpack.c.l.b16 %v1900
      %v2189 = vunpack.c.l.b16 %v1901
      %v2190 = vunpack.c.l.b16 %v1902
      %v2191 = vunpack.c.l.b16 %v1903
      %v2192 = vunpack.c.l.b16 %v1904
      %v2193 = vunpack.c.l.b16 %v1905
      %v2194 = vunpack.c.l.b16 %v1906
      %v2195 = vunpack.c.l.b16 %v1907
      %v2196 = vunpack.c.l.b16 %v1908
      %v2197 = vunpack.c.l.b16 %v1909
      %v2198 = vunpack.c.l.b16 %v1910
      %v2199 = vunpack.c.l.b16 %v1911
      %v2200 = vunpack.c.l.b16 %v1912
      %v2201 = vunpack.c.l.b16 %v1913
      %v2202 = vunpack.c.l.b16 %v1914
      %v2203 = vunpack.c.l.b16 %v1915
      %v2204 = vunpack.c.l.b16 %v1916
      %v2205 = vunpack.c.l.b16 %v1917
      %v2206 = vunpack.c.l.b16 %v1918
      %v2207 = vunpack.c.l.b16 %v1919
      %v2208 = vunpack.c.l.b16 %v1920
      %v2209 = vunpack.c.l.b16 %v1921
      %v2210 = vunpack.c.l.b16 %v1922
      %v2211 = vunpack.c.l.b16 %v1923
      %v2212 = vpack.c.b16 %v2069, %v2068
      %v2213 = vpack.c.b16 %v2071, %v2070
      %v2214 = vpack.c.b16 %v2073, %v2072
      %v2215 = vpack.c.b16 %v2075, %v2074
      %v2216 = vpack.c.b16 %v2077, %v2076
      %v2217 = vpack.c.b16 %v2079, %v2078
      %v2218 = vpack.c.b16 %v2081, %v2080
      %v2219 = vpack.c.b16 %v2083, %v2082
      %v2220 = vpack.c.b16 %v2085, %v2084
      %v2221 = vpack.c.b16 %v2087, %v2086
      %v2222 = vpack.c.b16 %v2089, %v2088
      %v2223 = vpack.c.b16 %v2091, %v2090
      %v2224 = vpack.c.b16 %v2093, %v2092
      %v2225 = vpack.c.b16 %v2095, %v2094
      %v2226 = vpack.c.b16 %v2097, %v2096
      %v2227 = vpack.c.b16 %v2099, %v2098
      %v2228 = vpack.c.b16 %v2101, %v2100
      %v2229 = vpack.c.b16 %v2103, %v2102
      %v2230 = vpack.c.b16 %v2105, %v2104
      %v2231 = vpack.c.b16 %v2107, %v2106
      %v2232 = vpack.c.b16 %v2109, %v2108
      %v2233 = vpack.c.b16 %v2111, %v2110
      %v2234 = vpack.c.b16 %v2113, %v2112
      %v2235 = vpack.c.b16 %v2115, %v2114
      %v2236 = vpack.c.b16 %v2117, %v2116
      %v2237 = vpack.c.b16 %v2119, %v2118
      %v2238 = vpack.c.b16 %v2121, %v2120
      %v2239 = vpack.c.b16 %v2123, %v2122
      %v2240 = vpack.c.b16 %v2125, %v2124
      %v2241 = vpack.c.b16 %v2127, %v2126
      %v2242 = vpack.c.b16 %v2129, %v2128
      %v2243 = vpack.c.b16 %v2131, %v2130
      %v2244 = vpack.c.b16 %v2133, %v2132
      %v2245 = vpack.c.b16 %v2135, %v2134
      %v2246 = vpack.c.b16 %v2137, %v2136
      %v2247 = vpack.c.b16 %v2139, %v2138
      %v2248 = vpack.c.b16 %v2141, %v2140
      %v2249 = vpack.c.b16 %v2143, %v2142
      %v2250 = vpack.c.b16 %v2145, %v2144
      %v2251 = vpack.c.b16 %v2147, %v2146
      %v2252 = vpack.c.b16 %v2149, %v2148
      %v2253 = vpack.c.b16 %v2151, %v2150
      %v2254 = vpack.c.b16 %v2153, %v2152
      %v2255 = vpack.c.b16 %v2155, %v2154
      %v2256 = vpack.c.b16 %v2157, %v2156
      %v2257 = vpack.c.b16 %v2159, %v2158
      %v2258 = vpack.c.b16 %v2161, %v2160
      %v2259 = vpack.c.b16 %v2163, %v2162
      %v2260 = vpack.c.b16 %v2165, %v2164
      %v2261 = vpack.c.b16 %v2167, %v2166
      %v2262 = vpack.c.b16 %v2169, %v2168
      %v2263 = vpack.c.b16 %v2171, %v2170
      %v2264 = vpack.c.b16 %v2173, %v2172
      %v2265 = vpack.c.b16 %v2175, %v2174
      %v2266 = vpack.c.b16 %v2177, %v2176
      %v2267 = vpack.c.b16 %v2179, %v2178
      %v2268 = vpack.c.b16 %v2181, %v2180
      %v2269 = vpack.c.b16 %v2183, %v2182
      %v2270 = vpack.c.b16 %v2185, %v2184
      %v2271 = vpack.c.b16 %v2187, %v2186
      %v2272 = vpack.c.b16 %v2189, %v2188
      %v2273 = vpack.c.b16 %v2191, %v2190
      %v2274 = vpack.c.b16 %v2193, %v2192
      %v2275 = vpack.c.b16 %v2195, %v2194
      %v2276 = vpack.c.b16 %v2197, %v2196
      %v2277 = vpack.c.b16 %v2199, %v2198
      %v2278 = vpack.c.b16 %v2201, %v2200
      %v2279 = vpack.c.b16 %v2203, %v2202
      %v2280 = vpack.c.b16 %v2205, %v2204
      %v2281 = vpack.c.b16 %v2207, %v2206
      %v2282 = vpack.c.b16 %v2209, %v2208
      %v2283 = vpack.c.b16 %v2211, %v2210
      %2356 = vmatprep.subr.bf16.mxu0 0
      %2357 = vmatpush1.bf16.msra.mxu0 %v2212
      %2358 = vmatprep.subr.bf16.mxu0 0
      %2359 = vmatpush1.bf16.msra.mxu0 %v2213
      %2360 = vmatprep.subr.bf16.mxu0 0
      %2361 = vmatpush1.bf16.msra.mxu0 %v2214
      %2362 = vmatprep.subr.bf16.mxu0 0
      %2363 = vmatpush1.bf16.msra.mxu0 %v2215
      %2364 = vmatprep.subr.bf16.mxu0 0
      %2365 = vmatpush1.bf16.msra.mxu0 %v2216
      %2366 = vmatprep.subr.bf16.mxu0 0
      %2367 = vmatpush1.bf16.msra.mxu0 %v2217
      %2368 = vmatprep.subr.bf16.mxu0 0
      %2369 = vmatpush1.bf16.msra.mxu0 %v2218
      %2370 = vmatprep.subr.bf16.mxu0 0
      %2371 = vmatpush1.bf16.msra.mxu0 %v2219
      %2372 = vmatprep.subr.bf16.mxu0 0
      %2373 = vmatpush1.bf16.msra.mxu0 %v2220
      %2374 = vmatprep.subr.bf16.mxu0 0
      %2375 = vmatpush1.bf16.msra.mxu0 %v2221
      %2376 = vmatprep.subr.bf16.mxu0 0
      %2377 = vmatpush1.bf16.msra.mxu0 %v2222
      %2378 = vmatprep.subr.bf16.mxu0 0
      %2379 = vmatpush1.bf16.msra.mxu0 %v2223
      %2380 = vmatprep.subr.bf16.mxu0 0
      %2381 = vmatpush1.bf16.msra.mxu0 %v2224
      %2382 = vmatprep.subr.bf16.mxu0 0
      %2383 = vmatpush1.bf16.msra.mxu0 %v2225
      %2384 = vmatprep.subr.bf16.mxu0 0
      %2385 = vmatpush1.bf16.msra.mxu0 %v2226
      %2386 = vmatprep.subr.bf16.mxu0 0
      %2387 = vmatpush1.bf16.msra.mxu0 %v2227
      %2388 = vmatprep.mubr.bf16.mxu0 %v1745
      %2389 = vmatmul.mubr.bf16.gmra.mrb[0].mxu0 %v1744
      %v2390 = vpop.f32.mrb[0].mxu0
      %v2391 = vadd.f32 0.0, %v2390
      %v2392 = vpop.f32.mrb[0].mxu0
      %v2393 = vpop.f32.mrb[0].mxu0
      %v2394 = vadd.f32 0.0, %v2393
      %v2395 = vpop.f32.mrb[0].mxu0
      %2396 = vmatprep.mubr.bf16.mxu0 %v1754
      %2397 = vmatmul.mubr.bf16.gmra.mrb[0].mxu0 %v1753
      %v2398 = vpop.f32.mrb[0].mxu0
      %v2399 = vadd.f32 0.0, %v2398
      %v2400 = vpop.f32.mrb[0].mxu0
      %v2401 = vpop.f32.mrb[0].mxu0
      %v2402 = vadd.f32 0.0, %v2401
      %v2403 = vpop.f32.mrb[0].mxu0
      %2404 = vmatprep.mubr.bf16.mxu0 %v1763
      %2405 = vmatmul.mubr.bf16.gmra.mrb[0].mxu0 %v1762
      %v2406 = vpop.f32.mrb[0].mxu0
      %v2407 = vadd.f32 0.0, %v2406
      %v2408 = vpop.f32.mrb[0].mxu0
      %v2409 = vpop.f32.mrb[0].mxu0
      %v2410 = vadd.f32 0.0, %v2409
      %v2411 = vpop.f32.mrb[0].mxu0
      %2412 = vmatprep.mubr.bf16.mxu0 %v1772
      %2413 = vmatmul.mubr.bf16.gmra.mrb[0].mxu0 %v1771
      %v2414 = vpop.f32.mrb[0].mxu0
      %v2415 = vadd.f32 0.0, %v2414
      %v2416 = vpop.f32.mrb[0].mxu0
      %v2417 = vpop.f32.mrb[0].mxu0
      %v2418 = vadd.f32 0.0, %v2417
      %v2419 = vpop.f32.mrb[0].mxu0
      %2420 = vdwg.mxu0
      %2421 = vmatprep.subr.bf16.mxu0 0
      %2422 = vmatpush1.bf16.msra.mxu0 %v2228
      %2423 = vmatprep.subr.bf16.mxu0 0
      %2424 = vmatpush1.bf16.msra.mxu0 %v2229
      %2425 = vmatprep.subr.bf16.mxu0 0
      %2426 = vmatpush1.bf16.msra.mxu0 %v2230
      %2427 = vmatprep.subr.bf16.mxu0 0
      %2428 = vmatpush1.bf16.msra.mxu0 %v2231
      %2429 = vmatprep.subr.bf16.mxu0 0
      %2430 = vmatpush1.bf16.msra.mxu0 %v2232
      %2431 = vmatprep.subr.bf16.mxu0 0
      %2432 = vmatpush1.bf16.msra.mxu0 %v2233
      %2433 = vmatprep.subr.bf16.mxu0 0
      %2434 = vmatpush1.bf16.msra.mxu0 %v2234
      %2435 = vmatprep.subr.bf16.mxu0 0
      %2436 = vmatpush1.bf16.msra.mxu0 %v2235
      %2437 = vmatprep.subr.bf16.mxu0 0
      %2438 = vmatpush1.bf16.msra.mxu0 %v2236
      %2439 = vmatprep.subr.bf16.mxu0 0
      %2440 = vmatpush1.bf16.msra.mxu0 %v2237
      %2441 = vmatprep.subr.bf16.mxu0 0
      %2442 = vmatpush1.bf16.msra.mxu0 %v2238
      %2443 = vmatprep.subr.bf16.mxu0 0
      %2444 = vmatpush1.bf16.msra.mxu0 %v2239
      %2445 = vmatprep.subr.bf16.mxu0 0
      %2446 = vmatpush1.bf16.msra.mxu0 %v2240
      %2447 = vmatprep.subr.bf16.mxu0 0
      %2448 = vmatpush1.bf16.msra.mxu0 %v2241
      %2449 = vmatprep.subr.bf16.mxu0 0
      %2450 = vmatpush1.bf16.msra.mxu0 %v2242
      %2451 = vmatprep.subr.bf16.mxu0 0
      %2452 = vmatpush1.bf16.msra.mxu0 %v2243
      %2453 = vmatprep.mubr.bf16.mxu0 %v1747
      %2454 = vmatmul.mubr.bf16.gmra.mrb[0].mxu0 %v1746
      %v2455 = vpop.f32.mrb[0].mxu0
      %v2456 = vadd.f32 %v2391, %v2455
      %v2457 = vpop.f32.mrb[0].mxu0
      %v2458 = vpop.f32.mrb[0].mxu0
      %v2459 = vadd.f32 %v2394, %v2458
      %v2460 = vpop.f32.mrb[0].mxu0
      %2461 = vmatprep.mubr.bf16.mxu0 %v1756
      %2462 = vmatmul.mubr.bf16.gmra.mrb[0].mxu0 %v1755
      %v2463 = vpop.f32.mrb[0].mxu0
      %v2464 = vadd.f32 %v2399, %v2463
      %v2465 = vpop.f32.mrb[0].mxu0
      %v2466 = vpop.f32.mrb[0].mxu0
      %v2467 = vadd.f32 %v2402, %v2466
      %v2468 = vpop.f32.mrb[0].mxu0
      %2469 = vmatprep.mubr.bf16.mxu0 %v1765
      %2470 = vmatmul.mubr.bf16.gmra.mrb[0].mxu0 %v1764
      %v2471 = vpop.f32.mrb[0].mxu0
      %v2472 = vadd.f32 %v2407, %v2471
      %v2473 = vpop.f32.mrb[0].mxu0
      %v2474 = vpop.f32.mrb[0].mxu0
      %v2475 = vadd.f32 %v2410, %v2474
      %v2476 = vpop.f32.mrb[0].mxu0
      %2477 = vmatprep.mubr.bf16.mxu0 %v1774
      %2478 = vmatmul.mubr.bf16.gmra.mrb[0].mxu0 %v1773
      %v2479 = vpop.f32.mrb[0].mxu0
      %v2480 = vadd.f32 %v2415, %v2479
      %v2481 = vpop.f32.mrb[0].mxu0
      %v2482 = vpop.f32.mrb[0].mxu0
      %v2483 = vadd.f32 %v2418, %v2482
      %v2484 = vpop.f32.mrb[0].mxu0
      %2485 = vdwg.mxu0
      %2486 = vmatprep.subr.bf16.mxu0 0
      %2487 = vmatpush1.bf16.msra.mxu0 %v2244
      %2488 = vmatprep.subr.bf16.mxu0 0
      %2489 = vmatpush1.bf16.msra.mxu0 %v2245
      %2490 = vmatprep.subr.bf16.mxu0 0
      %2491 = vmatpush1.bf16.msra.mxu0 %v2246
      %2492 = vmatprep.subr.bf16.mxu0 0
      %2493 = vmatpush1.bf16.msra.mxu0 %v2247
      %2494 = vmatprep.subr.bf16.mxu0 0
      %2495 = vmatpush1.bf16.msra.mxu0 %v2248
      %2496 = vmatprep.subr.bf16.mxu0 0
      %2497 = vmatpush1.bf16.msra.mxu0 %v2249
      %2498 = vmatprep.subr.bf16.mxu0 0
      %2499 = vmatpush1.bf16.msra.mxu0 %v2250
      %2500 = vmatprep.subr.bf16.mxu0 0
      %2501 = vmatpush1.bf16.msra.mxu0 %v2251
      %2502 = vmatprep.subr.bf16.mxu0 0
      %2503 = vmatpush1.bf16.msra.mxu0 %v2252
      %2504 = vmatprep.subr.bf16.mxu0 0
      %2505 = vmatpush1.bf16.msra.mxu0 %v2253
      %2506 = vmatprep.subr.bf16.mxu0 0
      %2507 = vmatpush1.bf16.msra.mxu0 %v2254
      %2508 = vmatprep.subr.bf16.mxu0 0
      %2509 = vmatpush1.bf16.msra.mxu0 %v2255
      %2510 = vmatprep.subr.bf16.mxu0 0
      %2511 = vmatpush1.bf16.msra.mxu0 %v2256
      %2512 = vmatprep.subr.bf16.mxu0 0
      %2513 = vmatpush1.bf16.msra.mxu0 %v2257
      %2514 = vmatprep.subr.bf16.mxu0 0
      %2515 = vmatpush1.bf16.msra.mxu0 %v2258
      %2516 = vmatprep.subr.bf16.mxu0 0
      %2517 = vmatpush1.bf16.msra.mxu0 %v2259
      %2518 = vmatprep.mubr.bf16.mxu0 %v1749
      %2519 = vmatmul.mubr.bf16.gmra.mrb[0].mxu0 %v1748
      %v2520 = vpop.f32.mrb[0].mxu0
      %v2521 = vadd.f32 %v2456, %v2520
      %v2522 = vpop.f32.mrb[0].mxu0
      %v2523 = vpop.f32.mrb[0].mxu0
      %v2524 = vadd.f32 %v2459, %v2523
      %v2525 = vpop.f32.mrb[0].mxu0
      %2526 = vmatprep.mubr.bf16.mxu0 %v1758
      %2527 = vmatmul.mubr.bf16.gmra.mrb[0].mxu0 %v1757
      %v2528 = vpop.f32.mrb[0].mxu0
      %v2529 = vadd.f32 %v2464, %v2528
      %v2530 = vpop.f32.mrb[0].mxu0
      %v2531 = vpop.f32.mrb[0].mxu0
      %v2532 = vadd.f32 %v2467, %v2531
      %v2533 = vpop.f32.mrb[0].mxu0
      %2534 = vmatprep.mubr.bf16.mxu0 %v1767
      %2535 = vmatmul.mubr.bf16.gmra.mrb[0].mxu0 %v1766
      %v2536 = vpop.f32.mrb[0].mxu0
      %v2537 = vadd.f32 %v2472, %v2536
      %v2538 = vpop.f32.mrb[0].mxu0
      %v2539 = vpop.f32.mrb[0].mxu0
      %v2540 = vadd.f32 %v2475, %v2539
      %v2541 = vpop.f32.mrb[0].mxu0
      %2542 = vmatprep.mubr.bf16.mxu0 %v1776
      %2543 = vmatmul.mubr.bf16.gmra.mrb[0].mxu0 %v1775
      %v2544 = vpop.f32.mrb[0].mxu0
      %v2545 = vadd.f32 %v2480, %v2544
      %v2546 = vpop.f32.mrb[0].mxu0
      %v2547 = vpop.f32.mrb[0].mxu0
      %v2548 = vadd.f32 %v2483, %v2547
      %v2549 = vpop.f32.mrb[0].mxu0
      %2550 = vdwg.mxu0
      %2551 = vmatprep.subr.bf16.mxu0 0
      %2552 = vmatpush1.bf16.msra.mxu0 %v2260
      %2553 = vmatprep.subr.bf16.mxu0 0
      %2554 = vmatpush1.bf16.msra.mxu0 %v2261
      %2555 = vmatprep.subr.bf16.mxu0 0
      %2556 = vmatpush1.bf16.msra.mxu0 %v2262
      %2557 = vmatprep.subr.bf16.mxu0 0
      %2558 = vmatpush1.bf16.msra.mxu0 %v2263
      %2559 = vmatprep.subr.bf16.mxu0 0
      %2560 = vmatpush1.bf16.msra.mxu0 %v2264
      %2561 = vmatprep.subr.bf16.mxu0 0
      %2562 = vmatpush1.bf16.msra.mxu0 %v2265
      %2563 = vmatprep.subr.bf16.mxu0 0
      %2564 = vmatpush1.bf16.msra.mxu0 %v2266
      %2565 = vmatprep.subr.bf16.mxu0 0
      %2566 = vmatpush1.bf16.msra.mxu0 %v2267
      %2567 = vmatprep.subr.bf16.mxu0 0
      %2568 = vmatpush1.bf16.msra.mxu0 %v2268
      %2569 = vmatprep.subr.bf16.mxu0 0
      %2570 = vmatpush1.bf16.msra.mxu0 %v2269
      %2571 = vmatprep.subr.bf16.mxu0 0
      %2572 = vmatpush1.bf16.msra.mxu0 %v2270
      %2573 = vmatprep.subr.bf16.mxu0 0
      %2574 = vmatpush1.bf16.msra.mxu0 %v2271
      %2575 = vmatprep.subr.bf16.mxu0 0
      %2576 = vmatpush1.bf16.msra.mxu0 %v2272
      %2577 = vmatprep.subr.bf16.mxu0 0
      %2578 = vmatpush1.bf16.msra.mxu0 %v2273
      %2579 = vmatprep.subr.bf16.mxu0 0
      %2580 = vmatpush1.bf16.msra.mxu0 %v2274
      %2581 = vmatprep.subr.bf16.mxu0 0
      %2582 = vmatpush1.bf16.msra.mxu0 %v2275
      %2583 = vmatprep.mubr.bf16.mxu0 %v1751
      %2584 = vmatmul.mubr.bf16.gmra.mrb[0].mxu0 %v1750
      %v2585 = vpop.f32.mrb[0].mxu0
      %v2586 = vadd.f32 %v2521, %v2585
      %v2587 = vpop.f32.mrb[0].mxu0
      %v2588 = vpop.f32.mrb[0].mxu0
      %v2589 = vadd.f32 %v2524, %v2588
      %v2590 = vpop.f32.mrb[0].mxu0
      %2591 = vmatprep.mubr.bf16.mxu0 %v1760
      %2592 = vmatmul.mubr.bf16.gmra.mrb[0].mxu0 %v1759
      %v2593 = vpop.f32.mrb[0].mxu0
      %v2594 = vadd.f32 %v2529, %v2593
      %v2595 = vpop.f32.mrb[0].mxu0
      %v2596 = vpop.f32.mrb[0].mxu0
      %v2597 = vadd.f32 %v2532, %v2596
      %v2598 = vpop.f32.mrb[0].mxu0
      %2599 = vmatprep.mubr.bf16.mxu0 %v1769
      %2600 = vmatmul.mubr.bf16.gmra.mrb[0].mxu0 %v1768
      %v2601 = vpop.f32.mrb[0].mxu0
      %v2602 = vadd.f32 %v2537, %v2601
      %v2603 = vpop.f32.mrb[0].mxu0
      %v2604 = vpop.f32.mrb[0].mxu0
      %v2605 = vadd.f32 %v2540, %v2604
      %v2606 = vpop.f32.mrb[0].mxu0
      %2607 = vmatprep.mubr.bf16.mxu0 %v1778
      %2608 = vmatmul.mubr.bf16.gmra.mrb[0].mxu0 %v1777
      %v2609 = vpop.f32.mrb[0].mxu0
      %v2610 = vadd.f32 %v2545, %v2609
      %v2611 = vpop.f32.mrb[0].mxu0
      %v2612 = vpop.f32.mrb[0].mxu0
      %v2613 = vadd.f32 %v2548, %v2612
      %v2614 = vpop.f32.mrb[0].mxu0
      %2615 = vdwg.mxu0
      %2616 = vmatprep.subr.bf16.mxu0 0
      %2617 = vmatpush1.bf16.msra.mxu0 %v2276
      %2618 = vmatprep.subr.bf16.mxu0 0
      %2619 = vmatpush1.bf16.msra.mxu0 %v2277
      %2620 = vmatprep.subr.bf16.mxu0 0
      %2621 = vmatpush1.bf16.msra.mxu0 %v2278
      %2622 = vmatprep.subr.bf16.mxu0 0
      %2623 = vmatpush1.bf16.msra.mxu0 %v2279
      %2624 = vmatprep.subr.bf16.mxu0 0
      %2625 = vmatpush1.bf16.msra.mxu0 %v2280
      %2626 = vmatprep.subr.bf16.mxu0 0
      %2627 = vmatpush1.bf16.msra.mxu0 %v2281
      %2628 = vmatprep.subr.bf16.mxu0 0
      %2629 = vmatpush1.bf16.msra.mxu0 %v2282
      %2630 = vmatprep.subr.bf16.mxu0 0
      %2631 = vmatpush1.bf16.msra.mxu0 %v2283
      %2632 = vmatprep.subr.bf16.mxu0 0
      %2633 = vmatpush1.bf16.msra.mxu0 0
      %2634 = vmatprep.subr.bf16.mxu0 0
      %2635 = vmatpush1.bf16.msra.mxu0 0
      %2636 = vmatprep.subr.bf16.mxu0 0
      %2637 = vmatpush1.bf16.msra.mxu0 0
      %2638 = vmatprep.subr.bf16.mxu0 0
      %2639 = vmatpush1.bf16.msra.mxu0 0
      %2640 = vmatprep.subr.bf16.mxu0 0
      %2641 = vmatpush1.bf16.msra.mxu0 0
      %2642 = vmatprep.subr.bf16.mxu0 0
      %2643 = vmatpush1.bf16.msra.mxu0 0
      %2644 = vmatprep.subr.bf16.mxu0 0
      %2645 = vmatpush1.bf16.msra.mxu0 0
      %2646 = vmatprep.subr.bf16.mxu0 0
      %2647 = vmatpush1.bf16.msra.mxu0 0
      %2648 = vmatprep.mubr.bf16.mxu0 0
      %2649 = vmatmul.mubr.bf16.gmra.mrb[0].mxu0 %v1752
      %v2650 = vpop.f32.mrb[0].mxu0
      %v2651 = vadd.f32 %v2586, %v2650
      %v2652 = vpop.f32.mrb[0].mxu0
      %v2653 = vpop.f32.mrb[0].mxu0
      %v2654 = vadd.f32 %v2589, %v2653
      %v2655 = vpop.f32.mrb[0].mxu0
      %2656 = vmatprep.mubr.bf16.mxu0 0
      %2657 = vmatmul.mubr.bf16.gmra.mrb[0].mxu0 %v1761
      %v2658 = vpop.f32.mrb[0].mxu0
      %v2659 = vadd.f32 %v2594, %v2658
      %v2660 = vpop.f32.mrb[0].mxu0
      %v2661 = vpop.f32.mrb[0].mxu0
      %v2662 = vadd.f32 %v2597, %v2661
      %v2663 = vpop.f32.mrb[0].mxu0
      %2664 = vmatprep.mubr.bf16.mxu0 0
      %2665 = vmatmul.mubr.bf16.gmra.mrb[0].mxu0 %v1770
      %v2666 = vpop.f32.mrb[0].mxu0
      %v2667 = vadd.f32 %v2602, %v2666
      %v2668 = vpop.f32.mrb[0].mxu0
      %v2669 = vpop.f32.mrb[0].mxu0
      %v2670 = vadd.f32 %v2605, %v2669
      %v2671 = vpop.f32.mrb[0].mxu0
      %2672 = vmatprep.mubr.bf16.mxu0 0
      %2673 = vmatmul.mubr.bf16.gmra.mrb[0].mxu0 %v1779
      %v2674 = vpop.f32.mrb[0].mxu0
      %v2675 = vadd.f32 %v2610, %v2674
      %v2676 = vpop.f32.mrb[0].mxu0
      %v2677 = vpop.f32.mrb[0].mxu0
      %v2678 = vadd.f32 %v2613, %v2677
      %v2679 = vpop.f32.mrb[0].mxu0
      %2680 = vdwg.mxu0
      %v2681 = vmax.f32 %v2651, 0.0
      %v2682 = vmax.f32 %v2654, 0.0
      %v2683 = vmax.f32 %v2659, 0.0
      %v2684 = vmax.f32 %v2662, 0.0
      %v2685 = vmax.f32 %v2667, 0.0
      %v2686 = vmax.f32 %v2670, 0.0
      %v2687 = vmax.f32 %v2675, 0.0
      %v2688 = vmax.f32 %v2678, 0.0
      %v2689 = vld [vmem:[%s8] sm:$0x1]
      %v2691 = vlaneseq
      %v2692 = vshrl.u32 %v2691, 7
      %v2693 = vsub.s32 0, %v2692
      %v2694 = vrot.slane %v2689, %v2693
      %v2696 = vmul.f32 %v2681, %v2694
      %v2697 = vmul.f32 %v2682, %v2694
      %v2698 = vmul.f32 %v2683, %v2694
      %v2699 = vmul.f32 %v2684, %v2694
      %v2700 = vmul.f32 %v2685, %v2694
      %v2701 = vmul.f32 %v2686, %v2694
      %v2702 = vmul.f32 %v2687, %v2694
      %v2703 = vmul.f32 %v2688, %v2694
      %v2704 = vld [vmem:[%s9] sm:$0x1]
      %v2706 = vlaneseq
      %v2707 = vshrl.u32 %v2706, 7
      %v2708 = vsub.s32 0, %v2707
      %v2709 = vrot.slane %v2704, %v2708
      %v2711 = vadd.f32 %v2696, %v2709
      %v2712 = vadd.f32 %v2697, %v2709
      %v2713 = vadd.f32 %v2698, %v2709
      %v2714 = vadd.f32 %v2699, %v2709
      %v2715 = vadd.f32 %v2700, %v2709
      %v2716 = vadd.f32 %v2701, %v2709
      %v2717 = vadd.f32 %v2702, %v2709
      %v2718 = vadd.f32 %v2703, %v2709
      %v2719 = vpack.c.bf16 %v2712, %v2711
      %v2720 = vpack.c.bf16 %v2714, %v2713
      %v2721 = vpack.c.bf16 %v2716, %v2715
      %v2722 = vpack.c.bf16 %v2718, %v2717
      %v2723 = vld [vmem:[%s10] sm:$0xf]
      %v2724 = vld [vmem:[%s10 + $0x4] sm:$0xf]
      %v2725 = vld [vmem:[%s10 + $0x8] sm:$0xf]
      %v2726 = vld [vmem:[%s10 + $0xc] sm:$0xf]
      %v2727 = vld [vmem:[%s10 + $0x10] sm:$0xf]
      %v2728 = vld [vmem:[%s10 + $0x14] sm:$0xf]
      %v2729 = vld [vmem:[%s10 + $0x18] sm:$0xf]
      %v2730 = vld [vmem:[%s10 + $0x1c] sm:$0xf]
      %v2731 = vld [vmem:[%s10 + $0x20] sm:$0xf]
      %v2732 = vld [vmem:[%s10 + $0x24] sm:$0xf]
      %v2733 = vld [vmem:[%s10 + $0x28] sm:$0xf]
      %v2734 = vld [vmem:[%s10 + $0x2c] sm:$0xf]
      %v2735 = vld [vmem:[%s10 + $0x30] sm:$0xf]
      %v2736 = vld [vmem:[%s10 + $0x34] sm:$0xf]
      %v2737 = vld [vmem:[%s10 + $0x38] sm:$0xf]
      %v2738 = vld [vmem:[%s10 + $0x3c] sm:$0xf]
      %v2755 = vunpack.c.l.b16 %v2723
      %v2756 = vunpack.c.l.b16 %v2724
      %v2757 = vunpack.c.l.b16 %v2725
      %v2758 = vunpack.c.l.b16 %v2726
      %v2759 = vunpack.c.l.b16 %v2727
      %v2760 = vunpack.c.l.b16 %v2728
      %v2761 = vunpack.c.l.b16 %v2729
      %v2762 = vunpack.c.l.b16 %v2730
      %v2763 = vunpack.c.l.b16 %v2731
      %v2764 = vunpack.c.l.b16 %v2732
      %v2765 = vunpack.c.l.b16 %v2733
      %v2766 = vunpack.c.l.b16 %v2734
      %v2767 = vunpack.c.l.b16 %v2735
      %v2768 = vunpack.c.l.b16 %v2736
      %v2769 = vunpack.c.l.b16 %v2737
      %v2770 = vunpack.c.l.b16 %v2738
      %v2771 = vpack.c.b16 %v2756, %v2755
      %v2772 = vpack.c.b16 %v2758, %v2757
      %v2773 = vpack.c.b16 %v2760, %v2759
      %v2774 = vpack.c.b16 %v2762, %v2761
      %v2775 = vpack.c.b16 %v2764, %v2763
      %v2776 = vpack.c.b16 %v2766, %v2765
      %v2777 = vpack.c.b16 %v2768, %v2767
      %v2778 = vpack.c.b16 %v2770, %v2769
      %2787 = vmatprep.subr.bf16.mxu0 0
      %2788 = vmatpush1.bf16.msra.mxu0 %v2771
      %2789 = vmatprep.subr.bf16.mxu0 0
      %2790 = vmatpush1.bf16.msra.mxu0 %v2772
      %2791 = vmatprep.subr.bf16.mxu0 0
      %2792 = vmatpush1.bf16.msra.mxu0 %v2773
      %2793 = vmatprep.subr.bf16.mxu0 0
      %2794 = vmatpush1.bf16.msra.mxu0 %v2774
      %2795 = vmatprep.subr.bf16.mxu0 0
      %2796 = vmatpush1.bf16.msra.mxu0 %v2775
      %2797 = vmatprep.subr.bf16.mxu0 0
      %2798 = vmatpush1.bf16.msra.mxu0 %v2776
      %2799 = vmatprep.subr.bf16.mxu0 0
      %2800 = vmatpush1.bf16.msra.mxu0 %v2777
      %2801 = vmatprep.subr.bf16.mxu0 0
      %2802 = vmatpush1.bf16.msra.mxu0 %v2778
      %2803 = vmatprep.subr.bf16.mxu0 0
      %2804 = vmatpush1.bf16.msra.mxu0 0
      %2805 = vmatprep.subr.bf16.mxu0 0
      %2806 = vmatpush1.bf16.msra.mxu0 0
      %2807 = vmatprep.subr.bf16.mxu0 0
      %2808 = vmatpush1.bf16.msra.mxu0 0
      %2809 = vmatprep.subr.bf16.mxu0 0
      %2810 = vmatpush1.bf16.msra.mxu0 0
      %2811 = vmatprep.subr.bf16.mxu0 0
      %2812 = vmatpush1.bf16.msra.mxu0 0
      %2813 = vmatprep.subr.bf16.mxu0 0
      %2814 = vmatpush1.bf16.msra.mxu0 0
      %2815 = vmatprep.subr.bf16.mxu0 0
      %2816 = vmatpush1.bf16.msra.mxu0 0
      %2817 = vmatprep.subr.bf16.mxu0 0
      %2818 = vmatpush1.bf16.msra.mxu0 0
      %2819 = vmatprep.mubr.bf16.mxu0 0
      %2820 = vmatmul.mubr.bf16.gmra.mrb[0].mxu0 %v2719
      %v2821 = vpop.f32.mrb[0].mxu0
      %v2822 = vadd.f32 0.0, %v2821
      %v2823 = vpop.f32.mrb[0].mxu0
      %v2824 = vpop.f32.mrb[0].mxu0
      %v2825 = vadd.f32 0.0, %v2824
      %v2826 = vpop.f32.mrb[0].mxu0
      %2827 = vmatprep.mubr.bf16.mxu0 0
      %2828 = vmatmul.mubr.bf16.gmra.mrb[0].mxu0 %v2720
      %v2829 = vpop.f32.mrb[0].mxu0
      %v2830 = vadd.f32 0.0, %v2829
      %v2831 = vpop.f32.mrb[0].mxu0
      %v2832 = vpop.f32.mrb[0].mxu0
      %v2833 = vadd.f32 0.0, %v2832
      %v2834 = vpop.f32.mrb[0].mxu0
      %2835 = vmatprep.mubr.bf16.mxu0 0
      %2836 = vmatmul.mubr.bf16.gmra.mrb[0].mxu0 %v2721
      %v2837 = vpop.f32.mrb[0].mxu0
      %v2838 = vadd.f32 0.0, %v2837
      %v2839 = vpop.f32.mrb[0].mxu0
      %v2840 = vpop.f32.mrb[0].mxu0
      %v2841 = vadd.f32 0.0, %v2840
      %v2842 = vpop.f32.mrb[0].mxu0
      %2843 = vmatprep.mubr.bf16.mxu0 0
      %2844 = vmatmul.mubr.bf16.gmra.mrb[0].mxu0 %v2722
      %v2845 = vpop.f32.mrb[0].mxu0
      %v2846 = vadd.f32 0.0, %v2845
      %v2847 = vpop.f32.mrb[0].mxu0
      %v2848 = vpop.f32.mrb[0].mxu0
      %v2849 = vadd.f32 0.0, %v2848
      %v2850 = vpop.f32.mrb[0].mxu0
      %2851 = vdwg.mxu0
      %v2852 = vld [vmem:[%s11] sm:$0x1]
      %v2854 = vlaneseq
      %v2855 = vshrl.u32 %v2854, 7
      %v2856 = vsub.s32 0, %v2855
      %v2857 = vrot.slane %v2852, %v2856
      %v2859 = vmul.f32 %v2822, %v2857
      %v2860 = vmul.f32 %v2825, %v2857
      %v2861 = vmul.f32 %v2830, %v2857
      %v2862 = vmul.f32 %v2833, %v2857
      %v2863 = vmul.f32 %v2838, %v2857
      %v2864 = vmul.f32 %v2841, %v2857
      %v2865 = vmul.f32 %v2846, %v2857
      %v2866 = vmul.f32 %v2849, %v2857
      %v2867 = vpack.c.bf16 %v1446, %v1444
      %v2868 = vpack.c.bf16 %v1450, %v1448
      %v2869 = vpack.c.bf16 %v1454, %v1452
      %v2870 = vpack.c.bf16 %v1458, %v1456
      %v2871 = vld [vmem:[%s12] sm:$0xf]
      %v2872 = vld [vmem:[%s12 + $0x4] sm:$0xf]
      %v2875 = vunpack.c.l.b16 %v2871
      %v2876 = vunpack.c.l.b16 %v2872
      %v2877 = vpack.c.b16 %v2876, %v2875
      %v2880 = vsel %vm628, %v2867, 0
      %v2883 = vsel %vm628, %v2868, 0
      %v2886 = vsel %vm628, %v2869, 0
      %v2889 = vsel %vm628, %v2870, 0
      %2891 = vmatprep.subr.bf16.mxu0 0
      %2892 = vmatpush1.bf16.msra.mxu0 %v2877
      %2893 = vmatprep.subr.bf16.mxu0 0
      %2894 = vmatpush1.bf16.msra.mxu0 0
      %2895 = vmatprep.subr.bf16.mxu0 0
      %2896 = vmatpush1.bf16.msra.mxu0 0
      %2897 = vmatprep.subr.bf16.mxu0 0
      %2898 = vmatpush1.bf16.msra.mxu0 0
      %2899 = vmatprep.subr.bf16.mxu0 0
      %2900 = vmatpush1.bf16.msra.mxu0 0
      %2901 = vmatprep.subr.bf16.mxu0 0
      %2902 = vmatpush1.bf16.msra.mxu0 0
      %2903 = vmatprep.subr.bf16.mxu0 0
      %2904 = vmatpush1.bf16.msra.mxu0 0
      %2905 = vmatprep.subr.bf16.mxu0 0
      %2906 = vmatpush1.bf16.msra.mxu0 0
      %2907 = vmatprep.subr.bf16.mxu0 0
      %2908 = vmatpush1.bf16.msra.mxu0 0
      %2909 = vmatprep.subr.bf16.mxu0 0
      %2910 = vmatpush1.bf16.msra.mxu0 0
      %2911 = vmatprep.subr.bf16.mxu0 0
      %2912 = vmatpush1.bf16.msra.mxu0 0
      %2913 = vmatprep.subr.bf16.mxu0 0
      %2914 = vmatpush1.bf16.msra.mxu0 0
      %2915 = vmatprep.subr.bf16.mxu0 0
      %2916 = vmatpush1.bf16.msra.mxu0 0
      %2917 = vmatprep.subr.bf16.mxu0 0
      %2918 = vmatpush1.bf16.msra.mxu0 0
      %2919 = vmatprep.subr.bf16.mxu0 0
      %2920 = vmatpush1.bf16.msra.mxu0 0
      %2921 = vmatprep.subr.bf16.mxu0 0
      %2922 = vmatpush1.bf16.msra.mxu0 0
      %2923 = vmatprep.mubr.bf16.mxu0 0
      %2924 = vmatmul.mubr.bf16.gmra.mrb[0].mxu0 %v2880
      %v2925 = vpop.f32.mrb[0].mxu0
      %v2926 = vadd.f32 0.0, %v2925
      %v2927 = vpop.f32.mrb[0].mxu0
      %v2928 = vpop.f32.mrb[0].mxu0
      %v2929 = vadd.f32 0.0, %v2928
      %v2930 = vpop.f32.mrb[0].mxu0
      %2931 = vmatprep.mubr.bf16.mxu0 0
      %2932 = vmatmul.mubr.bf16.gmra.mrb[0].mxu0 %v2883
      %v2933 = vpop.f32.mrb[0].mxu0
      %v2934 = vadd.f32 0.0, %v2933
      %v2935 = vpop.f32.mrb[0].mxu0
      %v2936 = vpop.f32.mrb[0].mxu0
      %v2937 = vadd.f32 0.0, %v2936
      %v2938 = vpop.f32.mrb[0].mxu0
      %2939 = vmatprep.mubr.bf16.mxu0 0
      %2940 = vmatmul.mubr.bf16.gmra.mrb[0].mxu0 %v2886
      %v2941 = vpop.f32.mrb[0].mxu0
      %v2942 = vadd.f32 0.0, %v2941
      %v2943 = vpop.f32.mrb[0].mxu0
      %v2944 = vpop.f32.mrb[0].mxu0
      %v2945 = vadd.f32 0.0, %v2944
      %v2946 = vpop.f32.mrb[0].mxu0
      %2947 = vmatprep.mubr.bf16.mxu0 0
      %2948 = vmatmul.mubr.bf16.gmra.mrb[0].mxu0 %v2889
      %v2949 = vpop.f32.mrb[0].mxu0
      %v2950 = vadd.f32 0.0, %v2949
      %v2951 = vpop.f32.mrb[0].mxu0
      %v2952 = vpop.f32.mrb[0].mxu0
      %v2953 = vadd.f32 0.0, %v2952
      %v2954 = vpop.f32.mrb[0].mxu0
      %2955 = vdwg.mxu0
      %v2956 = vld [vmem:[%s13] sm:$0x1]
      %v2958 = vlaneseq
      %v2959 = vshrl.u32 %v2958, 7
      %v2960 = vsub.s32 0, %v2959
      %v2961 = vrot.slane %v2956, %v2960
      %v2963 = vmul.f32 %v2926, %v2961
      %v2964 = vmul.f32 %v2929, %v2961
      %v2965 = vmul.f32 %v2934, %v2961
      %v2966 = vmul.f32 %v2937, %v2961
      %v2967 = vmul.f32 %v2942, %v2961
      %v2968 = vmul.f32 %v2945, %v2961
      %v2969 = vmul.f32 %v2950, %v2961
      %v2970 = vmul.f32 %v2953, %v2961
      %v2971 = vld [vmem:[%s14] sm:$0x1]
      %v2973 = vlaneseq
      %v2974 = vshrl.u32 %v2973, 7
      %v2975 = vsub.s32 0, %v2974
      %v2976 = vrot.slane %v2971, %v2975
      %v2978 = vadd.f32 %v2963, %v2976
      %v2979 = vadd.f32 %v2964, %v2976
      %v2980 = vadd.f32 %v2965, %v2976
      %v2981 = vadd.f32 %v2966, %v2976
      %v2982 = vadd.f32 %v2967, %v2976
      %v2983 = vadd.f32 %v2968, %v2976
      %v2984 = vadd.f32 %v2969, %v2976
      %v2985 = vadd.f32 %v2970, %v2976
      %v2986 = vadd.f32 %v2859, %v2978
      %v2987 = vadd.f32 %v2860, %v2979
      %v2988 = vadd.f32 %v2861, %v2980
      %v2989 = vadd.f32 %v2862, %v2981
      %v2990 = vadd.f32 %v2863, %v2982
      %v2991 = vadd.f32 %v2864, %v2983
      %v2992 = vadd.f32 %v2865, %v2984
      %v2993 = vadd.f32 %v2866, %v2985
      %v2994 = vmax.f32 %v2986, 0.0
      %v2995 = vmax.f32 %v2987, 0.0
      %v2996 = vmax.f32 %v2988, 0.0
      %v2997 = vmax.f32 %v2989, 0.0
      %v2998 = vmax.f32 %v2990, 0.0
      %v2999 = vmax.f32 %v2991, 0.0
      %v3000 = vmax.f32 %v2992, 0.0
      %v3001 = vmax.f32 %v2993, 0.0
      %3002 = vst [vmem:[%s494] sm:$0xff] %v2994
      %3003 = vst [vmem:[%s494 + $0x8] sm:$0xff] %v2995
      %3004 = vst [vmem:[%s494 + $0x10] sm:$0xff] %v2996
      %3005 = vst [vmem:[%s494 + $0x18] sm:$0xff] %v2997
      %3006 = vst [vmem:[%s494 + $0x20] sm:$0xff] %v2998
      %3007 = vst [vmem:[%s494 + $0x28] sm:$0xff] %v2999
      %3008 = vst [vmem:[%s494 + $0x30] sm:$0xff] %v3000
      %3009 = vst [vmem:[%s494 + $0x38] sm:$0xff] %v3001
      %p3010 = scmp.lt.s32.totalorder %s26, 1
      %s3011 = scalar_select %p3010, %s26, 1
      %s3012 = smul.addr %s3011, 8
      %s3013 = smul.addr %s3012, 8
      %s3014 = scalar_lea.vmem %s15, %s3013
      // Predicated region
      $region81: #{bottleneck_forward.1} parent=79 // pred_check
        %p3015 = pneg %p364
      $region82: #{bottleneck_forward.1} parent=79 // pred_check_branch
        %3017 = sbr.rel (%p3015) target = $region84
      $region83: #{bottleneck_forward.1} parent=79 // pred_region
        _
      $region84: #{bottleneck_forward.1} parent=79 // pred_fallthru
        _
    $region80: #{bottleneck_forward.1} parent=5 // pred_fallthru
      _
    %p3018 = scmp.le.s32.totalorder 2, %s21
    // Predicated region
    $region85: #{bottleneck_forward.1} parent=5 // pred_check
      %p3019 = pneg %p3018
    $region86: #{bottleneck_forward.1} parent=5 // pred_check_branch
      %3021 = sbr.rel (%p3019) target = $region88
    $region87: #{bottleneck_forward.1} parent=5 // pred_region
      %s3022 = ssub.s32 %s21, 2
      // Predicated region
      $region89: #{bottleneck_forward.1} parent=87 // pred_check
        %p3023 = pneg %p370
      $region90: #{bottleneck_forward.1} parent=87 // pred_check_branch
        %3025 = sbr.rel (%p3023) target = $region92
      $region91: #{bottleneck_forward.1} parent=87 // pred_region
        %p3026 = scmp.lt.s32.totalorder %s27, 1
        %s3027 = scalar_select %p3026, %s27, 1
        %s3028 = smul.addr %s3027, 8
        %s3029 = smul.addr %s3028, 8
        %s3030 = scalar_lea.vmem %s15, %s3029
      $region92: #{bottleneck_forward.1} parent=87 // pred_fallthru
        _
    $region88: #{bottleneck_forward.1} parent=5 // pred_fallthru
      _
  $region6: #{bottleneck_forward.1} parent=0 // loop_footer
    %s25 = sadd.s32 1, %s21
  $region7: #{bottleneck_forward.1} parent=0 // loop_footer_branch
    %20 = sbr.rel target = $region3
  $region8: #{bottleneck_forward.1} parent=0 // loop_exit
    _

</llo_original>
